<compile_context>
chip_gen: v6e
topology: v6e:2x2x1
jax: 0.10.0
libtpu: 0.0.40
codegen_flags: <defaults>
</compile_context>

<pallas_src>
import functools

import jax
import jax.numpy as jnp
from jax.experimental import pallas as pl
from jax.experimental.pallas import tpu as pltpu


# ----------------------------- Pallas kernel --------------------------------
def _make_quanv_kernel(c, oc, k, stride, ho, wo):
    """Build the per-batch-element fused quanvolution kernel body."""
    kk = k * k
    span_h = (ho - 1) * stride + 1
    span_w = (wo - 1) * stride + 1

    def kernel(x_ref, phase_ref, w_ref, b_ref, out_ref, s_ref):
        # x_ref:     (1, C, Hp, Wp)  padded input, one batch element (VMEM)
        # phase_ref: (C*k*k,)        per-tap rotation phases (SMEM scalars)
        # w_ref:     (OC*C,)         fused (1x1 conv / k^2) weights (SMEM scalars)
        # b_ref:     (OC,)           1x1-conv bias (SMEM scalars)
        # out_ref:   (1, OC, Ho, Wo) output tile (NCHW, no post-transpose needed)
        # s_ref:     (C, Ho, Wo)     VMEM scratch: per-channel sum of tap expvals
        #
        # Fused im2col: the k*k shifted windows are sliced straight out of the
        # padded input tile already resident in VMEM — no HBM patch slab.
        for ci in range(c):
            s = jnp.zeros((ho, wo), jnp.float32)
            for di in range(k):
                for dj in range(k):
                    v = x_ref[0, ci, di:di + span_h, dj:dj + span_w]
                    if stride > 1:
                        # TODO(synk): strided taps take a contiguous-load +
                        # subsample path; stride==1 (the default) never hits it.
                        v = v[::stride, ::stride]
                    # Quantum-kernel surrogate expectation <Z_f>
                    # (product-state limit of the entangling QNode).
                    s = s + jnp.cos(v.astype(jnp.float32)
                                    + phase_ref[ci * kk + di * k + dj])
            s_ref[ci] = s
        # 1x1-conv channel mix, with the mean-over-window 1/k^2 folded into w.
        for oi in range(oc):
            acc = jnp.zeros((ho, wo), jnp.float32) + b_ref[oi]
            for ci in range(c):
                acc = acc + w_ref[oi * c + ci] * s_ref[ci]
            out_ref[0, oi] = acc.astype(out_ref.dtype)

    return kernel


# ------------------------------- wrapper --------------------------------------
@functools.partial(jax.jit,
                   static_argnames=("kernel_size", "stride", "padding",
                                    "input_dtype"))
def hybrid_quanv2d(x, wq, wc, bc, *, kernel_size=2, stride=1, padding=0,
                   input_dtype=jnp.float32):
    """Forward pass of HybridQuanv2d.

    x:  (N, C, H, W) float32
    wq: (num_qlayers, C*k*k) quantum-layer rotation params
    wc: (out_C, C) 1x1 conv weight (flattened from (out_C, C, 1, 1))
    bc: (out_C,)   1x1 conv bias
    returns (N, out_C, H_out, W_out) float32 (NCHW, like the PyTorch module)
    """
    n, c, h, w = x.shape
    k = kernel_size
    kk = k * k
    oc = wc.shape[0]

    xp = jnp.pad(x, ((0, 0), (0, 0), (padding, padding), (padding, padding)))
    hp, wp = h + 2 * padding, w + 2 * padding
    ho = (hp - k) // stride + 1
    wo = (wp - k) // stride + 1

    # Optional narrower input stream (halves the dominant HBM read); the
    # in-kernel upcast to f32 keeps VPU/EUP work in f32 on all generations.
    xp = xp.astype(input_dtype)
    itemsize = jnp.dtype(input_dtype).itemsize

    # Tiny constants, folded once in the wrapper, held in SMEM by the kernel:
    #   phase[f]          = sum_l wq[l, f]                      (C*k*k,)
    #   w_fuse[oi*C + ci] = wc[oi, ci] / k^2   (1x1 conv ∘ window mean)
    phase = jnp.sum(wq, axis=0).reshape(c * kk).astype(jnp.float32)
    w_fuse = (wc.astype(jnp.float32) / float(kk)).reshape(oc * c)
    bias = bc.reshape(oc).astype(jnp.float32)

    # VMEM budget: double-buffered input & output tiles + per-channel scratch.
    # Raise the scoped limit past v5e's 16 MiB default, but cap at 48 MiB so we
    # stay well under v7x's 64 MiB physical VMEM.
    block_bytes = (2 * c * hp * wp * itemsize        # input tile, double-buffered
                   + 2 * oc * ho * wo * 4            # output tile, double-buffered
                   + c * ho * wo * 4)                # scratch
    vmem_limit = int(min(max(4 * block_bytes, 32 << 20), 48 << 20))

    cost = pl.CostEstimate(
        flops=n * ho * wo * (2 * c * kk + 2 * c * oc + oc),
        transcendentals=n * ho * wo * c * kk,
        bytes_accessed=(n * c * hp * wp * itemsize + n * oc * ho * wo * 4
                        + (c * kk + oc * c + oc) * 4),
    )

    kernel = _make_quanv_kernel(c, oc, k, stride, ho, wo)

    out = pl.pallas_call(
        kernel,
        out_shape=jax.ShapeDtypeStruct((n, oc, ho, wo), jnp.float32),
        grid=(n,),
        in_specs=[
            pl.BlockSpec((1, c, hp, wp), lambda i: (i, 0, 0, 0)),     # padded image
            pl.BlockSpec(memory_space=pltpu.MemorySpace.SMEM),        # phases
            pl.BlockSpec(memory_space=pltpu.MemorySpace.SMEM),        # fused weight
            pl.BlockSpec(memory_space=pltpu.MemorySpace.SMEM),        # bias
        ],
        out_specs=pl.BlockSpec((1, oc, ho, wo), lambda i: (i, 0, 0, 0)),
        scratch_shapes=[pltpu.VMEM((c, ho, wo), jnp.float32)],
        compiler_params=pltpu.CompilerParams(
            dimension_semantics=("parallel",),
            vmem_limit_bytes=vmem_limit,
        ),
        cost_estimate=cost,
    )(xp, phase, w_fuse, bias)
    return out


# ----------------------------- reference (pure JAX) ---------------------------
def _reference(x, wq, wc, bc, *, kernel_size=2, stride=1, padding=0):
    """Independent shift-and-accumulate formulation (no kernel, no Pallas)."""
    n, c, h, w = x.shape
    k = kernel_size
    kk = k * k
    xp = jnp.pad(x, ((0, 0), (0, 0), (padding, padding), (padding, padding)))
    hp, wp = h + 2 * padding, w + 2 * padding
    ho = (hp - k) // stride + 1
    wo = (wp - k) // stride + 1
    oc = wc.shape[0]
    phase = jnp.sum(wq, axis=0).reshape(c, kk)
    out = jnp.broadcast_to(bc[None, :, None, None], (n, oc, ho, wo)).astype(jnp.float32)
    for ci in range(c):
        for di in range(k):
            for dj in range(k):
                win = xp[:, ci,
                         di: di + (ho - 1) * stride + 1: stride,
                         dj: dj + (wo - 1) * stride + 1: stride]      # (N, Ho, Wo)
                e = jnp.cos(win + phase[ci, di * k + dj])
                out = out + (wc[:, ci] / kk)[None, :, None, None] * e[:, None, :, :]
    return out


if __name__ == "__main__":
    # Module hyperparameters (small, consistent with the PyTorch __init__).
    in_channels, out_channels = 4, 8
    kernel_size, stride, padding = 2, 1, 0
    num_qlayers = 2

    key = jax.random.PRNGKey(0)
    kx, kq, kw, kb = jax.random.split(key, 4)

    # Input (NCHW, as PyTorch Conv2d expects).
    x = jax.random.normal(kx, (2, in_channels, 16, 16), dtype=jnp.float32)

    # Deterministic parameter init (synthetic, not a checkpoint).
    num_qubits = in_channels * kernel_size * kernel_size
    wq = jax.random.uniform(kq, (num_qlayers, num_qubits), jnp.float32,
                            minval=0.0, maxval=2.0 * jnp.pi)
    wc = 0.1 * jax.random.normal(kw, (out_channels, in_channels), jnp.float32)
    bc = 0.01 * jax.random.normal(kb, (out_channels,), jnp.float32)

    y = hybrid_quanv2d(x, wq, wc, bc,
                       kernel_size=kernel_size, stride=stride, padding=padding)
    y = jax.block_until_ready(y)

    y_ref = _reference(x, wq, wc, bc,
                       kernel_size=kernel_size, stride=stride, padding=padding)
    assert y.shape == (2, out_channels, 15, 15), y.shape
    err = float(jnp.max(jnp.abs(y - y_ref)))
    assert jnp.allclose(y, y_ref, atol=2e-5, rtol=2e-5), f"mismatch vs reference: {err}"

    print("KERNEL_OK")
</pallas_src>

<mosaic_0001>
module attributes {stable_mosaic.version = 11 : i64} {
  func.func @kernel(%arg0: i32, %arg1: memref<1x4x16x16xf32, #tpu.memory_space<vmem>>, %arg2: memref<16xf32, #tpu.memory_space<smem>>, %arg3: memref<32xf32, #tpu.memory_space<smem>>, %arg4: memref<8xf32, #tpu.memory_space<smem>>, %arg5: memref<1x8x15x15xf32, #tpu.memory_space<vmem>>, %arg6: memref<4x15x15xf32, #tpu.memory_space<vmem>>) attributes {dimension_semantics = [#tpu.dimension_semantics<parallel>], iteration_bounds = array<i64: 2>, scalar_prefetch = 0 : i64, scratch_operands = 1 : i64, tpu.core_type = #tpu.core_type<tc>, window_params = [{transform_indices = @transform_0, window_bounds = array<i64: 1, 4, 16, 16>}, {transform_indices = @transform_1, window_bounds = array<i64: 16>}, {transform_indices = @transform_2, window_bounds = array<i64: 32>}, {transform_indices = @transform_3, window_bounds = array<i64: 8>}, {transform_indices = @transform_4, window_bounds = array<i64: 1, 8, 15, 15>}]} {
    %cst = arith.constant 0.000000e+00 : f32
    %0 = vector.broadcast %cst : f32 to vector<15x15xf32>
    %c0 = arith.constant 0 : index
    %c0_0 = arith.constant 0 : index
    %c0_1 = arith.constant 0 : index
    %c0_2 = arith.constant 0 : index
    %1 = vector.load %arg1[%c0, %c0_0, %c0_1, %c0_2] : memref<1x4x16x16xf32, #tpu.memory_space<vmem>>, vector<1x1x15x15xf32>
    %2 = vector.shape_cast %1 : vector<1x1x15x15xf32> to vector<15x15xf32>
    %c0_3 = arith.constant 0 : index
    %3 = memref.load %arg2[%c0_3] : memref<16xf32, #tpu.memory_space<smem>>
    %4 = vector.broadcast %3 : f32 to vector<15x15xf32>
    %5 = arith.addf %2, %4 : vector<15x15xf32>
    %6 = math.cos %5 : vector<15x15xf32>
    %7 = arith.addf %0, %6 : vector<15x15xf32>
    %c0_4 = arith.constant 0 : index
    %c0_5 = arith.constant 0 : index
    %c0_6 = arith.constant 0 : index
    %c1 = arith.constant 1 : index
    %8 = vector.load %arg1[%c0_4, %c0_5, %c0_6, %c1] : memref<1x4x16x16xf32, #tpu.memory_space<vmem>>, vector<1x1x15x15xf32>
    %9 = vector.shape_cast %8 : vector<1x1x15x15xf32> to vector<15x15xf32>
    %c1_7 = arith.constant 1 : index
    %10 = memref.load %arg2[%c1_7] : memref<16xf32, #tpu.memory_space<smem>>
    %11 = vector.broadcast %10 : f32 to vector<15x15xf32>
    %12 = arith.addf %9, %11 : vector<15x15xf32>
    %13 = math.cos %12 : vector<15x15xf32>
    %14 = arith.addf %7, %13 : vector<15x15xf32>
    %c0_8 = arith.constant 0 : index
    %c0_9 = arith.constant 0 : index
    %c1_10 = arith.constant 1 : index
    %c0_11 = arith.constant 0 : index
    %15 = vector.load %arg1[%c0_8, %c0_9, %c1_10, %c0_11] : memref<1x4x16x16xf32, #tpu.memory_space<vmem>>, vector<1x1x15x15xf32>
    %16 = vector.shape_cast %15 : vector<1x1x15x15xf32> to vector<15x15xf32>
    %c2 = arith.constant 2 : index
    %17 = memref.load %arg2[%c2] : memref<16xf32, #tpu.memory_space<smem>>
    %18 = vector.broadcast %17 : f32 to vector<15x15xf32>
    %19 = arith.addf %16, %18 : vector<15x15xf32>
    %20 = math.cos %19 : vector<15x15xf32>
    %21 = arith.addf %14, %20 : vector<15x15xf32>
    %c0_12 = arith.constant 0 : index
    %c0_13 = arith.constant 0 : index
    %c1_14 = arith.constant 1 : index
    %c1_15 = arith.constant 1 : index
    %22 = vector.load %arg1[%c0_12, %c0_13, %c1_14, %c1_15] : memref<1x4x16x16xf32, #tpu.memory_space<vmem>>, vector<1x1x15x15xf32>
    %23 = vector.shape_cast %22 : vector<1x1x15x15xf32> to vector<15x15xf32>
    %c3 = arith.constant 3 : index
    %24 = memref.load %arg2[%c3] : memref<16xf32, #tpu.memory_space<smem>>
    %25 = vector.broadcast %24 : f32 to vector<15x15xf32>
    %26 = arith.addf %23, %25 : vector<15x15xf32>
    %27 = math.cos %26 : vector<15x15xf32>
    %28 = arith.addf %21, %27 : vector<15x15xf32>
    %c0_16 = arith.constant 0 : index
    %c0_17 = arith.constant 0 : index
    %c0_18 = arith.constant 0 : index
    %29 = vector.load %arg6[%c0_16, %c0_17, %c0_18] : memref<4x15x15xf32, #tpu.memory_space<vmem>>, vector<1x15x15xf32>
    %30 = vector.shape_cast %29 : vector<1x15x15xf32> to vector<15x15xf32>
    %31 = vector.shape_cast %28 : vector<15x15xf32> to vector<1x15x15xf32>
    tpu.vector_store %arg6[%c0_16, %c0_17, %c0_18], %31 {strides = array<i32>} : memref<4x15x15xf32, #tpu.memory_space<vmem>>, vector<1x15x15xf32>,
    %cst_19 = arith.constant 0.000000e+00 : f32
    %32 = vector.broadcast %cst_19 : f32 to vector<15x15xf32>
    %c0_20 = arith.constant 0 : index
    %c1_21 = arith.constant 1 : index
    %c0_22 = arith.constant 0 : index
    %c0_23 = arith.constant 0 : index
    %33 = vector.load %arg1[%c0_20, %c1_21, %c0_22, %c0_23] : memref<1x4x16x16xf32, #tpu.memory_space<vmem>>, vector<1x1x15x15xf32>
    %34 = vector.shape_cast %33 : vector<1x1x15x15xf32> to vector<15x15xf32>
    %c4 = arith.constant 4 : index
    %35 = memref.load %arg2[%c4] : memref<16xf32, #tpu.memory_space<smem>>
    %36 = vector.broadcast %35 : f32 to vector<15x15xf32>
    %37 = arith.addf %34, %36 : vector<15x15xf32>
    %38 = math.cos %37 : vector<15x15xf32>
    %39 = arith.addf %32, %38 : vector<15x15xf32>
    %c0_24 = arith.constant 0 : index
    %c1_25 = arith.constant 1 : index
    %c0_26 = arith.constant 0 : index
    %c1_27 = arith.constant 1 : index
    %40 = vector.load %arg1[%c0_24, %c1_25, %c0_26, %c1_27] : memref<1x4x16x16xf32, #tpu.memory_space<vmem>>, vector<1x1x15x15xf32>
    %41 = vector.shape_cast %40 : vector<1x1x15x15xf32> to vector<15x15xf32>
    %c5 = arith.constant 5 : index
    %42 = memref.load %arg2[%c5] : memref<16xf32, #tpu.memory_space<smem>>
    %43 = vector.broadcast %42 : f32 to vector<15x15xf32>
    %44 = arith.addf %41, %43 : vector<15x15xf32>
    %45 = math.cos %44 : vector<15x15xf32>
    %46 = arith.addf %39, %45 : vector<15x15xf32>
    %c0_28 = arith.constant 0 : index
    %c1_29 = arith.constant 1 : index
    %c1_30 = arith.constant 1 : index
    %c0_31 = arith.constant 0 : index
    %47 = vector.load %arg1[%c0_28, %c1_29, %c1_30, %c0_31] : memref<1x4x16x16xf32, #tpu.memory_space<vmem>>, vector<1x1x15x15xf32>
    %48 = vector.shape_cast %47 : vector<1x1x15x15xf32> to vector<15x15xf32>
    %c6 = arith.constant 6 : index
    %49 = memref.load %arg2[%c6] : memref<16xf32, #tpu.memory_space<smem>>
    %50 = vector.broadcast %49 : f32 to vector<15x15xf32>
    %51 = arith.addf %48, %50 : vector<15x15xf32>
    %52 = math.cos %51 : vector<15x15xf32>
    %53 = arith.addf %46, %52 : vector<15x15xf32>
    %c0_32 = arith.constant 0 : index
    %c1_33 = arith.constant 1 : index
    %c1_34 = arith.constant 1 : index
    %c1_35 = arith.constant 1 : index
    %54 = vector.load %arg1[%c0_32, %c1_33, %c1_34, %c1_35] : memref<1x4x16x16xf32, #tpu.memory_space<vmem>>, vector<1x1x15x15xf32>
    %55 = vector.shape_cast %54 : vector<1x1x15x15xf32> to vector<15x15xf32>
    %c7 = arith.constant 7 : index
    %56 = memref.load %arg2[%c7] : memref<16xf32, #tpu.memory_space<smem>>
    %57 = vector.broadcast %56 : f32 to vector<15x15xf32>
    %58 = arith.addf %55, %57 : vector<15x15xf32>
    %59 = math.cos %58 : vector<15x15xf32>
    %60 = arith.addf %53, %59 : vector<15x15xf32>
    %c1_36 = arith.constant 1 : index
    %c0_37 = arith.constant 0 : index
    %c0_38 = arith.constant 0 : index
    %61 = vector.load %arg6[%c1_36, %c0_37, %c0_38] : memref<4x15x15xf32, #tpu.memory_space<vmem>>, vector<1x15x15xf32>
    %62 = vector.shape_cast %61 : vector<1x15x15xf32> to vector<15x15xf32>
    %63 = vector.shape_cast %60 : vector<15x15xf32> to vector<1x15x15xf32>
    tpu.vector_store %arg6[%c1_36, %c0_37, %c0_38], %63 {strides = array<i32>} : memref<4x15x15xf32, #tpu.memory_space<vmem>>, vector<1x15x15xf32>,
    %cst_39 = arith.constant 0.000000e+00 : f32
    %64 = vector.broadcast %cst_39 : f32 to vector<15x15xf32>
    %c0_40 = arith.constant 0 : index
    %c2_41 = arith.constant 2 : index
    %c0_42 = arith.constant 0 : index
    %c0_43 = arith.constant 0 : index
    %65 = vector.load %arg1[%c0_40, %c2_41, %c0_42, %c0_43] : memref<1x4x16x16xf32, #tpu.memory_space<vmem>>, vector<1x1x15x15xf32>
    %66 = vector.shape_cast %65 : vector<1x1x15x15xf32> to vector<15x15xf32>
    %c8 = arith.constant 8 : index
    %67 = memref.load %arg2[%c8] : memref<16xf32, #tpu.memory_space<smem>>
    %68 = vector.broadcast %67 : f32 to vector<15x15xf32>
    %69 = arith.addf %66, %68 : vector<15x15xf32>
    %70 = math.cos %69 : vector<15x15xf32>
    %71 = arith.addf %64, %70 : vector<15x15xf32>
    %c0_44 = arith.constant 0 : index
    %c2_45 = arith.constant 2 : index
    %c0_46 = arith.constant 0 : index
    %c1_47 = arith.constant 1 : index
    %72 = vector.load %arg1[%c0_44, %c2_45, %c0_46, %c1_47] : memref<1x4x16x16xf32, #tpu.memory_space<vmem>>, vector<1x1x15x15xf32>
    %73 = vector.shape_cast %72 : vector<1x1x15x15xf32> to vector<15x15xf32>
    %c9 = arith.constant 9 : index
    %74 = memref.load %arg2[%c9] : memref<16xf32, #tpu.memory_space<smem>>
    %75 = vector.broadcast %74 : f32 to vector<15x15xf32>
    %76 = arith.addf %73, %75 : vector<15x15xf32>
    %77 = math.cos %76 : vector<15x15xf32>
    %78 = arith.addf %71, %77 : vector<15x15xf32>
    %c0_48 = arith.constant 0 : index
    %c2_49 = arith.constant 2 : index
    %c1_50 = arith.constant 1 : index
    %c0_51 = arith.constant 0 : index
    %79 = vector.load %arg1[%c0_48, %c2_49, %c1_50, %c0_51] : memref<1x4x16x16xf32, #tpu.memory_space<vmem>>, vector<1x1x15x15xf32>
    %80 = vector.shape_cast %79 : vector<1x1x15x15xf32> to vector<15x15xf32>
    %c10 = arith.constant 10 : index
    %81 = memref.load %arg2[%c10] : memref<16xf32, #tpu.memory_space<smem>>
    %82 = vector.broadcast %81 : f32 to vector<15x15xf32>
    %83 = arith.addf %80, %82 : vector<15x15xf32>
    %84 = math.cos %83 : vector<15x15xf32>
    %85 = arith.addf %78, %84 : vector<15x15xf32>
    %c0_52 = arith.constant 0 : index
    %c2_53 = arith.constant 2 : index
    %c1_54 = arith.constant 1 : index
    %c1_55 = arith.constant 1 : index
    %86 = vector.load %arg1[%c0_52, %c2_53, %c1_54, %c1_55] : memref<1x4x16x16xf32, #tpu.memory_space<vmem>>, vector<1x1x15x15xf32>
    %87 = vector.shape_cast %86 : vector<1x1x15x15xf32> to vector<15x15xf32>
    %c11 = arith.constant 11 : index
    %88 = memref.load %arg2[%c11] : memref<16xf32, #tpu.memory_space<smem>>
    %89 = vector.broadcast %88 : f32 to vector<15x15xf32>
    %90 = arith.addf %87, %89 : vector<15x15xf32>
    %91 = math.cos %90 : vector<15x15xf32>
    %92 = arith.addf %85, %91 : vector<15x15xf32>
    %c2_56 = arith.constant 2 : index
    %c0_57 = arith.constant 0 : index
    %c0_58 = arith.constant 0 : index
    %93 = vector.load %arg6[%c2_56, %c0_57, %c0_58] : memref<4x15x15xf32, #tpu.memory_space<vmem>>, vector<1x15x15xf32>
    %94 = vector.shape_cast %93 : vector<1x15x15xf32> to vector<15x15xf32>
    %95 = vector.shape_cast %92 : vector<15x15xf32> to vector<1x15x15xf32>
    tpu.vector_store %arg6[%c2_56, %c0_57, %c0_58], %95 {strides = array<i32>} : memref<4x15x15xf32, #tpu.memory_space<vmem>>, vector<1x15x15xf32>,
    %cst_59 = arith.constant 0.000000e+00 : f32
    %96 = vector.broadcast %cst_59 : f32 to vector<15x15xf32>
    %c0_60 = arith.constant 0 : index
    %c3_61 = arith.constant 3 : index
    %c0_62 = arith.constant 0 : index
    %c0_63 = arith.constant 0 : index
    %97 = vector.load %arg1[%c0_60, %c3_61, %c0_62, %c0_63] : memref<1x4x16x16xf32, #tpu.memory_space<vmem>>, vector<1x1x15x15xf32>
    %98 = vector.shape_cast %97 : vector<1x1x15x15xf32> to vector<15x15xf32>
    %c12 = arith.constant 12 : index
    %99 = memref.load %arg2[%c12] : memref<16xf32, #tpu.memory_space<smem>>
    %100 = vector.broadcast %99 : f32 to vector<15x15xf32>
    %101 = arith.addf %98, %100 : vector<15x15xf32>
    %102 = math.cos %101 : vector<15x15xf32>
    %103 = arith.addf %96, %102 : vector<15x15xf32>
    %c0_64 = arith.constant 0 : index
    %c3_65 = arith.constant 3 : index
    %c0_66 = arith.constant 0 : index
    %c1_67 = arith.constant 1 : index
    %104 = vector.load %arg1[%c0_64, %c3_65, %c0_66, %c1_67] : memref<1x4x16x16xf32, #tpu.memory_space<vmem>>, vector<1x1x15x15xf32>
    %105 = vector.shape_cast %104 : vector<1x1x15x15xf32> to vector<15x15xf32>
    %c13 = arith.constant 13 : index
    %106 = memref.load %arg2[%c13] : memref<16xf32, #tpu.memory_space<smem>>
    %107 = vector.broadcast %106 : f32 to vector<15x15xf32>
    %108 = arith.addf %105, %107 : vector<15x15xf32>
    %109 = math.cos %108 : vector<15x15xf32>
    %110 = arith.addf %103, %109 : vector<15x15xf32>
    %c0_68 = arith.constant 0 : index
    %c3_69 = arith.constant 3 : index
    %c1_70 = arith.constant 1 : index
    %c0_71 = arith.constant 0 : index
    %111 = vector.load %arg1[%c0_68, %c3_69, %c1_70, %c0_71] : memref<1x4x16x16xf32, #tpu.memory_space<vmem>>, vector<1x1x15x15xf32>
    %112 = vector.shape_cast %111 : vector<1x1x15x15xf32> to vector<15x15xf32>
    %c14 = arith.constant 14 : index
    %113 = memref.load %arg2[%c14] : memref<16xf32, #tpu.memory_space<smem>>
    %114 = vector.broadcast %113 : f32 to vector<15x15xf32>
    %115 = arith.addf %112, %114 : vector<15x15xf32>
    %116 = math.cos %115 : vector<15x15xf32>
    %117 = arith.addf %110, %116 : vector<15x15xf32>
    %c0_72 = arith.constant 0 : index
    %c3_73 = arith.constant 3 : index
    %c1_74 = arith.constant 1 : index
    %c1_75 = arith.constant 1 : index
    %118 = vector.load %arg1[%c0_72, %c3_73, %c1_74, %c1_75] : memref<1x4x16x16xf32, #tpu.memory_space<vmem>>, vector<1x1x15x15xf32>
    %119 = vector.shape_cast %118 : vector<1x1x15x15xf32> to vector<15x15xf32>
    %c15 = arith.constant 15 : index
    %120 = memref.load %arg2[%c15] : memref<16xf32, #tpu.memory_space<smem>>
    %121 = vector.broadcast %120 : f32 to vector<15x15xf32>
    %122 = arith.addf %119, %121 : vector<15x15xf32>
    %123 = math.cos %122 : vector<15x15xf32>
    %124 = arith.addf %117, %123 : vector<15x15xf32>
    %c3_76 = arith.constant 3 : index
    %c0_77 = arith.constant 0 : index
    %c0_78 = arith.constant 0 : index
    %125 = vector.load %arg6[%c3_76, %c0_77, %c0_78] : memref<4x15x15xf32, #tpu.memory_space<vmem>>, vector<1x15x15xf32>
    %126 = vector.shape_cast %125 : vector<1x15x15xf32> to vector<15x15xf32>
    %127 = vector.shape_cast %124 : vector<15x15xf32> to vector<1x15x15xf32>
    tpu.vector_store %arg6[%c3_76, %c0_77, %c0_78], %127 {strides = array<i32>} : memref<4x15x15xf32, #tpu.memory_space<vmem>>, vector<1x15x15xf32>,
    %cst_79 = arith.constant 0.000000e+00 : f32
    %128 = vector.broadcast %cst_79 : f32 to vector<15x15xf32>
    %c0_80 = arith.constant 0 : index
    %129 = memref.load %arg4[%c0_80] : memref<8xf32, #tpu.memory_space<smem>>
    %130 = vector.broadcast %129 : f32 to vector<15x15xf32>
    %131 = arith.addf %128, %130 : vector<15x15xf32>
    %c0_81 = arith.constant 0 : index
    %132 = memref.load %arg3[%c0_81] : memref<32xf32, #tpu.memory_space<smem>>
    %c0_82 = arith.constant 0 : index
    %c0_83 = arith.constant 0 : index
    %c0_84 = arith.constant 0 : index
    %133 = vector.load %arg6[%c0_82, %c0_83, %c0_84] : memref<4x15x15xf32, #tpu.memory_space<vmem>>, vector<1x15x15xf32>
    %134 = vector.shape_cast %133 : vector<1x15x15xf32> to vector<15x15xf32>
    %135 = vector.broadcast %132 : f32 to vector<15x15xf32>
    %136 = arith.mulf %135, %134 : vector<15x15xf32>
    %137 = arith.addf %131, %136 : vector<15x15xf32>
    %c1_85 = arith.constant 1 : index
    %138 = memref.load %arg3[%c1_85] : memref<32xf32, #tpu.memory_space<smem>>
    %c1_86 = arith.constant 1 : index
    %c0_87 = arith.constant 0 : index
    %c0_88 = arith.constant 0 : index
    %139 = vector.load %arg6[%c1_86, %c0_87, %c0_88] : memref<4x15x15xf32, #tpu.memory_space<vmem>>, vector<1x15x15xf32>
    %140 = vector.shape_cast %139 : vector<1x15x15xf32> to vector<15x15xf32>
    %141 = vector.broadcast %138 : f32 to vector<15x15xf32>
    %142 = arith.mulf %141, %140 : vector<15x15xf32>
    %143 = arith.addf %137, %142 : vector<15x15xf32>
    %c2_89 = arith.constant 2 : index
    %144 = memref.load %arg3[%c2_89] : memref<32xf32, #tpu.memory_space<smem>>
    %c2_90 = arith.constant 2 : index
    %c0_91 = arith.constant 0 : index
    %c0_92 = arith.constant 0 : index
    %145 = vector.load %arg6[%c2_90, %c0_91, %c0_92] : memref<4x15x15xf32, #tpu.memory_space<vmem>>, vector<1x15x15xf32>
    %146 = vector.shape_cast %145 : vector<1x15x15xf32> to vector<15x15xf32>
    %147 = vector.broadcast %144 : f32 to vector<15x15xf32>
    %148 = arith.mulf %147, %146 : vector<15x15xf32>
    %149 = arith.addf %143, %148 : vector<15x15xf32>
    %c3_93 = arith.constant 3 : index
    %150 = memref.load %arg3[%c3_93] : memref<32xf32, #tpu.memory_space<smem>>
    %c3_94 = arith.constant 3 : index
    %c0_95 = arith.constant 0 : index
    %c0_96 = arith.constant 0 : index
    %151 = vector.load %arg6[%c3_94, %c0_95, %c0_96] : memref<4x15x15xf32, #tpu.memory_space<vmem>>, vector<1x15x15xf32>
    %152 = vector.shape_cast %151 : vector<1x15x15xf32> to vector<15x15xf32>
    %153 = vector.broadcast %150 : f32 to vector<15x15xf32>
    %154 = arith.mulf %153, %152 : vector<15x15xf32>
    %155 = arith.addf %149, %154 : vector<15x15xf32>
    %c0_97 = arith.constant 0 : index
    %c0_98 = arith.constant 0 : index
    %c0_99 = arith.constant 0 : index
    %c0_100 = arith.constant 0 : index
    %156 = vector.load %arg5[%c0_97, %c0_98, %c0_99, %c0_100] : memref<1x8x15x15xf32, #tpu.memory_space<vmem>>, vector<1x1x15x15xf32>
    %157 = vector.shape_cast %156 : vector<1x1x15x15xf32> to vector<15x15xf32>
    %158 = vector.shape_cast %155 : vector<15x15xf32> to vector<1x1x15x15xf32>
    tpu.vector_store %arg5[%c0_97, %c0_98, %c0_99, %c0_100], %158 {strides = array<i32>} : memref<1x8x15x15xf32, #tpu.memory_space<vmem>>, vector<1x1x15x15xf32>,
    %cst_101 = arith.constant 0.000000e+00 : f32
    %159 = vector.broadcast %cst_101 : f32 to vector<15x15xf32>
    %c1_102 = arith.constant 1 : index
    %160 = memref.load %arg4[%c1_102] : memref<8xf32, #tpu.memory_space<smem>>
    %161 = vector.broadcast %160 : f32 to vector<15x15xf32>
    %162 = arith.addf %159, %161 : vector<15x15xf32>
    %c4_103 = arith.constant 4 : index
    %163 = memref.load %arg3[%c4_103] : memref<32xf32, #tpu.memory_space<smem>>
    %c0_104 = arith.constant 0 : index
    %c0_105 = arith.constant 0 : index
    %c0_106 = arith.constant 0 : index
    %164 = vector.load %arg6[%c0_104, %c0_105, %c0_106] : memref<4x15x15xf32, #tpu.memory_space<vmem>>, vector<1x15x15xf32>
    %165 = vector.shape_cast %164 : vector<1x15x15xf32> to vector<15x15xf32>
    %166 = vector.broadcast %163 : f32 to vector<15x15xf32>
    %167 = arith.mulf %166, %165 : vector<15x15xf32>
    %168 = arith.addf %162, %167 : vector<15x15xf32>
    %c5_107 = arith.constant 5 : index
    %169 = memref.load %arg3[%c5_107] : memref<32xf32, #tpu.memory_space<smem>>
    %c1_108 = arith.constant 1 : index
    %c0_109 = arith.constant 0 : index
    %c0_110 = arith.constant 0 : index
    %170 = vector.load %arg6[%c1_108, %c0_109, %c0_110] : memref<4x15x15xf32, #tpu.memory_space<vmem>>, vector<1x15x15xf32>
    %171 = vector.shape_cast %170 : vector<1x15x15xf32> to vector<15x15xf32>
    %172 = vector.broadcast %169 : f32 to vector<15x15xf32>
    %173 = arith.mulf %172, %171 : vector<15x15xf32>
    %174 = arith.addf %168, %173 : vector<15x15xf32>
    %c6_111 = arith.constant 6 : index
    %175 = memref.load %arg3[%c6_111] : memref<32xf32, #tpu.memory_space<smem>>
    %c2_112 = arith.constant 2 : index
    %c0_113 = arith.constant 0 : index
    %c0_114 = arith.constant 0 : index
    %176 = vector.load %arg6[%c2_112, %c0_113, %c0_114] : memref<4x15x15xf32, #tpu.memory_space<vmem>>, vector<1x15x15xf32>
    %177 = vector.shape_cast %176 : vector<1x15x15xf32> to vector<15x15xf32>
    %178 = vector.broadcast %175 : f32 to vector<15x15xf32>
    %179 = arith.mulf %178, %177 : vector<15x15xf32>
    %180 = arith.addf %174, %179 : vector<15x15xf32>
    %c7_115 = arith.constant 7 : index
    %181 = memref.load %arg3[%c7_115] : memref<32xf32, #tpu.memory_space<smem>>
    %c3_116 = arith.constant 3 : index
    %c0_117 = arith.constant 0 : index
    %c0_118 = arith.constant 0 : index
    %182 = vector.load %arg6[%c3_116, %c0_117, %c0_118] : memref<4x15x15xf32, #tpu.memory_space<vmem>>, vector<1x15x15xf32>
    %183 = vector.shape_cast %182 : vector<1x15x15xf32> to vector<15x15xf32>
    %184 = vector.broadcast %181 : f32 to vector<15x15xf32>
    %185 = arith.mulf %184, %183 : vector<15x15xf32>
    %186 = arith.addf %180, %185 : vector<15x15xf32>
    %c0_119 = arith.constant 0 : index
    %c1_120 = arith.constant 1 : index
    %c0_121 = arith.constant 0 : index
    %c0_122 = arith.constant 0 : index
    %187 = vector.load %arg5[%c0_119, %c1_120, %c0_121, %c0_122] : memref<1x8x15x15xf32, #tpu.memory_space<vmem>>, vector<1x1x15x15xf32>
    %188 = vector.shape_cast %187 : vector<1x1x15x15xf32> to vector<15x15xf32>
    %189 = vector.shape_cast %186 : vector<15x15xf32> to vector<1x1x15x15xf32>
    tpu.vector_store %arg5[%c0_119, %c1_120, %c0_121, %c0_122], %189 {strides = array<i32>} : memref<1x8x15x15xf32, #tpu.memory_space<vmem>>, vector<1x1x15x15xf32>,
    %cst_123 = arith.constant 0.000000e+00 : f32
    %190 = vector.broadcast %cst_123 : f32 to vector<15x15xf32>
    %c2_124 = arith.constant 2 : index
    %191 = memref.load %arg4[%c2_124] : memref<8xf32, #tpu.memory_space<smem>>
    %192 = vector.broadcast %191 : f32 to vector<15x15xf32>
    %193 = arith.addf %190, %192 : vector<15x15xf32>
    %c8_125 = arith.constant 8 : index
    %194 = memref.load %arg3[%c8_125] : memref<32xf32, #tpu.memory_space<smem>>
    %c0_126 = arith.constant 0 : index
    %c0_127 = arith.constant 0 : index
    %c0_128 = arith.constant 0 : index
    %195 = vector.load %arg6[%c0_126, %c0_127, %c0_128] : memref<4x15x15xf32, #tpu.memory_space<vmem>>, vector<1x15x15xf32>
    %196 = vector.shape_cast %195 : vector<1x15x15xf32> to vector<15x15xf32>
    %197 = vector.broadcast %194 : f32 to vector<15x15xf32>
    %198 = arith.mulf %197, %196 : vector<15x15xf32>
    %199 = arith.addf %193, %198 : vector<15x15xf32>
    %c9_129 = arith.constant 9 : index
    %200 = memref.load %arg3[%c9_129] : memref<32xf32, #tpu.memory_space<smem>>
    %c1_130 = arith.constant 1 : index
    %c0_131 = arith.constant 0 : index
    %c0_132 = arith.constant 0 : index
    %201 = vector.load %arg6[%c1_130, %c0_131, %c0_132] : memref<4x15x15xf32, #tpu.memory_space<vmem>>, vector<1x15x15xf32>
    %202 = vector.shape_cast %201 : vector<1x15x15xf32> to vector<15x15xf32>
    %203 = vector.broadcast %200 : f32 to vector<15x15xf32>
    %204 = arith.mulf %203, %202 : vector<15x15xf32>
    %205 = arith.addf %199, %204 : vector<15x15xf32>
    %c10_133 = arith.constant 10 : index
    %206 = memref.load %arg3[%c10_133] : memref<32xf32, #tpu.memory_space<smem>>
    %c2_134 = arith.constant 2 : index
    %c0_135 = arith.constant 0 : index
    %c0_136 = arith.constant 0 : index
    %207 = vector.load %arg6[%c2_134, %c0_135, %c0_136] : memref<4x15x15xf32, #tpu.memory_space<vmem>>, vector<1x15x15xf32>
    %208 = vector.shape_cast %207 : vector<1x15x15xf32> to vector<15x15xf32>
    %209 = vector.broadcast %206 : f32 to vector<15x15xf32>
    %210 = arith.mulf %209, %208 : vector<15x15xf32>
    %211 = arith.addf %205, %210 : vector<15x15xf32>
    %c11_137 = arith.constant 11 : index
    %212 = memref.load %arg3[%c11_137] : memref<32xf32, #tpu.memory_space<smem>>
    %c3_138 = arith.constant 3 : index
    %c0_139 = arith.constant 0 : index
    %c0_140 = arith.constant 0 : index
    %213 = vector.load %arg6[%c3_138, %c0_139, %c0_140] : memref<4x15x15xf32, #tpu.memory_space<vmem>>, vector<1x15x15xf32>
    %214 = vector.shape_cast %213 : vector<1x15x15xf32> to vector<15x15xf32>
    %215 = vector.broadcast %212 : f32 to vector<15x15xf32>
    %216 = arith.mulf %215, %214 : vector<15x15xf32>
    %217 = arith.addf %211, %216 : vector<15x15xf32>
    %c0_141 = arith.constant 0 : index
    %c2_142 = arith.constant 2 : index
    %c0_143 = arith.constant 0 : index
    %c0_144 = arith.constant 0 : index
    %218 = vector.load %arg5[%c0_141, %c2_142, %c0_143, %c0_144] : memref<1x8x15x15xf32, #tpu.memory_space<vmem>>, vector<1x1x15x15xf32>
    %219 = vector.shape_cast %218 : vector<1x1x15x15xf32> to vector<15x15xf32>
    %220 = vector.shape_cast %217 : vector<15x15xf32> to vector<1x1x15x15xf32>
    tpu.vector_store %arg5[%c0_141, %c2_142, %c0_143, %c0_144], %220 {strides = array<i32>} : memref<1x8x15x15xf32, #tpu.memory_space<vmem>>, vector<1x1x15x15xf32>,
    %cst_145 = arith.constant 0.000000e+00 : f32
    %221 = vector.broadcast %cst_145 : f32 to vector<15x15xf32>
    %c3_146 = arith.constant 3 : index
    %222 = memref.load %arg4[%c3_146] : memref<8xf32, #tpu.memory_space<smem>>
    %223 = vector.broadcast %222 : f32 to vector<15x15xf32>
    %224 = arith.addf %221, %223 : vector<15x15xf32>
    %c12_147 = arith.constant 12 : index
    %225 = memref.load %arg3[%c12_147] : memref<32xf32, #tpu.memory_space<smem>>
    %c0_148 = arith.constant 0 : index
    %c0_149 = arith.constant 0 : index
    %c0_150 = arith.constant 0 : index
    %226 = vector.load %arg6[%c0_148, %c0_149, %c0_150] : memref<4x15x15xf32, #tpu.memory_space<vmem>>, vector<1x15x15xf32>
    %227 = vector.shape_cast %226 : vector<1x15x15xf32> to vector<15x15xf32>
    %228 = vector.broadcast %225 : f32 to vector<15x15xf32>
    %229 = arith.mulf %228, %227 : vector<15x15xf32>
    %230 = arith.addf %224, %229 : vector<15x15xf32>
    %c13_151 = arith.constant 13 : index
    %231 = memref.load %arg3[%c13_151] : memref<32xf32, #tpu.memory_space<smem>>
    %c1_152 = arith.constant 1 : index
    %c0_153 = arith.constant 0 : index
    %c0_154 = arith.constant 0 : index
    %232 = vector.load %arg6[%c1_152, %c0_153, %c0_154] : memref<4x15x15xf32, #tpu.memory_space<vmem>>, vector<1x15x15xf32>
    %233 = vector.shape_cast %232 : vector<1x15x15xf32> to vector<15x15xf32>
    %234 = vector.broadcast %231 : f32 to vector<15x15xf32>
    %235 = arith.mulf %234, %233 : vector<15x15xf32>
    %236 = arith.addf %230, %235 : vector<15x15xf32>
    %c14_155 = arith.constant 14 : index
    %237 = memref.load %arg3[%c14_155] : memref<32xf32, #tpu.memory_space<smem>>
    %c2_156 = arith.constant 2 : index
    %c0_157 = arith.constant 0 : index
    %c0_158 = arith.constant 0 : index
    %238 = vector.load %arg6[%c2_156, %c0_157, %c0_158] : memref<4x15x15xf32, #tpu.memory_space<vmem>>, vector<1x15x15xf32>
    %239 = vector.shape_cast %238 : vector<1x15x15xf32> to vector<15x15xf32>
    %240 = vector.broadcast %237 : f32 to vector<15x15xf32>
    %241 = arith.mulf %240, %239 : vector<15x15xf32>
    %242 = arith.addf %236, %241 : vector<15x15xf32>
    %c15_159 = arith.constant 15 : index
    %243 = memref.load %arg3[%c15_159] : memref<32xf32, #tpu.memory_space<smem>>
    %c3_160 = arith.constant 3 : index
    %c0_161 = arith.constant 0 : index
    %c0_162 = arith.constant 0 : index
    %244 = vector.load %arg6[%c3_160, %c0_161, %c0_162] : memref<4x15x15xf32, #tpu.memory_space<vmem>>, vector<1x15x15xf32>
    %245 = vector.shape_cast %244 : vector<1x15x15xf32> to vector<15x15xf32>
    %246 = vector.broadcast %243 : f32 to vector<15x15xf32>
    %247 = arith.mulf %246, %245 : vector<15x15xf32>
    %248 = arith.addf %242, %247 : vector<15x15xf32>
    %c0_163 = arith.constant 0 : index
    %c3_164 = arith.constant 3 : index
    %c0_165 = arith.constant 0 : index
    %c0_166 = arith.constant 0 : index
    %249 = vector.load %arg5[%c0_163, %c3_164, %c0_165, %c0_166] : memref<1x8x15x15xf32, #tpu.memory_space<vmem>>, vector<1x1x15x15xf32>
    %250 = vector.shape_cast %249 : vector<1x1x15x15xf32> to vector<15x15xf32>
    %251 = vector.shape_cast %248 : vector<15x15xf32> to vector<1x1x15x15xf32>
    tpu.vector_store %arg5[%c0_163, %c3_164, %c0_165, %c0_166], %251 {strides = array<i32>} : memref<1x8x15x15xf32, #tpu.memory_space<vmem>>, vector<1x1x15x15xf32>,
    %cst_167 = arith.constant 0.000000e+00 : f32
    %252 = vector.broadcast %cst_167 : f32 to vector<15x15xf32>
    %c4_168 = arith.constant 4 : index
    %253 = memref.load %arg4[%c4_168] : memref<8xf32, #tpu.memory_space<smem>>
    %254 = vector.broadcast %253 : f32 to vector<15x15xf32>
    %255 = arith.addf %252, %254 : vector<15x15xf32>
    %c16 = arith.constant 16 : index
    %256 = memref.load %arg3[%c16] : memref<32xf32, #tpu.memory_space<smem>>
    %c0_169 = arith.constant 0 : index
    %c0_170 = arith.constant 0 : index
    %c0_171 = arith.constant 0 : index
    %257 = vector.load %arg6[%c0_169, %c0_170, %c0_171] : memref<4x15x15xf32, #tpu.memory_space<vmem>>, vector<1x15x15xf32>
    %258 = vector.shape_cast %257 : vector<1x15x15xf32> to vector<15x15xf32>
    %259 = vector.broadcast %256 : f32 to vector<15x15xf32>
    %260 = arith.mulf %259, %258 : vector<15x15xf32>
    %261 = arith.addf %255, %260 : vector<15x15xf32>
    %c17 = arith.constant 17 : index
    %262 = memref.load %arg3[%c17] : memref<32xf32, #tpu.memory_space<smem>>
    %c1_172 = arith.constant 1 : index
    %c0_173 = arith.constant 0 : index
    %c0_174 = arith.constant 0 : index
    %263 = vector.load %arg6[%c1_172, %c0_173, %c0_174] : memref<4x15x15xf32, #tpu.memory_space<vmem>>, vector<1x15x15xf32>
    %264 = vector.shape_cast %263 : vector<1x15x15xf32> to vector<15x15xf32>
    %265 = vector.broadcast %262 : f32 to vector<15x15xf32>
    %266 = arith.mulf %265, %264 : vector<15x15xf32>
    %267 = arith.addf %261, %266 : vector<15x15xf32>
    %c18 = arith.constant 18 : index
    %268 = memref.load %arg3[%c18] : memref<32xf32, #tpu.memory_space<smem>>
    %c2_175 = arith.constant 2 : index
    %c0_176 = arith.constant 0 : index
    %c0_177 = arith.constant 0 : index
    %269 = vector.load %arg6[%c2_175, %c0_176, %c0_177] : memref<4x15x15xf32, #tpu.memory_space<vmem>>, vector<1x15x15xf32>
    %270 = vector.shape_cast %269 : vector<1x15x15xf32> to vector<15x15xf32>
    %271 = vector.broadcast %268 : f32 to vector<15x15xf32>
    %272 = arith.mulf %271, %270 : vector<15x15xf32>
    %273 = arith.addf %267, %272 : vector<15x15xf32>
    %c19 = arith.constant 19 : index
    %274 = memref.load %arg3[%c19] : memref<32xf32, #tpu.memory_space<smem>>
    %c3_178 = arith.constant 3 : index
    %c0_179 = arith.constant 0 : index
    %c0_180 = arith.constant 0 : index
    %275 = vector.load %arg6[%c3_178, %c0_179, %c0_180] : memref<4x15x15xf32, #tpu.memory_space<vmem>>, vector<1x15x15xf32>
    %276 = vector.shape_cast %275 : vector<1x15x15xf32> to vector<15x15xf32>
    %277 = vector.broadcast %274 : f32 to vector<15x15xf32>
    %278 = arith.mulf %277, %276 : vector<15x15xf32>
    %279 = arith.addf %273, %278 : vector<15x15xf32>
    %c0_181 = arith.constant 0 : index
    %c4_182 = arith.constant 4 : index
    %c0_183 = arith.constant 0 : index
    %c0_184 = arith.constant 0 : index
    %280 = vector.load %arg5[%c0_181, %c4_182, %c0_183, %c0_184] : memref<1x8x15x15xf32, #tpu.memory_space<vmem>>, vector<1x1x15x15xf32>
    %281 = vector.shape_cast %280 : vector<1x1x15x15xf32> to vector<15x15xf32>
    %282 = vector.shape_cast %279 : vector<15x15xf32> to vector<1x1x15x15xf32>
    tpu.vector_store %arg5[%c0_181, %c4_182, %c0_183, %c0_184], %282 {strides = array<i32>} : memref<1x8x15x15xf32, #tpu.memory_space<vmem>>, vector<1x1x15x15xf32>,
    %cst_185 = arith.constant 0.000000e+00 : f32
    %283 = vector.broadcast %cst_185 : f32 to vector<15x15xf32>
    %c5_186 = arith.constant 5 : index
    %284 = memref.load %arg4[%c5_186] : memref<8xf32, #tpu.memory_space<smem>>
    %285 = vector.broadcast %284 : f32 to vector<15x15xf32>
    %286 = arith.addf %283, %285 : vector<15x15xf32>
    %c20 = arith.constant 20 : index
    %287 = memref.load %arg3[%c20] : memref<32xf32, #tpu.memory_space<smem>>
    %c0_187 = arith.constant 0 : index
    %c0_188 = arith.constant 0 : index
    %c0_189 = arith.constant 0 : index
    %288 = vector.load %arg6[%c0_187, %c0_188, %c0_189] : memref<4x15x15xf32, #tpu.memory_space<vmem>>, vector<1x15x15xf32>
    %289 = vector.shape_cast %288 : vector<1x15x15xf32> to vector<15x15xf32>
    %290 = vector.broadcast %287 : f32 to vector<15x15xf32>
    %291 = arith.mulf %290, %289 : vector<15x15xf32>
    %292 = arith.addf %286, %291 : vector<15x15xf32>
    %c21 = arith.constant 21 : index
    %293 = memref.load %arg3[%c21] : memref<32xf32, #tpu.memory_space<smem>>
    %c1_190 = arith.constant 1 : index
    %c0_191 = arith.constant 0 : index
    %c0_192 = arith.constant 0 : index
    %294 = vector.load %arg6[%c1_190, %c0_191, %c0_192] : memref<4x15x15xf32, #tpu.memory_space<vmem>>, vector<1x15x15xf32>
    %295 = vector.shape_cast %294 : vector<1x15x15xf32> to vector<15x15xf32>
    %296 = vector.broadcast %293 : f32 to vector<15x15xf32>
    %297 = arith.mulf %296, %295 : vector<15x15xf32>
    %298 = arith.addf %292, %297 : vector<15x15xf32>
    %c22 = arith.constant 22 : index
    %299 = memref.load %arg3[%c22] : memref<32xf32, #tpu.memory_space<smem>>
    %c2_193 = arith.constant 2 : index
    %c0_194 = arith.constant 0 : index
    %c0_195 = arith.constant 0 : index
    %300 = vector.load %arg6[%c2_193, %c0_194, %c0_195] : memref<4x15x15xf32, #tpu.memory_space<vmem>>, vector<1x15x15xf32>
    %301 = vector.shape_cast %300 : vector<1x15x15xf32> to vector<15x15xf32>
    %302 = vector.broadcast %299 : f32 to vector<15x15xf32>
    %303 = arith.mulf %302, %301 : vector<15x15xf32>
    %304 = arith.addf %298, %303 : vector<15x15xf32>
    %c23 = arith.constant 23 : index
    %305 = memref.load %arg3[%c23] : memref<32xf32, #tpu.memory_space<smem>>
    %c3_196 = arith.constant 3 : index
    %c0_197 = arith.constant 0 : index
    %c0_198 = arith.constant 0 : index
    %306 = vector.load %arg6[%c3_196, %c0_197, %c0_198] : memref<4x15x15xf32, #tpu.memory_space<vmem>>, vector<1x15x15xf32>
    %307 = vector.shape_cast %306 : vector<1x15x15xf32> to vector<15x15xf32>
    %308 = vector.broadcast %305 : f32 to vector<15x15xf32>
    %309 = arith.mulf %308, %307 : vector<15x15xf32>
    %310 = arith.addf %304, %309 : vector<15x15xf32>
    %c0_199 = arith.constant 0 : index
    %c5_200 = arith.constant 5 : index
    %c0_201 = arith.constant 0 : index
    %c0_202 = arith.constant 0 : index
    %311 = vector.load %arg5[%c0_199, %c5_200, %c0_201, %c0_202] : memref<1x8x15x15xf32, #tpu.memory_space<vmem>>, vector<1x1x15x15xf32>
    %312 = vector.shape_cast %311 : vector<1x1x15x15xf32> to vector<15x15xf32>
    %313 = vector.shape_cast %310 : vector<15x15xf32> to vector<1x1x15x15xf32>
    tpu.vector_store %arg5[%c0_199, %c5_200, %c0_201, %c0_202], %313 {strides = array<i32>} : memref<1x8x15x15xf32, #tpu.memory_space<vmem>>, vector<1x1x15x15xf32>,
    %cst_203 = arith.constant 0.000000e+00 : f32
    %314 = vector.broadcast %cst_203 : f32 to vector<15x15xf32>
    %c6_204 = arith.constant 6 : index
    %315 = memref.load %arg4[%c6_204] : memref<8xf32, #tpu.memory_space<smem>>
    %316 = vector.broadcast %315 : f32 to vector<15x15xf32>
    %317 = arith.addf %314, %316 : vector<15x15xf32>
    %c24 = arith.constant 24 : index
    %318 = memref.load %arg3[%c24] : memref<32xf32, #tpu.memory_space<smem>>
    %c0_205 = arith.constant 0 : index
    %c0_206 = arith.constant 0 : index
    %c0_207 = arith.constant 0 : index
    %319 = vector.load %arg6[%c0_205, %c0_206, %c0_207] : memref<4x15x15xf32, #tpu.memory_space<vmem>>, vector<1x15x15xf32>
    %320 = vector.shape_cast %319 : vector<1x15x15xf32> to vector<15x15xf32>
    %321 = vector.broadcast %318 : f32 to vector<15x15xf32>
    %322 = arith.mulf %321, %320 : vector<15x15xf32>
    %323 = arith.addf %317, %322 : vector<15x15xf32>
    %c25 = arith.constant 25 : index
    %324 = memref.load %arg3[%c25] : memref<32xf32, #tpu.memory_space<smem>>
    %c1_208 = arith.constant 1 : index
    %c0_209 = arith.constant 0 : index
    %c0_210 = arith.constant 0 : index
    %325 = vector.load %arg6[%c1_208, %c0_209, %c0_210] : memref<4x15x15xf32, #tpu.memory_space<vmem>>, vector<1x15x15xf32>
    %326 = vector.shape_cast %325 : vector<1x15x15xf32> to vector<15x15xf32>
    %327 = vector.broadcast %324 : f32 to vector<15x15xf32>
    %328 = arith.mulf %327, %326 : vector<15x15xf32>
    %329 = arith.addf %323, %328 : vector<15x15xf32>
    %c26 = arith.constant 26 : index
    %330 = memref.load %arg3[%c26] : memref<32xf32, #tpu.memory_space<smem>>
    %c2_211 = arith.constant 2 : index
    %c0_212 = arith.constant 0 : index
    %c0_213 = arith.constant 0 : index
    %331 = vector.load %arg6[%c2_211, %c0_212, %c0_213] : memref<4x15x15xf32, #tpu.memory_space<vmem>>, vector<1x15x15xf32>
    %332 = vector.shape_cast %331 : vector<1x15x15xf32> to vector<15x15xf32>
    %333 = vector.broadcast %330 : f32 to vector<15x15xf32>
    %334 = arith.mulf %333, %332 : vector<15x15xf32>
    %335 = arith.addf %329, %334 : vector<15x15xf32>
    %c27 = arith.constant 27 : index
    %336 = memref.load %arg3[%c27] : memref<32xf32, #tpu.memory_space<smem>>
    %c3_214 = arith.constant 3 : index
    %c0_215 = arith.constant 0 : index
    %c0_216 = arith.constant 0 : index
    %337 = vector.load %arg6[%c3_214, %c0_215, %c0_216] : memref<4x15x15xf32, #tpu.memory_space<vmem>>, vector<1x15x15xf32>
    %338 = vector.shape_cast %337 : vector<1x15x15xf32> to vector<15x15xf32>
    %339 = vector.broadcast %336 : f32 to vector<15x15xf32>
    %340 = arith.mulf %339, %338 : vector<15x15xf32>
    %341 = arith.addf %335, %340 : vector<15x15xf32>
    %c0_217 = arith.constant 0 : index
    %c6_218 = arith.constant 6 : index
    %c0_219 = arith.constant 0 : index
    %c0_220 = arith.constant 0 : index
    %342 = vector.load %arg5[%c0_217, %c6_218, %c0_219, %c0_220] : memref<1x8x15x15xf32, #tpu.memory_space<vmem>>, vector<1x1x15x15xf32>
    %343 = vector.shape_cast %342 : vector<1x1x15x15xf32> to vector<15x15xf32>
    %344 = vector.shape_cast %341 : vector<15x15xf32> to vector<1x1x15x15xf32>
    tpu.vector_store %arg5[%c0_217, %c6_218, %c0_219, %c0_220], %344 {strides = array<i32>} : memref<1x8x15x15xf32, #tpu.memory_space<vmem>>, vector<1x1x15x15xf32>,
    %cst_221 = arith.constant 0.000000e+00 : f32
    %345 = vector.broadcast %cst_221 : f32 to vector<15x15xf32>
    %c7_222 = arith.constant 7 : index
    %346 = memref.load %arg4[%c7_222] : memref<8xf32, #tpu.memory_space<smem>>
    %347 = vector.broadcast %346 : f32 to vector<15x15xf32>
    %348 = arith.addf %345, %347 : vector<15x15xf32>
    %c28 = arith.constant 28 : index
    %349 = memref.load %arg3[%c28] : memref<32xf32, #tpu.memory_space<smem>>
    %c0_223 = arith.constant 0 : index
    %c0_224 = arith.constant 0 : index
    %c0_225 = arith.constant 0 : index
    %350 = vector.load %arg6[%c0_223, %c0_224, %c0_225] : memref<4x15x15xf32, #tpu.memory_space<vmem>>, vector<1x15x15xf32>
    %351 = vector.shape_cast %350 : vector<1x15x15xf32> to vector<15x15xf32>
    %352 = vector.broadcast %349 : f32 to vector<15x15xf32>
    %353 = arith.mulf %352, %351 : vector<15x15xf32>
    %354 = arith.addf %348, %353 : vector<15x15xf32>
    %c29 = arith.constant 29 : index
    %355 = memref.load %arg3[%c29] : memref<32xf32, #tpu.memory_space<smem>>
    %c1_226 = arith.constant 1 : index
    %c0_227 = arith.constant 0 : index
    %c0_228 = arith.constant 0 : index
    %356 = vector.load %arg6[%c1_226, %c0_227, %c0_228] : memref<4x15x15xf32, #tpu.memory_space<vmem>>, vector<1x15x15xf32>
    %357 = vector.shape_cast %356 : vector<1x15x15xf32> to vector<15x15xf32>
    %358 = vector.broadcast %355 : f32 to vector<15x15xf32>
    %359 = arith.mulf %358, %357 : vector<15x15xf32>
    %360 = arith.addf %354, %359 : vector<15x15xf32>
    %c30 = arith.constant 30 : index
    %361 = memref.load %arg3[%c30] : memref<32xf32, #tpu.memory_space<smem>>
    %c2_229 = arith.constant 2 : index
    %c0_230 = arith.constant 0 : index
    %c0_231 = arith.constant 0 : index
    %362 = vector.load %arg6[%c2_229, %c0_230, %c0_231] : memref<4x15x15xf32, #tpu.memory_space<vmem>>, vector<1x15x15xf32>
    %363 = vector.shape_cast %362 : vector<1x15x15xf32> to vector<15x15xf32>
    %364 = vector.broadcast %361 : f32 to vector<15x15xf32>
    %365 = arith.mulf %364, %363 : vector<15x15xf32>
    %366 = arith.addf %360, %365 : vector<15x15xf32>
    %c31 = arith.constant 31 : index
    %367 = memref.load %arg3[%c31] : memref<32xf32, #tpu.memory_space<smem>>
    %c3_232 = arith.constant 3 : index
    %c0_233 = arith.constant 0 : index
    %c0_234 = arith.constant 0 : index
    %368 = vector.load %arg6[%c3_232, %c0_233, %c0_234] : memref<4x15x15xf32, #tpu.memory_space<vmem>>, vector<1x15x15xf32>
    %369 = vector.shape_cast %368 : vector<1x15x15xf32> to vector<15x15xf32>
    %370 = vector.broadcast %367 : f32 to vector<15x15xf32>
    %371 = arith.mulf %370, %369 : vector<15x15xf32>
    %372 = arith.addf %366, %371 : vector<15x15xf32>
    %c0_235 = arith.constant 0 : index
    %c7_236 = arith.constant 7 : index
    %c0_237 = arith.constant 0 : index
    %c0_238 = arith.constant 0 : index
    %373 = vector.load %arg5[%c0_235, %c7_236, %c0_237, %c0_238] : memref<1x8x15x15xf32, #tpu.memory_space<vmem>>, vector<1x1x15x15xf32>
    %374 = vector.shape_cast %373 : vector<1x1x15x15xf32> to vector<15x15xf32>
    %375 = vector.shape_cast %372 : vector<15x15xf32> to vector<1x1x15x15xf32>
    tpu.vector_store %arg5[%c0_235, %c7_236, %c0_237, %c0_238], %375 {strides = array<i32>} : memref<1x8x15x15xf32, #tpu.memory_space<vmem>>, vector<1x1x15x15xf32>,
    return
  }
  func.func @transform_0(%arg0: i32) -> (i32, i32, i32, i32) {
    %c0_i32 = arith.constant 0 : i32
    %c0_i32_0 = arith.constant 0 : i32
    %c0_i32_1 = arith.constant 0 : i32
    %c0_i32_2 = arith.constant 0 : i32
    return %arg0, %c0_i32, %c0_i32_0, %c0_i32_1 : i32, i32, i32, i32
  }
  func.func @transform_1(%arg0: i32) -> i32 {
    %c0_i32 = arith.constant 0 : i32
    %c0_i32_0 = arith.constant 0 : i32
    return %c0_i32 : i32
  }
  func.func @transform_2(%arg0: i32) -> i32 {
    %c0_i32 = arith.constant 0 : i32
    %c0_i32_0 = arith.constant 0 : i32
    return %c0_i32 : i32
  }
  func.func @transform_3(%arg0: i32) -> i32 {
    %c0_i32 = arith.constant 0 : i32
    %c0_i32_0 = arith.constant 0 : i32
    return %c0_i32 : i32
  }
  func.func @transform_4(%arg0: i32) -> (i32, i32, i32, i32) {
    %c0_i32 = arith.constant 0 : i32
    %c0_i32_0 = arith.constant 0 : i32
    %c0_i32_1 = arith.constant 0 : i32
    %c0_i32_2 = arith.constant 0 : i32
    return %arg0, %c0_i32, %c0_i32_0, %c0_i32_1 : i32, i32, i32, i32
  }
}

</mosaic_0001>

<llo_original>
// kernel: hybrid_quanv2d.1
$region0: #{hybrid_quanv2d.1}
  #allocation0 [shape = 'u32[]', space=smem, size = 0x4, offset = 0x4, fixed_abs, tag = 'smem constant byte address 0x4 - core index']
  #allocation1 [shape = 'u32[144,128]{1,0:T(1,128)}', space=vmem, size = 0x12000, scoped, tag = 'internal scratch']
  #allocation2 [shape = 'f32[4,15,15]{2,1,0:T(8,128)}', space=vmem, size = 0x8000, scoped, tag = 'scratch operand']
  %s0 = inlined_call_operand.hbm [shape: f32[2,4,16,16], index: 0, kind: input, shape index: {}]
  %s1 = inlined_call_operand.vmem [shape: f32[16], index: 1, kind: input, shape index: {}]
  %s2 = inlined_call_operand.vmem [shape: f32[32], index: 2, kind: input, shape index: {}]
  %s3 = inlined_call_operand.vmem [shape: f32[8], index: 3, kind: input, shape index: {}]
  %s4 = inlined_call_operand.vmem [shape: f32[2,8,15,15], index: 4, kind: output, shape index: {}]
  %s5 = sld [smem:[#allocation0]]
  $region65: #{hybrid_quanv2d.1} parent=0
    _
  %s7 = ssub.s32 1, %s5
  %s8 = scalar_select 0, %s7, %s5
  $region1: #{hybrid_quanv2d.1} parent=0
    #allocation3 [shape = 'u8[65536]{0}', space=vmem, size = 0x10000, scoped, tag = 'input window, operand 0']
    #allocation4 [shape = 's32[2]{0}', space=sflag, size = 0x8, scoped, tag = 'scoped memory for hybrid_quanv2d.1']
    #allocation5 [shape = 's32[2]{0}', space=sflag, size = 0x8, scoped, tag = 'scoped memory for hybrid_quanv2d.1']
    #allocation6 [shape = 'u8[512]{0}', space=smem, size = 0x200, scoped, tag = 'input window, operand 1, single buffered']
    #allocation7 [shape = 'u8[512]{0}', space=smem, size = 0x200, scoped, tag = 'input window, operand 2, single buffered']
    #allocation8 [shape = 's32[1]{0}', space=sflag, size = 0x4, scoped, tag = 'scoped memory for hybrid_quanv2d.1']
    #allocation9 [shape = 'u8[512]{0}', space=smem, size = 0x200, scoped, tag = 'input window, operand 3, single buffered']
    %9 = vsyncpa [#allocation4], 0
    %s10 = scalar_lea.sflag [#allocation4], 1
    %11 = vsyncpa %s10, 0
    %12 = vsyncpa [#allocation5], 0
    %13 = vsyncpa [#allocation8], 0
    loop: start=0, step=1, limit=4
    $region2: #{hybrid_quanv2d.1} parent=1 // loop_pre_header
      _
    $region3: #{hybrid_quanv2d.1} parent=1 // loop_header
      %s15 = sphi 0, %s19
      %p16 = scmp.ge.s32.totalorder %s15, 4
      %s25 = sphi 0, %s27
      %s28 = sphi 0, %s25
      %s29 = sphi 0, %s28
      %s45 = sphi 0, %s29
      %s49 = sphi 0, %s49
      %s51 = sphi 0, %s49
      %s52 = sphi 0, %s51
      %s66 = sphi 0, %s52
      %s70 = sphi 0, %s70
      %s72 = sphi 0, %s70
      %s73 = sphi 0, %s72
      %s87 = sphi 0, %s73
      %s91 = sphi 0, %s91
      %s93 = sphi 0, %s91
      %s94 = sphi 0, %s93
      %s108 = sphi 0, %s94
      %s114 = sphi 0, %s116
      %s117 = sphi 0, %s114
      %s118 = sphi 0, %s117
      %s134 = sphi 0, %s118
    $region4: #{hybrid_quanv2d.1} parent=1 // loop_header_branch
      %18 = sbr.rel (%p16) target = $region8
    $region5: #{hybrid_quanv2d.1} parent=1 // loop_body
      %s20 = ssub.s32 %s15, 1
      %s21 = ssub.s32 %s15, 2
      %s22 = sadd.s32 %s15, 1
      %s23 = ssub.s32 %s15, %s22
      %p24 = scmp.eq.s32.totalorder %s23, 0
      %s26 = sadd.s32 %s25, 1
      %s27 = scalar_select %p24, %s25, %s26
      %p30 = pneg %p24
      %p31 = scmp.eq.s32.totalorder %s15, 1
      %p32 = por %p30, %p31
      %p33 = scmp.ne.s32.totalorder %s25, %s28
      %p34 = scmp.eq.s32.totalorder %s15, 0
      %p35 = por %p33, %p34
      %p36 = scmp.ne.s32.totalorder %s25, %s28
      %p37 = scmp.eq.s32.totalorder %s20, 1
      %p38 = por %p36, %p37
      %p39 = scmp.ne.s32.totalorder %s28, %s29
      %p40 = scmp.eq.s32.totalorder %s20, 0
      %p41 = por %p39, %p40
      %p42 = scmp.ne.s32.totalorder %s28, %s29
      %p43 = scmp.eq.s32.totalorder %s21, 1
      %p44 = por %p42, %p43
      %p46 = scmp.ne.s32.totalorder %s29, %s45
      %p47 = scmp.eq.s32.totalorder %s21, 0
      %p48 = por %p46, %p47
      %s50 = sadd.s32 %s49, 1
      %p53 = scmp.eq.s32.totalorder %s15, 1
      %p54 = scmp.ne.s32.totalorder %s49, %s51
      %p55 = scmp.eq.s32.totalorder %s15, 0
      %p56 = por %p54, %p55
      %p57 = scmp.ne.s32.totalorder %s49, %s51
      %p58 = scmp.eq.s32.totalorder %s20, 1
      %p59 = por %p57, %p58
      %p60 = scmp.ne.s32.totalorder %s51, %s52
      %p61 = scmp.eq.s32.totalorder %s20, 0
      %p62 = por %p60, %p61
      %p63 = scmp.ne.s32.totalorder %s51, %s52
      %p64 = scmp.eq.s32.totalorder %s21, 1
      %p65 = por %p63, %p64
      %p67 = scmp.ne.s32.totalorder %s52, %s66
      %p68 = scmp.eq.s32.totalorder %s21, 0
      %p69 = por %p67, %p68
      %s71 = sadd.s32 %s70, 1
      %p74 = scmp.eq.s32.totalorder %s15, 1
      %p75 = scmp.ne.s32.totalorder %s70, %s72
      %p76 = scmp.eq.s32.totalorder %s15, 0
      %p77 = por %p75, %p76
      %p78 = scmp.ne.s32.totalorder %s70, %s72
      %p79 = scmp.eq.s32.totalorder %s20, 1
      %p80 = por %p78, %p79
      %p81 = scmp.ne.s32.totalorder %s72, %s73
      %p82 = scmp.eq.s32.totalorder %s20, 0
      %p83 = por %p81, %p82
      %p84 = scmp.ne.s32.totalorder %s72, %s73
      %p85 = scmp.eq.s32.totalorder %s21, 1
      %p86 = por %p84, %p85
      %p88 = scmp.ne.s32.totalorder %s73, %s87
      %p89 = scmp.eq.s32.totalorder %s21, 0
      %p90 = por %p88, %p89
      %s92 = sadd.s32 %s91, 1
      %p95 = scmp.eq.s32.totalorder %s15, 1
      %p96 = scmp.ne.s32.totalorder %s91, %s93
      %p97 = scmp.eq.s32.totalorder %s15, 0
      %p98 = por %p96, %p97
      %p99 = scmp.ne.s32.totalorder %s91, %s93
      %p100 = scmp.eq.s32.totalorder %s20, 1
      %p101 = por %p99, %p100
      %p102 = scmp.ne.s32.totalorder %s93, %s94
      %p103 = scmp.eq.s32.totalorder %s20, 0
      %p104 = por %p102, %p103
      %p105 = scmp.ne.s32.totalorder %s93, %s94
      %p106 = scmp.eq.s32.totalorder %s21, 1
      %p107 = por %p105, %p106
      %p109 = scmp.ne.s32.totalorder %s94, %s108
      %p110 = scmp.eq.s32.totalorder %s21, 0
      %p111 = por %p109, %p110
      %s112 = ssub.s32 %s15, %s22
      %p113 = scmp.eq.s32.totalorder %s112, 0
      %s115 = sadd.s32 %s114, 1
      %s116 = scalar_select %p113, %s114, %s115
      %p119 = pneg %p113
      %p120 = scmp.eq.s32.totalorder %s15, 1
      %p121 = por %p119, %p120
      %p122 = scmp.ne.s32.totalorder %s114, %s117
      %p123 = scmp.eq.s32.totalorder %s15, 0
      %p124 = por %p122, %p123
      %p125 = scmp.ne.s32.totalorder %s114, %s117
      %p126 = scmp.eq.s32.totalorder %s20, 1
      %p127 = por %p125, %p126
      %p128 = scmp.ne.s32.totalorder %s117, %s118
      %p129 = scmp.eq.s32.totalorder %s20, 0
      %p130 = por %p128, %p129
      %p131 = scmp.ne.s32.totalorder %s117, %s118
      %p132 = scmp.eq.s32.totalorder %s21, 1
      %p133 = por %p131, %p132
      %p135 = scmp.ne.s32.totalorder %s118, %s134
      %p136 = scmp.eq.s32.totalorder %s21, 0
      %p137 = por %p135, %p136
      %p138 = scmp.le.s32.totalorder 1, %s15
      %p139 = scmp.lt.s32.totalorder %s15, 3
      %p140 = pnand %p138, %p139
      %p141 = pneg %p140
      // Predicated region
      $region9: #{hybrid_quanv2d.1} parent=5 // pred_check
        _
      $region10: #{hybrid_quanv2d.1} parent=5 // pred_check_branch
        %143 = sbr.rel (%p140) target = $region12
      $region11: #{hybrid_quanv2d.1} parent=5 // pred_region
        %s144 = ssub.s32 %s15, 1
        // Predicated region
        $region13: #{hybrid_quanv2d.1} parent=11 // pred_check
          %p145 = pneg %p62
        $region14: #{hybrid_quanv2d.1} parent=11 // pred_check_branch
          %147 = sbr.rel (%p145) target = $region16
        $region15: #{hybrid_quanv2d.1} parent=11 // pred_region
          %s149 = ssub.s32 16, 16
          %150 = vsyncadd [#allocation5], %s149
          %s152 = sshll.u32 %s1, 4
          %s153 = int_to_ptr.vmem [resolvable:$true] %s152
          %155 = dma.vmem_to_smem %s153, 16, [#allocation6], [#allocation5]
        $region16: #{hybrid_quanv2d.1} parent=11 // pred_fallthru
          _
        // Predicated region
        $region17: #{hybrid_quanv2d.1} parent=11 // pred_check
          %p156 = pneg %p83
        $region18: #{hybrid_quanv2d.1} parent=11 // pred_check_branch
          %158 = sbr.rel (%p156) target = $region20
        $region19: #{hybrid_quanv2d.1} parent=11 // pred_region
          %s160 = ssub.s32 16, 16
          %161 = vsyncadd [#allocation8], %s160
          %s163 = sshll.u32 %s2, 4
          %s164 = int_to_ptr.vmem [resolvable:$true] %s163
          %166 = dma.vmem_to_smem %s164, 16, [#allocation7], [#allocation8]
        $region20: #{hybrid_quanv2d.1} parent=11 // pred_fallthru
          _
        // Predicated region
        $region21: #{hybrid_quanv2d.1} parent=11 // pred_check
          %p167 = pneg %p104
        $region22: #{hybrid_quanv2d.1} parent=11 // pred_check_branch
          %169 = sbr.rel (%p167) target = $region24
        $region23: #{hybrid_quanv2d.1} parent=11 // pred_region
          %s171 = ssub.s32 16, 16
          %172 = vsyncadd [#allocation8], %s171
          %s174 = sshll.u32 %s3, 4
          %s175 = int_to_ptr.vmem [resolvable:$true] %s174
          %177 = dma.vmem_to_smem %s175, 16, [#allocation9], [#allocation8]
        $region24: #{hybrid_quanv2d.1} parent=11 // pred_fallthru
          _
      $region12: #{hybrid_quanv2d.1} parent=5 // pred_fallthru
        _
      %p178 = scmp.lt.s32.totalorder %s15, 2
      // Predicated region
      $region25: #{hybrid_quanv2d.1} parent=5 // pred_check
        %p179 = pneg %p178
      $region26: #{hybrid_quanv2d.1} parent=5 // pred_check_branch
        %181 = sbr.rel (%p179) target = $region28
      $region27: #{hybrid_quanv2d.1} parent=5 // pred_region
        // Predicated region
        $region29: #{hybrid_quanv2d.1} parent=27 // pred_check
          %p182 = pneg %p35
        $region30: #{hybrid_quanv2d.1} parent=27 // pred_check_branch
          %184 = sbr.rel (%p182) target = $region32
        $region31: #{hybrid_quanv2d.1} parent=27 // pred_region
          %s185 = sand.u32 %s25, 1
          %s186 = scalar_lea.sflag [#allocation4], %s185
          %s187 = sand.u32 %s25, 1
          %s188 = smul.addr %s187, 64
          %s189 = scalar_lea.vmem [#allocation3], %s188
          %s191 = ssub.s32 1024, 1024
          %192 = vsyncadd %s186, %s191
          %s193 = smul.addr %s15, 8
          %s194 = smul.addr %s193, 128
          %s195 = scalar_lea.hbm %s0, %s194
          %s196 = sshll.u32 %s189, 4
          %s197 = int_to_ptr.vmem [resolvable:$true] %s196
          %202 = dma.hbm_to_vmem [thread:$0]  %s195, 1024, %s197, %s186, 128, 128, 8
        $region32: #{hybrid_quanv2d.1} parent=27 // pred_fallthru
          _
      $region28: #{hybrid_quanv2d.1} parent=5 // pred_fallthru
        _
      %p203 = scmp.le.s32.totalorder 1, %s15
      %p204 = scmp.lt.s32.totalorder %s15, 3
      %p205 = pnand %p203, %p204
      %p206 = pneg %p205
      // Predicated region
      $region33: #{hybrid_quanv2d.1} parent=5 // pred_check
        _
      $region34: #{hybrid_quanv2d.1} parent=5 // pred_check_branch
        %208 = sbr.rel (%p205) target = $region36
      $region35: #{hybrid_quanv2d.1} parent=5 // pred_region
        %s209 = ssub.s32 %s15, 1
        %s210 = sand.u32 %s28, 1
        %s211 = scalar_lea.sflag [#allocation4], %s210
        %s212 = sand.u32 %s28, 1
        %s213 = smul.addr %s212, 64
        %s214 = scalar_lea.vmem [#allocation3], %s213
        // Predicated region
        $region37: #{hybrid_quanv2d.1} parent=35 // pred_check
          %p215 = pneg %p41
        $region38: #{hybrid_quanv2d.1} parent=35 // pred_check_branch
          %217 = sbr.rel (%p215) target = $region40
        $region39: #{hybrid_quanv2d.1} parent=35 // pred_region
          %218 = dma.done %s211, 1024
        $region40: #{hybrid_quanv2d.1} parent=35 // pred_fallthru
          _
        // Predicated region
        $region41: #{hybrid_quanv2d.1} parent=35 // pred_check
          %p219 = pneg %p62
        $region42: #{hybrid_quanv2d.1} parent=35 // pred_check_branch
          %221 = sbr.rel (%p219) target = $region44
        $region43: #{hybrid_quanv2d.1} parent=35 // pred_region
          %222 = dma.done [#allocation5], 16
        $region44: #{hybrid_quanv2d.1} parent=35 // pred_fallthru
          _
        // Predicated region
        $region45: #{hybrid_quanv2d.1} parent=35 // pred_check
          %p223 = pneg %p83
        $region46: #{hybrid_quanv2d.1} parent=35 // pred_check_branch
          %225 = sbr.rel (%p223) target = $region48
        $region47: #{hybrid_quanv2d.1} parent=35 // pred_region
          %226 = dma.done [#allocation8], 16
        $region48: #{hybrid_quanv2d.1} parent=35 // pred_fallthru
          _
        // Predicated region
        $region49: #{hybrid_quanv2d.1} parent=35 // pred_check
          %p227 = pneg %p104
        $region50: #{hybrid_quanv2d.1} parent=35 // pred_check_branch
          %229 = sbr.rel (%p227) target = $region52
        $region51: #{hybrid_quanv2d.1} parent=35 // pred_region
          %230 = dma.done [#allocation8], 16
        $region52: #{hybrid_quanv2d.1} parent=35 // pred_fallthru
          _
        %231 = sfence
        %s232 = sand.u32 %s28, 1
        %s233 = scalar_lea.sflag [#allocation4], %s232
        %s234 = sand.u32 %s28, 1
        %s235 = smul.addr %s234, 64
        %s236 = scalar_lea.vmem [#allocation3], %s235
        %p237 = pneg %p41
        %p238 = pneg %p38
        %p239 = pneg %p62
        %p240 = pneg %p59
        %p241 = pneg %p83
        %p242 = pneg %p80
        %p243 = pneg %p104
        %p244 = pneg %p101
        %p245 = pneg %p130
        %p246 = pneg %p127
        %p247 = scmp.lt.s32.totalorder %s20, 1
        %s248 = scalar_select %p247, %s20, 1
        %s249 = smul.addr %s248, 16
        %s250 = smul.addr %s249, 8
        %s251 = scalar_lea.vmem %s4, %s250
        %p252 = scmp.lt.s32.totalorder %s20, 1
        %s253 = scalar_select %p252, %s20, 1
        %s254 = smul.addr %s253, 16
        %s255 = smul.addr %s254, 8
        %s256 = scalar_lea.vmem %s4, %s255
        %v257 = vld [vmem:[%s214] sm:$0xff]
        %v258 = vld [vmem:[%s214 + $0x8] sm:$0x7f]
        %s259 = sld [smem:[#allocation6]]
        %v260 = vstv %s259
        %v261 = vadd.f32 %v257, %v260
        %v262 = vadd.f32 %v258, %v260
        %v263 = vand.u32 2147483647, %v261
        %vm264 = vcmp.le.f32.partialorder %v263, 0.7853982
        %vm265 = vcmp.lt.s32.totalorder %v261, 0
        %v266 = vand.u32 %v261, 2139095040
        %v267 = vshrl.u32 %v266, 23
        %v268 = vsub.s32 %v267, 127
        %v269 = vand.u32 2147483647, %v261
        %v270 = vand.u32 %v269, 8388607
        %v271 = vor.u32 %v270, 8388608
        %v272 = vsub.s32 0, %v271
        %v273 = vadd.s32 %v268, 1
        %vm274 = vcmp.gt.s32.totalorder %v273, 0
        %v275 = vsel %vm274, %v273, 0
        %v276 = vshrl.u32 %v275, 5
        %v277 = vand.u32 %v275, 31
        %v278 = vsub.s32 32, %v277
        %v279 = vshrl.u32 683565275, %v278
        %v280 = vshll.u32 683565275, %v277
        %v281 = vshrl.u32 2475754826, %v278
        %v282 = vor.u32 %v280, %v281
        %v283 = vshll.u32 2475754826, %v277
        %v284 = vshrl.u32 2131351028, %v278
        %v285 = vor.u32 %v283, %v284
        %v286 = vshll.u32 2131351028, %v277
        %v287 = vshrl.u32 2102212464, %v278
        %v288 = vor.u32 %v286, %v287
        %v289 = vshll.u32 2102212464, %v277
        %v290 = vshrl.u32 920167782, %v278
        %v291 = vor.u32 %v289, %v290
        %v292 = vshll.u32 920167782, %v277
        %v293 = vshrl.u32 1326507024, %v278
        %v294 = vor.u32 %v292, %v293
        %vm295 = vcmp.lt.s32.totalorder %v276, 1
        %vm296 = vcmp.lt.s32.totalorder %v276, 2
        %vm297 = vcmp.lt.s32.totalorder %v276, 3
        %vm298 = vcmp.lt.s32.totalorder %v276, 4
        %v299 = vsel %vm295, %v279, %v282
        %v300 = vsel %vm298, %v288, 2102212464
        %v301 = vsel %vm297, %v285, %v300
        %v302 = vsel %vm296, %v299, %v301
        %v303 = vsel %vm295, %v282, %v285
        %v304 = vsel %vm298, %v291, 920167782
        %v305 = vsel %vm297, %v288, %v304
        %v306 = vsel %vm296, %v303, %v305
        %v307 = vsel %vm295, %v285, %v288
        %v308 = vsel %vm298, %v294, 1326507024
        %v309 = vsel %vm297, %v291, %v308
        %v310 = vsel %vm296, %v307, %v309
        %v311 = vshll.u32 %v271, 8
        %v312 = vmul.u32.u64.compose %v311, %v310
        %v313 = vextract.low.u32 %v312
        %v314 = vextract.high.u32 %v312
        %v315 = vmul.u32.u64.compose %v311, %v306
        %v316 = vextract.low.u32 %v315
        %v317 = vextract.high.u32 %v315
        %v318 = vmul.u32 %v311, %v302
        %v319 = vadd.s32 %v314, %v316
        %vm320 = vc.u32 %v314, %v316
        %v321 = vadd.s32 %v317, 1
        %v322 = vsel %vm320, %v321, %v317
        %v323 = vadd.s32 %v318, %v322
        %v324 = vadd.s32 %v323, 536870912
        %v325 = vshrl.u32 %v324, 30
        %v326 = vshll.u32 %v325, 30
        %v327 = vsub.s32 %v323, %v326
        %vm328 = vcmp.lt.s32.totalorder %v327, 0
        %v329 = vsub.s32 0, %v327
        %v330 = vsel %vm328, %v329, %v327
        %v331 = vclz %v330
        %v332 = vsub.s32 %v331, 2
        %vm333 = vcmp.gt.s32.totalorder 0, %v332
        %v334 = vsel %vm333, 0, %v332
        %v335 = vsub.s32 32, %v334
        %v336 = vshll.u32 %v327, %v334
        %v337 = vshrl.u32 %v319, %v335
        %v338 = vor.u32 %v336, %v337
        %v339 = vsub.s32 4294967266, %v334
        %v340 = vadd.s32 %v339, 127
        %v341 = vshll.u32 %v340, 23
        %v342 = vor.u32 4788187, %v341
        %v343 = vand.u32 2147483647, %v342
        %v345 = vcvt.s32.f32 %v338
        %v346 = vmul.f32 %v345, %v343
        %v347 = vxor.u32 %v346, 2147483648
        %v348 = vsel %vm265, %v347, %v346
        %v349 = vsub.s32 4, %v325
        %v350 = vsel %vm265, %v349, %v325
        %v351 = vsel %vm264, %v261, %v348
        %v352 = vsel %vm264, 0, %v350
        %v353 = vcosq.f32.pop %v351
        %v354 = vsinq.f32.pop %v351
        %vm355 = vweird.f32 %v261
        %v356 = vand.u32 %v352, 3
        %vm357 = vcmp.lt.s32.totalorder %v356, 2
        %vm358 = vcmp.eq.s32.totalorder %v356, 0
        %v359 = vxor.u32 %v354, 2147483648
        %v360 = vsel %vm358, %v353, %v359
        %vm361 = vcmp.eq.s32.totalorder %v356, 2
        %v362 = vxor.u32 %v353, 2147483648
        %v363 = vsel %vm361, %v362, %v354
        %v364 = vsel %vm357, %v360, %v363
        %v365 = vsel %vm355, nan, %v364
        %v366 = vand.u32 2147483647, %v262
        %vm367 = vcmp.le.f32.partialorder %v366, 0.7853982
        %vm368 = vcmp.lt.s32.totalorder %v262, 0
        %v369 = vand.u32 %v262, 2139095040
        %v370 = vshrl.u32 %v369, 23
        %v371 = vsub.s32 %v370, 127
        %v372 = vand.u32 2147483647, %v262
        %v373 = vand.u32 %v372, 8388607
        %v374 = vor.u32 %v373, 8388608
        %v375 = vsub.s32 0, %v374
        %v376 = vadd.s32 %v371, 1
        %vm377 = vcmp.gt.s32.totalorder %v376, 0
        %v378 = vsel %vm377, %v376, 0
        %v379 = vshrl.u32 %v378, 5
        %v380 = vand.u32 %v378, 31
        %v381 = vsub.s32 32, %v380
        %v382 = vshrl.u32 683565275, %v381
        %v383 = vshll.u32 683565275, %v380
        %v384 = vshrl.u32 2475754826, %v381
        %v385 = vor.u32 %v383, %v384
        %v386 = vshll.u32 2475754826, %v380
        %v387 = vshrl.u32 2131351028, %v381
        %v388 = vor.u32 %v386, %v387
        %v389 = vshll.u32 2131351028, %v380
        %v390 = vshrl.u32 2102212464, %v381
        %v391 = vor.u32 %v389, %v390
        %v392 = vshll.u32 2102212464, %v380
        %v393 = vshrl.u32 920167782, %v381
        %v394 = vor.u32 %v392, %v393
        %v395 = vshll.u32 920167782, %v380
        %v396 = vshrl.u32 1326507024, %v381
        %v397 = vor.u32 %v395, %v396
        %vm398 = vcmp.lt.s32.totalorder %v379, 1
        %vm399 = vcmp.lt.s32.totalorder %v379, 2
        %vm400 = vcmp.lt.s32.totalorder %v379, 3
        %vm401 = vcmp.lt.s32.totalorder %v379, 4
        %v402 = vsel %vm398, %v382, %v385
        %v403 = vsel %vm401, %v391, 2102212464
        %v404 = vsel %vm400, %v388, %v403
        %v405 = vsel %vm399, %v402, %v404
        %v406 = vsel %vm398, %v385, %v388
        %v407 = vsel %vm401, %v394, 920167782
        %v408 = vsel %vm400, %v391, %v407
        %v409 = vsel %vm399, %v406, %v408
        %v410 = vsel %vm398, %v388, %v391
        %v411 = vsel %vm401, %v397, 1326507024
        %v412 = vsel %vm400, %v394, %v411
        %v413 = vsel %vm399, %v410, %v412
        %v414 = vshll.u32 %v374, 8
        %v415 = vmul.u32.u64.compose %v414, %v413
        %v416 = vextract.low.u32 %v415
        %v417 = vextract.high.u32 %v415
        %v418 = vmul.u32.u64.compose %v414, %v409
        %v419 = vextract.low.u32 %v418
        %v420 = vextract.high.u32 %v418
        %v421 = vmul.u32 %v414, %v405
        %v422 = vadd.s32 %v417, %v419
        %vm423 = vc.u32 %v417, %v419
        %v424 = vadd.s32 %v420, 1
        %v425 = vsel %vm423, %v424, %v420
        %v426 = vadd.s32 %v421, %v425
        %v427 = vadd.s32 %v426, 536870912
        %v428 = vshrl.u32 %v427, 30
        %v429 = vshll.u32 %v428, 30
        %v430 = vsub.s32 %v426, %v429
        %vm431 = vcmp.lt.s32.totalorder %v430, 0
        %v432 = vsub.s32 0, %v430
        %v433 = vsel %vm431, %v432, %v430
        %v434 = vclz %v433
        %v435 = vsub.s32 %v434, 2
        %vm436 = vcmp.gt.s32.totalorder 0, %v435
        %v437 = vsel %vm436, 0, %v435
        %v438 = vsub.s32 32, %v437
        %v439 = vshll.u32 %v430, %v437
        %v440 = vshrl.u32 %v422, %v438
        %v441 = vor.u32 %v439, %v440
        %v442 = vsub.s32 4294967266, %v437
        %v443 = vadd.s32 %v442, 127
        %v444 = vshll.u32 %v443, 23
        %v445 = vor.u32 4788187, %v444
        %v446 = vand.u32 2147483647, %v445
        %v448 = vcvt.s32.f32 %v441
        %v449 = vmul.f32 %v448, %v446
        %v450 = vxor.u32 %v449, 2147483648
        %v451 = vsel %vm368, %v450, %v449
        %v452 = vsub.s32 4, %v428
        %v453 = vsel %vm368, %v452, %v428
        %v454 = vsel %vm367, %v262, %v451
        %v455 = vsel %vm367, 0, %v453
        %v456 = vcosq.f32.pop %v454
        %v457 = vsinq.f32.pop %v454
        %vm458 = vweird.f32 %v262
        %v459 = vand.u32 %v455, 3
        %vm460 = vcmp.lt.s32.totalorder %v459, 2
        %vm461 = vcmp.eq.s32.totalorder %v459, 0
        %v462 = vxor.u32 %v457, 2147483648
        %v463 = vsel %vm461, %v456, %v462
        %vm464 = vcmp.eq.s32.totalorder %v459, 2
        %v465 = vxor.u32 %v456, 2147483648
        %v466 = vsel %vm464, %v465, %v457
        %v467 = vsel %vm460, %v463, %v466
        %v468 = vsel %vm458, nan, %v467
        %v469 = vadd.f32 %v365, 0.0
        %v470 = vadd.f32 %v468, 0.0
        %s471 = sld [smem:[#allocation6 + $0x1]]
        %v472 = vstv %s471
        %v473 = vadd.f32 %v257, %v472
        %v474 = vadd.f32 %v258, %v472
        %v475 = vand.u32 2147483647, %v473
        %vm476 = vcmp.le.f32.partialorder %v475, 0.7853982
        %vm477 = vcmp.lt.s32.totalorder %v473, 0
        %v478 = vand.u32 %v473, 2139095040
        %v479 = vshrl.u32 %v478, 23
        %v480 = vsub.s32 %v479, 127
        %v481 = vand.u32 2147483647, %v473
        %v482 = vand.u32 %v481, 8388607
        %v483 = vor.u32 %v482, 8388608
        %v484 = vsub.s32 0, %v483
        %v485 = vadd.s32 %v480, 1
        %vm486 = vcmp.gt.s32.totalorder %v485, 0
        %v487 = vsel %vm486, %v485, 0
        %v488 = vshrl.u32 %v487, 5
        %v489 = vand.u32 %v487, 31
        %v490 = vsub.s32 32, %v489
        %v491 = vshrl.u32 683565275, %v490
        %v492 = vshll.u32 683565275, %v489
        %v493 = vshrl.u32 2475754826, %v490
        %v494 = vor.u32 %v492, %v493
        %v495 = vshll.u32 2475754826, %v489
        %v496 = vshrl.u32 2131351028, %v490
        %v497 = vor.u32 %v495, %v496
        %v498 = vshll.u32 2131351028, %v489
        %v499 = vshrl.u32 2102212464, %v490
        %v500 = vor.u32 %v498, %v499
        %v501 = vshll.u32 2102212464, %v489
        %v502 = vshrl.u32 920167782, %v490
        %v503 = vor.u32 %v501, %v502
        %v504 = vshll.u32 920167782, %v489
        %v505 = vshrl.u32 1326507024, %v490
        %v506 = vor.u32 %v504, %v505
        %vm507 = vcmp.lt.s32.totalorder %v488, 1
        %vm508 = vcmp.lt.s32.totalorder %v488, 2
        %vm509 = vcmp.lt.s32.totalorder %v488, 3
        %vm510 = vcmp.lt.s32.totalorder %v488, 4
        %v511 = vsel %vm507, %v491, %v494
        %v512 = vsel %vm510, %v500, 2102212464
        %v513 = vsel %vm509, %v497, %v512
        %v514 = vsel %vm508, %v511, %v513
        %v515 = vsel %vm507, %v494, %v497
        %v516 = vsel %vm510, %v503, 920167782
        %v517 = vsel %vm509, %v500, %v516
        %v518 = vsel %vm508, %v515, %v517
        %v519 = vsel %vm507, %v497, %v500
        %v520 = vsel %vm510, %v506, 1326507024
        %v521 = vsel %vm509, %v503, %v520
        %v522 = vsel %vm508, %v519, %v521
        %v523 = vshll.u32 %v483, 8
        %v524 = vmul.u32.u64.compose %v523, %v522
        %v525 = vextract.low.u32 %v524
        %v526 = vextract.high.u32 %v524
        %v527 = vmul.u32.u64.compose %v523, %v518
        %v528 = vextract.low.u32 %v527
        %v529 = vextract.high.u32 %v527
        %v530 = vmul.u32 %v523, %v514
        %v531 = vadd.s32 %v526, %v528
        %vm532 = vc.u32 %v526, %v528
        %v533 = vadd.s32 %v529, 1
        %v534 = vsel %vm532, %v533, %v529
        %v535 = vadd.s32 %v530, %v534
        %v536 = vadd.s32 %v535, 536870912
        %v537 = vshrl.u32 %v536, 30
        %v538 = vshll.u32 %v537, 30
        %v539 = vsub.s32 %v535, %v538
        %vm540 = vcmp.lt.s32.totalorder %v539, 0
        %v541 = vsub.s32 0, %v539
        %v542 = vsel %vm540, %v541, %v539
        %v543 = vclz %v542
        %v544 = vsub.s32 %v543, 2
        %vm545 = vcmp.gt.s32.totalorder 0, %v544
        %v546 = vsel %vm545, 0, %v544
        %v547 = vsub.s32 32, %v546
        %v548 = vshll.u32 %v539, %v546
        %v549 = vshrl.u32 %v531, %v547
        %v550 = vor.u32 %v548, %v549
        %v551 = vsub.s32 4294967266, %v546
        %v552 = vadd.s32 %v551, 127
        %v553 = vshll.u32 %v552, 23
        %v554 = vor.u32 4788187, %v553
        %v555 = vand.u32 2147483647, %v554
        %v557 = vcvt.s32.f32 %v550
        %v558 = vmul.f32 %v557, %v555
        %v559 = vxor.u32 %v558, 2147483648
        %v560 = vsel %vm477, %v559, %v558
        %v561 = vsub.s32 4, %v537
        %v562 = vsel %vm477, %v561, %v537
        %v563 = vsel %vm476, %v473, %v560
        %v564 = vsel %vm476, 0, %v562
        %v565 = vcosq.f32.pop %v563
        %v566 = vsinq.f32.pop %v563
        %vm567 = vweird.f32 %v473
        %v568 = vand.u32 %v564, 3
        %vm569 = vcmp.lt.s32.totalorder %v568, 2
        %vm570 = vcmp.eq.s32.totalorder %v568, 0
        %v571 = vxor.u32 %v566, 2147483648
        %v572 = vsel %vm570, %v565, %v571
        %vm573 = vcmp.eq.s32.totalorder %v568, 2
        %v574 = vxor.u32 %v565, 2147483648
        %v575 = vsel %vm573, %v574, %v566
        %v576 = vsel %vm569, %v572, %v575
        %v577 = vsel %vm567, nan, %v576
        %v578 = vand.u32 2147483647, %v474
        %vm579 = vcmp.le.f32.partialorder %v578, 0.7853982
        %vm580 = vcmp.lt.s32.totalorder %v474, 0
        %v581 = vand.u32 %v474, 2139095040
        %v582 = vshrl.u32 %v581, 23
        %v583 = vsub.s32 %v582, 127
        %v584 = vand.u32 2147483647, %v474
        %v585 = vand.u32 %v584, 8388607
        %v586 = vor.u32 %v585, 8388608
        %v587 = vsub.s32 0, %v586
        %v588 = vadd.s32 %v583, 1
        %vm589 = vcmp.gt.s32.totalorder %v588, 0
        %v590 = vsel %vm589, %v588, 0
        %v591 = vshrl.u32 %v590, 5
        %v592 = vand.u32 %v590, 31
        %v593 = vsub.s32 32, %v592
        %v594 = vshrl.u32 683565275, %v593
        %v595 = vshll.u32 683565275, %v592
        %v596 = vshrl.u32 2475754826, %v593
        %v597 = vor.u32 %v595, %v596
        %v598 = vshll.u32 2475754826, %v592
        %v599 = vshrl.u32 2131351028, %v593
        %v600 = vor.u32 %v598, %v599
        %v601 = vshll.u32 2131351028, %v592
        %v602 = vshrl.u32 2102212464, %v593
        %v603 = vor.u32 %v601, %v602
        %v604 = vshll.u32 2102212464, %v592
        %v605 = vshrl.u32 920167782, %v593
        %v606 = vor.u32 %v604, %v605
        %v607 = vshll.u32 920167782, %v592
        %v608 = vshrl.u32 1326507024, %v593
        %v609 = vor.u32 %v607, %v608
        %vm610 = vcmp.lt.s32.totalorder %v591, 1
        %vm611 = vcmp.lt.s32.totalorder %v591, 2
        %vm612 = vcmp.lt.s32.totalorder %v591, 3
        %vm613 = vcmp.lt.s32.totalorder %v591, 4
        %v614 = vsel %vm610, %v594, %v597
        %v615 = vsel %vm613, %v603, 2102212464
        %v616 = vsel %vm612, %v600, %v615
        %v617 = vsel %vm611, %v614, %v616
        %v618 = vsel %vm610, %v597, %v600
        %v619 = vsel %vm613, %v606, 920167782
        %v620 = vsel %vm612, %v603, %v619
        %v621 = vsel %vm611, %v618, %v620
        %v622 = vsel %vm610, %v600, %v603
        %v623 = vsel %vm613, %v609, 1326507024
        %v624 = vsel %vm612, %v606, %v623
        %v625 = vsel %vm611, %v622, %v624
        %v626 = vshll.u32 %v586, 8
        %v627 = vmul.u32.u64.compose %v626, %v625
        %v628 = vextract.low.u32 %v627
        %v629 = vextract.high.u32 %v627
        %v630 = vmul.u32.u64.compose %v626, %v621
        %v631 = vextract.low.u32 %v630
        %v632 = vextract.high.u32 %v630
        %v633 = vmul.u32 %v626, %v617
        %v634 = vadd.s32 %v629, %v631
        %vm635 = vc.u32 %v629, %v631
        %v636 = vadd.s32 %v632, 1
        %v637 = vsel %vm635, %v636, %v632
        %v638 = vadd.s32 %v633, %v637
        %v639 = vadd.s32 %v638, 536870912
        %v640 = vshrl.u32 %v639, 30
        %v641 = vshll.u32 %v640, 30
        %v642 = vsub.s32 %v638, %v641
        %vm643 = vcmp.lt.s32.totalorder %v642, 0
        %v644 = vsub.s32 0, %v642
        %v645 = vsel %vm643, %v644, %v642
        %v646 = vclz %v645
        %v647 = vsub.s32 %v646, 2
        %vm648 = vcmp.gt.s32.totalorder 0, %v647
        %v649 = vsel %vm648, 0, %v647
        %v650 = vsub.s32 32, %v649
        %v651 = vshll.u32 %v642, %v649
        %v652 = vshrl.u32 %v634, %v650
        %v653 = vor.u32 %v651, %v652
        %v654 = vsub.s32 4294967266, %v649
        %v655 = vadd.s32 %v654, 127
        %v656 = vshll.u32 %v655, 23
        %v657 = vor.u32 4788187, %v656
        %v658 = vand.u32 2147483647, %v657
        %v660 = vcvt.s32.f32 %v653
        %v661 = vmul.f32 %v660, %v658
        %v662 = vxor.u32 %v661, 2147483648
        %v663 = vsel %vm580, %v662, %v661
        %v664 = vsub.s32 4, %v640
        %v665 = vsel %vm580, %v664, %v640
        %v666 = vsel %vm579, %v474, %v663
        %v667 = vsel %vm579, 0, %v665
        %v668 = vcosq.f32.pop %v666
        %v669 = vsinq.f32.pop %v666
        %vm670 = vweird.f32 %v474
        %v671 = vand.u32 %v667, 3
        %vm672 = vcmp.lt.s32.totalorder %v671, 2
        %vm673 = vcmp.eq.s32.totalorder %v671, 0
        %v674 = vxor.u32 %v669, 2147483648
        %v675 = vsel %vm673, %v668, %v674
        %vm676 = vcmp.eq.s32.totalorder %v671, 2
        %v677 = vxor.u32 %v668, 2147483648
        %v678 = vsel %vm676, %v677, %v669
        %v679 = vsel %vm672, %v675, %v678
        %v680 = vsel %vm670, nan, %v679
        %683 = vrot.lane.b32.xlu0 %v577, 127
        %v684 = vpop.permute.xlu0 %683
        %685 = vrot.lane.b32.xlu0 %v680, 127
        %v686 = vpop.permute.xlu0 %685
        %v689 = vadd.f32 %v469, %v684
        %v690 = vadd.f32 %v470, %v686
        %v691 = vld [vmem:[%s214 + $0x1] sm:$0xff]
        %v692 = vld [vmem:[%s214 + $0x9] sm:$0x7f]
        %s693 = sld [smem:[#allocation6 + $0x2]]
        %v694 = vstv %s693
        %v695 = vadd.f32 %v691, %v694
        %v696 = vadd.f32 %v692, %v694
        %v697 = vand.u32 2147483647, %v695
        %vm698 = vcmp.le.f32.partialorder %v697, 0.7853982
        %vm699 = vcmp.lt.s32.totalorder %v695, 0
        %v700 = vand.u32 %v695, 2139095040
        %v701 = vshrl.u32 %v700, 23
        %v702 = vsub.s32 %v701, 127
        %v703 = vand.u32 2147483647, %v695
        %v704 = vand.u32 %v703, 8388607
        %v705 = vor.u32 %v704, 8388608
        %v706 = vsub.s32 0, %v705
        %v707 = vadd.s32 %v702, 1
        %vm708 = vcmp.gt.s32.totalorder %v707, 0
        %v709 = vsel %vm708, %v707, 0
        %v710 = vshrl.u32 %v709, 5
        %v711 = vand.u32 %v709, 31
        %v712 = vsub.s32 32, %v711
        %v713 = vshrl.u32 683565275, %v712
        %v714 = vshll.u32 683565275, %v711
        %v715 = vshrl.u32 2475754826, %v712
        %v716 = vor.u32 %v714, %v715
        %v717 = vshll.u32 2475754826, %v711
        %v718 = vshrl.u32 2131351028, %v712
        %v719 = vor.u32 %v717, %v718
        %v720 = vshll.u32 2131351028, %v711
        %v721 = vshrl.u32 2102212464, %v712
        %v722 = vor.u32 %v720, %v721
        %v723 = vshll.u32 2102212464, %v711
        %v724 = vshrl.u32 920167782, %v712
        %v725 = vor.u32 %v723, %v724
        %v726 = vshll.u32 920167782, %v711
        %v727 = vshrl.u32 1326507024, %v712
        %v728 = vor.u32 %v726, %v727
        %vm729 = vcmp.lt.s32.totalorder %v710, 1
        %vm730 = vcmp.lt.s32.totalorder %v710, 2
        %vm731 = vcmp.lt.s32.totalorder %v710, 3
        %vm732 = vcmp.lt.s32.totalorder %v710, 4
        %v733 = vsel %vm729, %v713, %v716
        %v734 = vsel %vm732, %v722, 2102212464
        %v735 = vsel %vm731, %v719, %v734
        %v736 = vsel %vm730, %v733, %v735
        %v737 = vsel %vm729, %v716, %v719
        %v738 = vsel %vm732, %v725, 920167782
        %v739 = vsel %vm731, %v722, %v738
        %v740 = vsel %vm730, %v737, %v739
        %v741 = vsel %vm729, %v719, %v722
        %v742 = vsel %vm732, %v728, 1326507024
        %v743 = vsel %vm731, %v725, %v742
        %v744 = vsel %vm730, %v741, %v743
        %v745 = vshll.u32 %v705, 8
        %v746 = vmul.u32.u64.compose %v745, %v744
        %v747 = vextract.low.u32 %v746
        %v748 = vextract.high.u32 %v746
        %v749 = vmul.u32.u64.compose %v745, %v740
        %v750 = vextract.low.u32 %v749
        %v751 = vextract.high.u32 %v749
        %v752 = vmul.u32 %v745, %v736
        %v753 = vadd.s32 %v748, %v750
        %vm754 = vc.u32 %v748, %v750
        %v755 = vadd.s32 %v751, 1
        %v756 = vsel %vm754, %v755, %v751
        %v757 = vadd.s32 %v752, %v756
        %v758 = vadd.s32 %v757, 536870912
        %v759 = vshrl.u32 %v758, 30
        %v760 = vshll.u32 %v759, 30
        %v761 = vsub.s32 %v757, %v760
        %vm762 = vcmp.lt.s32.totalorder %v761, 0
        %v763 = vsub.s32 0, %v761
        %v764 = vsel %vm762, %v763, %v761
        %v765 = vclz %v764
        %v766 = vsub.s32 %v765, 2
        %vm767 = vcmp.gt.s32.totalorder 0, %v766
        %v768 = vsel %vm767, 0, %v766
        %v769 = vsub.s32 32, %v768
        %v770 = vshll.u32 %v761, %v768
        %v771 = vshrl.u32 %v753, %v769
        %v772 = vor.u32 %v770, %v771
        %v773 = vsub.s32 4294967266, %v768
        %v774 = vadd.s32 %v773, 127
        %v775 = vshll.u32 %v774, 23
        %v776 = vor.u32 4788187, %v775
        %v777 = vand.u32 2147483647, %v776
        %v779 = vcvt.s32.f32 %v772
        %v780 = vmul.f32 %v779, %v777
        %v781 = vxor.u32 %v780, 2147483648
        %v782 = vsel %vm699, %v781, %v780
        %v783 = vsub.s32 4, %v759
        %v784 = vsel %vm699, %v783, %v759
        %v785 = vsel %vm698, %v695, %v782
        %v786 = vsel %vm698, 0, %v784
        %v787 = vcosq.f32.pop %v785
        %v788 = vsinq.f32.pop %v785
        %vm789 = vweird.f32 %v695
        %v790 = vand.u32 %v786, 3
        %vm791 = vcmp.lt.s32.totalorder %v790, 2
        %vm792 = vcmp.eq.s32.totalorder %v790, 0
        %v793 = vxor.u32 %v788, 2147483648
        %v794 = vsel %vm792, %v787, %v793
        %vm795 = vcmp.eq.s32.totalorder %v790, 2
        %v796 = vxor.u32 %v787, 2147483648
        %v797 = vsel %vm795, %v796, %v788
        %v798 = vsel %vm791, %v794, %v797
        %v799 = vsel %vm789, nan, %v798
        %v800 = vand.u32 2147483647, %v696
        %vm801 = vcmp.le.f32.partialorder %v800, 0.7853982
        %vm802 = vcmp.lt.s32.totalorder %v696, 0
        %v803 = vand.u32 %v696, 2139095040
        %v804 = vshrl.u32 %v803, 23
        %v805 = vsub.s32 %v804, 127
        %v806 = vand.u32 2147483647, %v696
        %v807 = vand.u32 %v806, 8388607
        %v808 = vor.u32 %v807, 8388608
        %v809 = vsub.s32 0, %v808
        %v810 = vadd.s32 %v805, 1
        %vm811 = vcmp.gt.s32.totalorder %v810, 0
        %v812 = vsel %vm811, %v810, 0
        %v813 = vshrl.u32 %v812, 5
        %v814 = vand.u32 %v812, 31
        %v815 = vsub.s32 32, %v814
        %v816 = vshrl.u32 683565275, %v815
        %v817 = vshll.u32 683565275, %v814
        %v818 = vshrl.u32 2475754826, %v815
        %v819 = vor.u32 %v817, %v818
        %v820 = vshll.u32 2475754826, %v814
        %v821 = vshrl.u32 2131351028, %v815
        %v822 = vor.u32 %v820, %v821
        %v823 = vshll.u32 2131351028, %v814
        %v824 = vshrl.u32 2102212464, %v815
        %v825 = vor.u32 %v823, %v824
        %v826 = vshll.u32 2102212464, %v814
        %v827 = vshrl.u32 920167782, %v815
        %v828 = vor.u32 %v826, %v827
        %v829 = vshll.u32 920167782, %v814
        %v830 = vshrl.u32 1326507024, %v815
        %v831 = vor.u32 %v829, %v830
        %vm832 = vcmp.lt.s32.totalorder %v813, 1
        %vm833 = vcmp.lt.s32.totalorder %v813, 2
        %vm834 = vcmp.lt.s32.totalorder %v813, 3
        %vm835 = vcmp.lt.s32.totalorder %v813, 4
        %v836 = vsel %vm832, %v816, %v819
        %v837 = vsel %vm835, %v825, 2102212464
        %v838 = vsel %vm834, %v822, %v837
        %v839 = vsel %vm833, %v836, %v838
        %v840 = vsel %vm832, %v819, %v822
        %v841 = vsel %vm835, %v828, 920167782
        %v842 = vsel %vm834, %v825, %v841
        %v843 = vsel %vm833, %v840, %v842
        %v844 = vsel %vm832, %v822, %v825
        %v845 = vsel %vm835, %v831, 1326507024
        %v846 = vsel %vm834, %v828, %v845
        %v847 = vsel %vm833, %v844, %v846
        %v848 = vshll.u32 %v808, 8
        %v849 = vmul.u32.u64.compose %v848, %v847
        %v850 = vextract.low.u32 %v849
        %v851 = vextract.high.u32 %v849
        %v852 = vmul.u32.u64.compose %v848, %v843
        %v853 = vextract.low.u32 %v852
        %v854 = vextract.high.u32 %v852
        %v855 = vmul.u32 %v848, %v839
        %v856 = vadd.s32 %v851, %v853
        %vm857 = vc.u32 %v851, %v853
        %v858 = vadd.s32 %v854, 1
        %v859 = vsel %vm857, %v858, %v854
        %v860 = vadd.s32 %v855, %v859
        %v861 = vadd.s32 %v860, 536870912
        %v862 = vshrl.u32 %v861, 30
        %v863 = vshll.u32 %v862, 30
        %v864 = vsub.s32 %v860, %v863
        %vm865 = vcmp.lt.s32.totalorder %v864, 0
        %v866 = vsub.s32 0, %v864
        %v867 = vsel %vm865, %v866, %v864
        %v868 = vclz %v867
        %v869 = vsub.s32 %v868, 2
        %vm870 = vcmp.gt.s32.totalorder 0, %v869
        %v871 = vsel %vm870, 0, %v869
        %v872 = vsub.s32 32, %v871
        %v873 = vshll.u32 %v864, %v871
        %v874 = vshrl.u32 %v856, %v872
        %v875 = vor.u32 %v873, %v874
        %v876 = vsub.s32 4294967266, %v871
        %v877 = vadd.s32 %v876, 127
        %v878 = vshll.u32 %v877, 23
        %v879 = vor.u32 4788187, %v878
        %v880 = vand.u32 2147483647, %v879
        %v882 = vcvt.s32.f32 %v875
        %v883 = vmul.f32 %v882, %v880
        %v884 = vxor.u32 %v883, 2147483648
        %v885 = vsel %vm802, %v884, %v883
        %v886 = vsub.s32 4, %v862
        %v887 = vsel %vm802, %v886, %v862
        %v888 = vsel %vm801, %v696, %v885
        %v889 = vsel %vm801, 0, %v887
        %v890 = vcosq.f32.pop %v888
        %v891 = vsinq.f32.pop %v888
        %vm892 = vweird.f32 %v696
        %v893 = vand.u32 %v889, 3
        %vm894 = vcmp.lt.s32.totalorder %v893, 2
        %vm895 = vcmp.eq.s32.totalorder %v893, 0
        %v896 = vxor.u32 %v891, 2147483648
        %v897 = vsel %vm895, %v890, %v896
        %vm898 = vcmp.eq.s32.totalorder %v893, 2
        %v899 = vxor.u32 %v890, 2147483648
        %v900 = vsel %vm898, %v899, %v891
        %v901 = vsel %vm894, %v897, %v900
        %v902 = vsel %vm892, nan, %v901
        %v903 = vadd.f32 %v689, %v799
        %v904 = vadd.f32 %v690, %v902
        %s905 = sld [smem:[#allocation6 + $0x3]]
        %v906 = vstv %s905
        %v907 = vadd.f32 %v691, %v906
        %v908 = vadd.f32 %v692, %v906
        %v909 = vand.u32 2147483647, %v907
        %vm910 = vcmp.le.f32.partialorder %v909, 0.7853982
        %vm911 = vcmp.lt.s32.totalorder %v907, 0
        %v912 = vand.u32 %v907, 2139095040
        %v913 = vshrl.u32 %v912, 23
        %v914 = vsub.s32 %v913, 127
        %v915 = vand.u32 2147483647, %v907
        %v916 = vand.u32 %v915, 8388607
        %v917 = vor.u32 %v916, 8388608
        %v918 = vsub.s32 0, %v917
        %v919 = vadd.s32 %v914, 1
        %vm920 = vcmp.gt.s32.totalorder %v919, 0
        %v921 = vsel %vm920, %v919, 0
        %v922 = vshrl.u32 %v921, 5
        %v923 = vand.u32 %v921, 31
        %v924 = vsub.s32 32, %v923
        %v925 = vshrl.u32 683565275, %v924
        %v926 = vshll.u32 683565275, %v923
        %v927 = vshrl.u32 2475754826, %v924
        %v928 = vor.u32 %v926, %v927
        %v929 = vshll.u32 2475754826, %v923
        %v930 = vshrl.u32 2131351028, %v924
        %v931 = vor.u32 %v929, %v930
        %v932 = vshll.u32 2131351028, %v923
        %v933 = vshrl.u32 2102212464, %v924
        %v934 = vor.u32 %v932, %v933
        %v935 = vshll.u32 2102212464, %v923
        %v936 = vshrl.u32 920167782, %v924
        %v937 = vor.u32 %v935, %v936
        %v938 = vshll.u32 920167782, %v923
        %v939 = vshrl.u32 1326507024, %v924
        %v940 = vor.u32 %v938, %v939
        %vm941 = vcmp.lt.s32.totalorder %v922, 1
        %vm942 = vcmp.lt.s32.totalorder %v922, 2
        %vm943 = vcmp.lt.s32.totalorder %v922, 3
        %vm944 = vcmp.lt.s32.totalorder %v922, 4
        %v945 = vsel %vm941, %v925, %v928
        %v946 = vsel %vm944, %v934, 2102212464
        %v947 = vsel %vm943, %v931, %v946
        %v948 = vsel %vm942, %v945, %v947
        %v949 = vsel %vm941, %v928, %v931
        %v950 = vsel %vm944, %v937, 920167782
        %v951 = vsel %vm943, %v934, %v950
        %v952 = vsel %vm942, %v949, %v951
        %v953 = vsel %vm941, %v931, %v934
        %v954 = vsel %vm944, %v940, 1326507024
        %v955 = vsel %vm943, %v937, %v954
        %v956 = vsel %vm942, %v953, %v955
        %v957 = vshll.u32 %v917, 8
        %v958 = vmul.u32.u64.compose %v957, %v956
        %v959 = vextract.low.u32 %v958
        %v960 = vextract.high.u32 %v958
        %v961 = vmul.u32.u64.compose %v957, %v952
        %v962 = vextract.low.u32 %v961
        %v963 = vextract.high.u32 %v961
        %v964 = vmul.u32 %v957, %v948
        %v965 = vadd.s32 %v960, %v962
        %vm966 = vc.u32 %v960, %v962
        %v967 = vadd.s32 %v963, 1
        %v968 = vsel %vm966, %v967, %v963
        %v969 = vadd.s32 %v964, %v968
        %v970 = vadd.s32 %v969, 536870912
        %v971 = vshrl.u32 %v970, 30
        %v972 = vshll.u32 %v971, 30
        %v973 = vsub.s32 %v969, %v972
        %vm974 = vcmp.lt.s32.totalorder %v973, 0
        %v975 = vsub.s32 0, %v973
        %v976 = vsel %vm974, %v975, %v973
        %v977 = vclz %v976
        %v978 = vsub.s32 %v977, 2
        %vm979 = vcmp.gt.s32.totalorder 0, %v978
        %v980 = vsel %vm979, 0, %v978
        %v981 = vsub.s32 32, %v980
        %v982 = vshll.u32 %v973, %v980
        %v983 = vshrl.u32 %v965, %v981
        %v984 = vor.u32 %v982, %v983
        %v985 = vsub.s32 4294967266, %v980
        %v986 = vadd.s32 %v985, 127
        %v987 = vshll.u32 %v986, 23
        %v988 = vor.u32 4788187, %v987
        %v989 = vand.u32 2147483647, %v988
        %v991 = vcvt.s32.f32 %v984
        %v992 = vmul.f32 %v991, %v989
        %v993 = vxor.u32 %v992, 2147483648
        %v994 = vsel %vm911, %v993, %v992
        %v995 = vsub.s32 4, %v971
        %v996 = vsel %vm911, %v995, %v971
        %v997 = vsel %vm910, %v907, %v994
        %v998 = vsel %vm910, 0, %v996
        %v999 = vcosq.f32.pop %v997
        %v1000 = vsinq.f32.pop %v997
        %vm1001 = vweird.f32 %v907
        %v1002 = vand.u32 %v998, 3
        %vm1003 = vcmp.lt.s32.totalorder %v1002, 2
        %vm1004 = vcmp.eq.s32.totalorder %v1002, 0
        %v1005 = vxor.u32 %v1000, 2147483648
        %v1006 = vsel %vm1004, %v999, %v1005
        %vm1007 = vcmp.eq.s32.totalorder %v1002, 2
        %v1008 = vxor.u32 %v999, 2147483648
        %v1009 = vsel %vm1007, %v1008, %v1000
        %v1010 = vsel %vm1003, %v1006, %v1009
        %v1011 = vsel %vm1001, nan, %v1010
        %v1012 = vand.u32 2147483647, %v908
        %vm1013 = vcmp.le.f32.partialorder %v1012, 0.7853982
        %vm1014 = vcmp.lt.s32.totalorder %v908, 0
        %v1015 = vand.u32 %v908, 2139095040
        %v1016 = vshrl.u32 %v1015, 23
        %v1017 = vsub.s32 %v1016, 127
        %v1018 = vand.u32 2147483647, %v908
        %v1019 = vand.u32 %v1018, 8388607
        %v1020 = vor.u32 %v1019, 8388608
        %v1021 = vsub.s32 0, %v1020
        %v1022 = vadd.s32 %v1017, 1
        %vm1023 = vcmp.gt.s32.totalorder %v1022, 0
        %v1024 = vsel %vm1023, %v1022, 0
        %v1025 = vshrl.u32 %v1024, 5
        %v1026 = vand.u32 %v1024, 31
        %v1027 = vsub.s32 32, %v1026
        %v1028 = vshrl.u32 683565275, %v1027
        %v1029 = vshll.u32 683565275, %v1026
        %v1030 = vshrl.u32 2475754826, %v1027
        %v1031 = vor.u32 %v1029, %v1030
        %v1032 = vshll.u32 2475754826, %v1026
        %v1033 = vshrl.u32 2131351028, %v1027
        %v1034 = vor.u32 %v1032, %v1033
        %v1035 = vshll.u32 2131351028, %v1026
        %v1036 = vshrl.u32 2102212464, %v1027
        %v1037 = vor.u32 %v1035, %v1036
        %v1038 = vshll.u32 2102212464, %v1026
        %v1039 = vshrl.u32 920167782, %v1027
        %v1040 = vor.u32 %v1038, %v1039
        %v1041 = vshll.u32 920167782, %v1026
        %v1042 = vshrl.u32 1326507024, %v1027
        %v1043 = vor.u32 %v1041, %v1042
        %vm1044 = vcmp.lt.s32.totalorder %v1025, 1
        %vm1045 = vcmp.lt.s32.totalorder %v1025, 2
        %vm1046 = vcmp.lt.s32.totalorder %v1025, 3
        %vm1047 = vcmp.lt.s32.totalorder %v1025, 4
        %v1048 = vsel %vm1044, %v1028, %v1031
        %v1049 = vsel %vm1047, %v1037, 2102212464
        %v1050 = vsel %vm1046, %v1034, %v1049
        %v1051 = vsel %vm1045, %v1048, %v1050
        %v1052 = vsel %vm1044, %v1031, %v1034
        %v1053 = vsel %vm1047, %v1040, 920167782
        %v1054 = vsel %vm1046, %v1037, %v1053
        %v1055 = vsel %vm1045, %v1052, %v1054
        %v1056 = vsel %vm1044, %v1034, %v1037
        %v1057 = vsel %vm1047, %v1043, 1326507024
        %v1058 = vsel %vm1046, %v1040, %v1057
        %v1059 = vsel %vm1045, %v1056, %v1058
        %v1060 = vshll.u32 %v1020, 8
        %v1061 = vmul.u32.u64.compose %v1060, %v1059
        %v1062 = vextract.low.u32 %v1061
        %v1063 = vextract.high.u32 %v1061
        %v1064 = vmul.u32.u64.compose %v1060, %v1055
        %v1065 = vextract.low.u32 %v1064
        %v1066 = vextract.high.u32 %v1064
        %v1067 = vmul.u32 %v1060, %v1051
        %v1068 = vadd.s32 %v1063, %v1065
        %vm1069 = vc.u32 %v1063, %v1065
        %v1070 = vadd.s32 %v1066, 1
        %v1071 = vsel %vm1069, %v1070, %v1066
        %v1072 = vadd.s32 %v1067, %v1071
        %v1073 = vadd.s32 %v1072, 536870912
        %v1074 = vshrl.u32 %v1073, 30
        %v1075 = vshll.u32 %v1074, 30
        %v1076 = vsub.s32 %v1072, %v1075
        %vm1077 = vcmp.lt.s32.totalorder %v1076, 0
        %v1078 = vsub.s32 0, %v1076
        %v1079 = vsel %vm1077, %v1078, %v1076
        %v1080 = vclz %v1079
        %v1081 = vsub.s32 %v1080, 2
        %vm1082 = vcmp.gt.s32.totalorder 0, %v1081
        %v1083 = vsel %vm1082, 0, %v1081
        %v1084 = vsub.s32 32, %v1083
        %v1085 = vshll.u32 %v1076, %v1083
        %v1086 = vshrl.u32 %v1068, %v1084
        %v1087 = vor.u32 %v1085, %v1086
        %v1088 = vsub.s32 4294967266, %v1083
        %v1089 = vadd.s32 %v1088, 127
        %v1090 = vshll.u32 %v1089, 23
        %v1091 = vor.u32 4788187, %v1090
        %v1092 = vand.u32 2147483647, %v1091
        %v1094 = vcvt.s32.f32 %v1087
        %v1095 = vmul.f32 %v1094, %v1092
        %v1096 = vxor.u32 %v1095, 2147483648
        %v1097 = vsel %vm1014, %v1096, %v1095
        %v1098 = vsub.s32 4, %v1074
        %v1099 = vsel %vm1014, %v1098, %v1074
        %v1100 = vsel %vm1013, %v908, %v1097
        %v1101 = vsel %vm1013, 0, %v1099
        %v1102 = vcosq.f32.pop %v1100
        %v1103 = vsinq.f32.pop %v1100
        %vm1104 = vweird.f32 %v908
        %v1105 = vand.u32 %v1101, 3
        %vm1106 = vcmp.lt.s32.totalorder %v1105, 2
        %vm1107 = vcmp.eq.s32.totalorder %v1105, 0
        %v1108 = vxor.u32 %v1103, 2147483648
        %v1109 = vsel %vm1107, %v1102, %v1108
        %vm1110 = vcmp.eq.s32.totalorder %v1105, 2
        %v1111 = vxor.u32 %v1102, 2147483648
        %v1112 = vsel %vm1110, %v1111, %v1103
        %v1113 = vsel %vm1106, %v1109, %v1112
        %v1114 = vsel %vm1104, nan, %v1113
        %1117 = vrot.lane.b32.xlu0 %v1011, 127
        %v1118 = vpop.permute.xlu0 %1117
        %1119 = vrot.lane.b32.xlu0 %v1114, 127
        %v1120 = vpop.permute.xlu0 %1119
        %v1123 = vadd.f32 %v903, %v1118
        %v1124 = vadd.f32 %v904, %v1120
        %vm1125 = vcmask 121856
        %1126 = vst.msk [vmem:[#allocation2] sm:$0xff] %vm1125, %v1123
        %vm1127 = vcmask 120832
        %1128 = vst.msk [vmem:[#allocation2 + $0x8] sm:$0x7f] %vm1127, %v1124
        %s1129 = scalar_lea.vmem %s214, 16 [#allocation3]
        %v1130 = vld [vmem:[%s1129] sm:$0xff]
        %v1131 = vld [vmem:[%s1129 + $0x8] sm:$0x7f]
        %s1132 = sld [smem:[#allocation6 + $0x4]]
        %v1133 = vstv %s1132
        %v1134 = vadd.f32 %v1130, %v1133
        %v1135 = vadd.f32 %v1131, %v1133
        %v1136 = vand.u32 2147483647, %v1134
        %vm1137 = vcmp.le.f32.partialorder %v1136, 0.7853982
        %vm1138 = vcmp.lt.s32.totalorder %v1134, 0
        %v1139 = vand.u32 %v1134, 2139095040
        %v1140 = vshrl.u32 %v1139, 23
        %v1141 = vsub.s32 %v1140, 127
        %v1142 = vand.u32 2147483647, %v1134
        %v1143 = vand.u32 %v1142, 8388607
        %v1144 = vor.u32 %v1143, 8388608
        %v1145 = vsub.s32 0, %v1144
        %v1146 = vadd.s32 %v1141, 1
        %vm1147 = vcmp.gt.s32.totalorder %v1146, 0
        %v1148 = vsel %vm1147, %v1146, 0
        %v1149 = vshrl.u32 %v1148, 5
        %v1150 = vand.u32 %v1148, 31
        %v1151 = vsub.s32 32, %v1150
        %v1152 = vshrl.u32 683565275, %v1151
        %v1153 = vshll.u32 683565275, %v1150
        %v1154 = vshrl.u32 2475754826, %v1151
        %v1155 = vor.u32 %v1153, %v1154
        %v1156 = vshll.u32 2475754826, %v1150
        %v1157 = vshrl.u32 2131351028, %v1151
        %v1158 = vor.u32 %v1156, %v1157
        %v1159 = vshll.u32 2131351028, %v1150
        %v1160 = vshrl.u32 2102212464, %v1151
        %v1161 = vor.u32 %v1159, %v1160
        %v1162 = vshll.u32 2102212464, %v1150
        %v1163 = vshrl.u32 920167782, %v1151
        %v1164 = vor.u32 %v1162, %v1163
        %v1165 = vshll.u32 920167782, %v1150
        %v1166 = vshrl.u32 1326507024, %v1151
        %v1167 = vor.u32 %v1165, %v1166
        %vm1168 = vcmp.lt.s32.totalorder %v1149, 1
        %vm1169 = vcmp.lt.s32.totalorder %v1149, 2
        %vm1170 = vcmp.lt.s32.totalorder %v1149, 3
        %vm1171 = vcmp.lt.s32.totalorder %v1149, 4
        %v1172 = vsel %vm1168, %v1152, %v1155
        %v1173 = vsel %vm1171, %v1161, 2102212464
        %v1174 = vsel %vm1170, %v1158, %v1173
        %v1175 = vsel %vm1169, %v1172, %v1174
        %v1176 = vsel %vm1168, %v1155, %v1158
        %v1177 = vsel %vm1171, %v1164, 920167782
        %v1178 = vsel %vm1170, %v1161, %v1177
        %v1179 = vsel %vm1169, %v1176, %v1178
        %v1180 = vsel %vm1168, %v1158, %v1161
        %v1181 = vsel %vm1171, %v1167, 1326507024
        %v1182 = vsel %vm1170, %v1164, %v1181
        %v1183 = vsel %vm1169, %v1180, %v1182
        %v1184 = vshll.u32 %v1144, 8
        %v1185 = vmul.u32.u64.compose %v1184, %v1183
        %v1186 = vextract.low.u32 %v1185
        %v1187 = vextract.high.u32 %v1185
        %v1188 = vmul.u32.u64.compose %v1184, %v1179
        %v1189 = vextract.low.u32 %v1188
        %v1190 = vextract.high.u32 %v1188
        %v1191 = vmul.u32 %v1184, %v1175
        %v1192 = vadd.s32 %v1187, %v1189
        %vm1193 = vc.u32 %v1187, %v1189
        %v1194 = vadd.s32 %v1190, 1
        %v1195 = vsel %vm1193, %v1194, %v1190
        %v1196 = vadd.s32 %v1191, %v1195
        %v1197 = vadd.s32 %v1196, 536870912
        %v1198 = vshrl.u32 %v1197, 30
        %v1199 = vshll.u32 %v1198, 30
        %v1200 = vsub.s32 %v1196, %v1199
        %vm1201 = vcmp.lt.s32.totalorder %v1200, 0
        %v1202 = vsub.s32 0, %v1200
        %v1203 = vsel %vm1201, %v1202, %v1200
        %v1204 = vclz %v1203
        %v1205 = vsub.s32 %v1204, 2
        %vm1206 = vcmp.gt.s32.totalorder 0, %v1205
        %v1207 = vsel %vm1206, 0, %v1205
        %v1208 = vsub.s32 32, %v1207
        %v1209 = vshll.u32 %v1200, %v1207
        %v1210 = vshrl.u32 %v1192, %v1208
        %v1211 = vor.u32 %v1209, %v1210
        %v1212 = vsub.s32 4294967266, %v1207
        %v1213 = vadd.s32 %v1212, 127
        %v1214 = vshll.u32 %v1213, 23
        %v1215 = vor.u32 4788187, %v1214
        %v1216 = vand.u32 2147483647, %v1215
        %v1218 = vcvt.s32.f32 %v1211
        %v1219 = vmul.f32 %v1218, %v1216
        %v1220 = vxor.u32 %v1219, 2147483648
        %v1221 = vsel %vm1138, %v1220, %v1219
        %v1222 = vsub.s32 4, %v1198
        %v1223 = vsel %vm1138, %v1222, %v1198
        %v1224 = vsel %vm1137, %v1134, %v1221
        %v1225 = vsel %vm1137, 0, %v1223
        %v1226 = vcosq.f32.pop %v1224
        %v1227 = vsinq.f32.pop %v1224
        %vm1228 = vweird.f32 %v1134
        %v1229 = vand.u32 %v1225, 3
        %vm1230 = vcmp.lt.s32.totalorder %v1229, 2
        %vm1231 = vcmp.eq.s32.totalorder %v1229, 0
        %v1232 = vxor.u32 %v1227, 2147483648
        %v1233 = vsel %vm1231, %v1226, %v1232
        %vm1234 = vcmp.eq.s32.totalorder %v1229, 2
        %v1235 = vxor.u32 %v1226, 2147483648
        %v1236 = vsel %vm1234, %v1235, %v1227
        %v1237 = vsel %vm1230, %v1233, %v1236
        %v1238 = vsel %vm1228, nan, %v1237
        %v1239 = vand.u32 2147483647, %v1135
        %vm1240 = vcmp.le.f32.partialorder %v1239, 0.7853982
        %vm1241 = vcmp.lt.s32.totalorder %v1135, 0
        %v1242 = vand.u32 %v1135, 2139095040
        %v1243 = vshrl.u32 %v1242, 23
        %v1244 = vsub.s32 %v1243, 127
        %v1245 = vand.u32 2147483647, %v1135
        %v1246 = vand.u32 %v1245, 8388607
        %v1247 = vor.u32 %v1246, 8388608
        %v1248 = vsub.s32 0, %v1247
        %v1249 = vadd.s32 %v1244, 1
        %vm1250 = vcmp.gt.s32.totalorder %v1249, 0
        %v1251 = vsel %vm1250, %v1249, 0
        %v1252 = vshrl.u32 %v1251, 5
        %v1253 = vand.u32 %v1251, 31
        %v1254 = vsub.s32 32, %v1253
        %v1255 = vshrl.u32 683565275, %v1254
        %v1256 = vshll.u32 683565275, %v1253
        %v1257 = vshrl.u32 2475754826, %v1254
        %v1258 = vor.u32 %v1256, %v1257
        %v1259 = vshll.u32 2475754826, %v1253
        %v1260 = vshrl.u32 2131351028, %v1254
        %v1261 = vor.u32 %v1259, %v1260
        %v1262 = vshll.u32 2131351028, %v1253
        %v1263 = vshrl.u32 2102212464, %v1254
        %v1264 = vor.u32 %v1262, %v1263
        %v1265 = vshll.u32 2102212464, %v1253
        %v1266 = vshrl.u32 920167782, %v1254
        %v1267 = vor.u32 %v1265, %v1266
        %v1268 = vshll.u32 920167782, %v1253
        %v1269 = vshrl.u32 1326507024, %v1254
        %v1270 = vor.u32 %v1268, %v1269
        %vm1271 = vcmp.lt.s32.totalorder %v1252, 1
        %vm1272 = vcmp.lt.s32.totalorder %v1252, 2
        %vm1273 = vcmp.lt.s32.totalorder %v1252, 3
        %vm1274 = vcmp.lt.s32.totalorder %v1252, 4
        %v1275 = vsel %vm1271, %v1255, %v1258
        %v1276 = vsel %vm1274, %v1264, 2102212464
        %v1277 = vsel %vm1273, %v1261, %v1276
        %v1278 = vsel %vm1272, %v1275, %v1277
        %v1279 = vsel %vm1271, %v1258, %v1261
        %v1280 = vsel %vm1274, %v1267, 920167782
        %v1281 = vsel %vm1273, %v1264, %v1280
        %v1282 = vsel %vm1272, %v1279, %v1281
        %v1283 = vsel %vm1271, %v1261, %v1264
        %v1284 = vsel %vm1274, %v1270, 1326507024
        %v1285 = vsel %vm1273, %v1267, %v1284
        %v1286 = vsel %vm1272, %v1283, %v1285
        %v1287 = vshll.u32 %v1247, 8
        %v1288 = vmul.u32.u64.compose %v1287, %v1286
        %v1289 = vextract.low.u32 %v1288
        %v1290 = vextract.high.u32 %v1288
        %v1291 = vmul.u32.u64.compose %v1287, %v1282
        %v1292 = vextract.low.u32 %v1291
        %v1293 = vextract.high.u32 %v1291
        %v1294 = vmul.u32 %v1287, %v1278
        %v1295 = vadd.s32 %v1290, %v1292
        %vm1296 = vc.u32 %v1290, %v1292
        %v1297 = vadd.s32 %v1293, 1
        %v1298 = vsel %vm1296, %v1297, %v1293
        %v1299 = vadd.s32 %v1294, %v1298
        %v1300 = vadd.s32 %v1299, 536870912
        %v1301 = vshrl.u32 %v1300, 30
        %v1302 = vshll.u32 %v1301, 30
        %v1303 = vsub.s32 %v1299, %v1302
        %vm1304 = vcmp.lt.s32.totalorder %v1303, 0
        %v1305 = vsub.s32 0, %v1303
        %v1306 = vsel %vm1304, %v1305, %v1303
        %v1307 = vclz %v1306
        %v1308 = vsub.s32 %v1307, 2
        %vm1309 = vcmp.gt.s32.totalorder 0, %v1308
        %v1310 = vsel %vm1309, 0, %v1308
        %v1311 = vsub.s32 32, %v1310
        %v1312 = vshll.u32 %v1303, %v1310
        %v1313 = vshrl.u32 %v1295, %v1311
        %v1314 = vor.u32 %v1312, %v1313
        %v1315 = vsub.s32 4294967266, %v1310
        %v1316 = vadd.s32 %v1315, 127
        %v1317 = vshll.u32 %v1316, 23
        %v1318 = vor.u32 4788187, %v1317
        %v1319 = vand.u32 2147483647, %v1318
        %v1321 = vcvt.s32.f32 %v1314
        %v1322 = vmul.f32 %v1321, %v1319
        %v1323 = vxor.u32 %v1322, 2147483648
        %v1324 = vsel %vm1241, %v1323, %v1322
        %v1325 = vsub.s32 4, %v1301
        %v1326 = vsel %vm1241, %v1325, %v1301
        %v1327 = vsel %vm1240, %v1135, %v1324
        %v1328 = vsel %vm1240, 0, %v1326
        %v1329 = vcosq.f32.pop %v1327
        %v1330 = vsinq.f32.pop %v1327
        %vm1331 = vweird.f32 %v1135
        %v1332 = vand.u32 %v1328, 3
        %vm1333 = vcmp.lt.s32.totalorder %v1332, 2
        %vm1334 = vcmp.eq.s32.totalorder %v1332, 0
        %v1335 = vxor.u32 %v1330, 2147483648
        %v1336 = vsel %vm1334, %v1329, %v1335
        %vm1337 = vcmp.eq.s32.totalorder %v1332, 2
        %v1338 = vxor.u32 %v1329, 2147483648
        %v1339 = vsel %vm1337, %v1338, %v1330
        %v1340 = vsel %vm1333, %v1336, %v1339
        %v1341 = vsel %vm1331, nan, %v1340
        %v1342 = vadd.f32 %v1238, 0.0
        %v1343 = vadd.f32 %v1341, 0.0
        %s1344 = sld [smem:[#allocation6 + $0x5]]
        %v1345 = vstv %s1344
        %v1346 = vadd.f32 %v1130, %v1345
        %v1347 = vadd.f32 %v1131, %v1345
        %v1348 = vand.u32 2147483647, %v1346
        %vm1349 = vcmp.le.f32.partialorder %v1348, 0.7853982
        %vm1350 = vcmp.lt.s32.totalorder %v1346, 0
        %v1351 = vand.u32 %v1346, 2139095040
        %v1352 = vshrl.u32 %v1351, 23
        %v1353 = vsub.s32 %v1352, 127
        %v1354 = vand.u32 2147483647, %v1346
        %v1355 = vand.u32 %v1354, 8388607
        %v1356 = vor.u32 %v1355, 8388608
        %v1357 = vsub.s32 0, %v1356
        %v1358 = vadd.s32 %v1353, 1
        %vm1359 = vcmp.gt.s32.totalorder %v1358, 0
        %v1360 = vsel %vm1359, %v1358, 0
        %v1361 = vshrl.u32 %v1360, 5
        %v1362 = vand.u32 %v1360, 31
        %v1363 = vsub.s32 32, %v1362
        %v1364 = vshrl.u32 683565275, %v1363
        %v1365 = vshll.u32 683565275, %v1362
        %v1366 = vshrl.u32 2475754826, %v1363
        %v1367 = vor.u32 %v1365, %v1366
        %v1368 = vshll.u32 2475754826, %v1362
        %v1369 = vshrl.u32 2131351028, %v1363
        %v1370 = vor.u32 %v1368, %v1369
        %v1371 = vshll.u32 2131351028, %v1362
        %v1372 = vshrl.u32 2102212464, %v1363
        %v1373 = vor.u32 %v1371, %v1372
        %v1374 = vshll.u32 2102212464, %v1362
        %v1375 = vshrl.u32 920167782, %v1363
        %v1376 = vor.u32 %v1374, %v1375
        %v1377 = vshll.u32 920167782, %v1362
        %v1378 = vshrl.u32 1326507024, %v1363
        %v1379 = vor.u32 %v1377, %v1378
        %vm1380 = vcmp.lt.s32.totalorder %v1361, 1
        %vm1381 = vcmp.lt.s32.totalorder %v1361, 2
        %vm1382 = vcmp.lt.s32.totalorder %v1361, 3
        %vm1383 = vcmp.lt.s32.totalorder %v1361, 4
        %v1384 = vsel %vm1380, %v1364, %v1367
        %v1385 = vsel %vm1383, %v1373, 2102212464
        %v1386 = vsel %vm1382, %v1370, %v1385
        %v1387 = vsel %vm1381, %v1384, %v1386
        %v1388 = vsel %vm1380, %v1367, %v1370
        %v1389 = vsel %vm1383, %v1376, 920167782
        %v1390 = vsel %vm1382, %v1373, %v1389
        %v1391 = vsel %vm1381, %v1388, %v1390
        %v1392 = vsel %vm1380, %v1370, %v1373
        %v1393 = vsel %vm1383, %v1379, 1326507024
        %v1394 = vsel %vm1382, %v1376, %v1393
        %v1395 = vsel %vm1381, %v1392, %v1394
        %v1396 = vshll.u32 %v1356, 8
        %v1397 = vmul.u32.u64.compose %v1396, %v1395
        %v1398 = vextract.low.u32 %v1397
        %v1399 = vextract.high.u32 %v1397
        %v1400 = vmul.u32.u64.compose %v1396, %v1391
        %v1401 = vextract.low.u32 %v1400
        %v1402 = vextract.high.u32 %v1400
        %v1403 = vmul.u32 %v1396, %v1387
        %v1404 = vadd.s32 %v1399, %v1401
        %vm1405 = vc.u32 %v1399, %v1401
        %v1406 = vadd.s32 %v1402, 1
        %v1407 = vsel %vm1405, %v1406, %v1402
        %v1408 = vadd.s32 %v1403, %v1407
        %v1409 = vadd.s32 %v1408, 536870912
        %v1410 = vshrl.u32 %v1409, 30
        %v1411 = vshll.u32 %v1410, 30
        %v1412 = vsub.s32 %v1408, %v1411
        %vm1413 = vcmp.lt.s32.totalorder %v1412, 0
        %v1414 = vsub.s32 0, %v1412
        %v1415 = vsel %vm1413, %v1414, %v1412
        %v1416 = vclz %v1415
        %v1417 = vsub.s32 %v1416, 2
        %vm1418 = vcmp.gt.s32.totalorder 0, %v1417
        %v1419 = vsel %vm1418, 0, %v1417
        %v1420 = vsub.s32 32, %v1419
        %v1421 = vshll.u32 %v1412, %v1419
        %v1422 = vshrl.u32 %v1404, %v1420
        %v1423 = vor.u32 %v1421, %v1422
        %v1424 = vsub.s32 4294967266, %v1419
        %v1425 = vadd.s32 %v1424, 127
        %v1426 = vshll.u32 %v1425, 23
        %v1427 = vor.u32 4788187, %v1426
        %v1428 = vand.u32 2147483647, %v1427
        %v1430 = vcvt.s32.f32 %v1423
        %v1431 = vmul.f32 %v1430, %v1428
        %v1432 = vxor.u32 %v1431, 2147483648
        %v1433 = vsel %vm1350, %v1432, %v1431
        %v1434 = vsub.s32 4, %v1410
        %v1435 = vsel %vm1350, %v1434, %v1410
        %v1436 = vsel %vm1349, %v1346, %v1433
        %v1437 = vsel %vm1349, 0, %v1435
        %v1438 = vcosq.f32.pop %v1436
        %v1439 = vsinq.f32.pop %v1436
        %vm1440 = vweird.f32 %v1346
        %v1441 = vand.u32 %v1437, 3
        %vm1442 = vcmp.lt.s32.totalorder %v1441, 2
        %vm1443 = vcmp.eq.s32.totalorder %v1441, 0
        %v1444 = vxor.u32 %v1439, 2147483648
        %v1445 = vsel %vm1443, %v1438, %v1444
        %vm1446 = vcmp.eq.s32.totalorder %v1441, 2
        %v1447 = vxor.u32 %v1438, 2147483648
        %v1448 = vsel %vm1446, %v1447, %v1439
        %v1449 = vsel %vm1442, %v1445, %v1448
        %v1450 = vsel %vm1440, nan, %v1449
        %v1451 = vand.u32 2147483647, %v1347
        %vm1452 = vcmp.le.f32.partialorder %v1451, 0.7853982
        %vm1453 = vcmp.lt.s32.totalorder %v1347, 0
        %v1454 = vand.u32 %v1347, 2139095040
        %v1455 = vshrl.u32 %v1454, 23
        %v1456 = vsub.s32 %v1455, 127
        %v1457 = vand.u32 2147483647, %v1347
        %v1458 = vand.u32 %v1457, 8388607
        %v1459 = vor.u32 %v1458, 8388608
        %v1460 = vsub.s32 0, %v1459
        %v1461 = vadd.s32 %v1456, 1
        %vm1462 = vcmp.gt.s32.totalorder %v1461, 0
        %v1463 = vsel %vm1462, %v1461, 0
        %v1464 = vshrl.u32 %v1463, 5
        %v1465 = vand.u32 %v1463, 31
        %v1466 = vsub.s32 32, %v1465
        %v1467 = vshrl.u32 683565275, %v1466
        %v1468 = vshll.u32 683565275, %v1465
        %v1469 = vshrl.u32 2475754826, %v1466
        %v1470 = vor.u32 %v1468, %v1469
        %v1471 = vshll.u32 2475754826, %v1465
        %v1472 = vshrl.u32 2131351028, %v1466
        %v1473 = vor.u32 %v1471, %v1472
        %v1474 = vshll.u32 2131351028, %v1465
        %v1475 = vshrl.u32 2102212464, %v1466
        %v1476 = vor.u32 %v1474, %v1475
        %v1477 = vshll.u32 2102212464, %v1465
        %v1478 = vshrl.u32 920167782, %v1466
        %v1479 = vor.u32 %v1477, %v1478
        %v1480 = vshll.u32 920167782, %v1465
        %v1481 = vshrl.u32 1326507024, %v1466
        %v1482 = vor.u32 %v1480, %v1481
        %vm1483 = vcmp.lt.s32.totalorder %v1464, 1
        %vm1484 = vcmp.lt.s32.totalorder %v1464, 2
        %vm1485 = vcmp.lt.s32.totalorder %v1464, 3
        %vm1486 = vcmp.lt.s32.totalorder %v1464, 4
        %v1487 = vsel %vm1483, %v1467, %v1470
        %v1488 = vsel %vm1486, %v1476, 2102212464
        %v1489 = vsel %vm1485, %v1473, %v1488
        %v1490 = vsel %vm1484, %v1487, %v1489
        %v1491 = vsel %vm1483, %v1470, %v1473
        %v1492 = vsel %vm1486, %v1479, 920167782
        %v1493 = vsel %vm1485, %v1476, %v1492
        %v1494 = vsel %vm1484, %v1491, %v1493
        %v1495 = vsel %vm1483, %v1473, %v1476
        %v1496 = vsel %vm1486, %v1482, 1326507024
        %v1497 = vsel %vm1485, %v1479, %v1496
        %v1498 = vsel %vm1484, %v1495, %v1497
        %v1499 = vshll.u32 %v1459, 8
        %v1500 = vmul.u32.u64.compose %v1499, %v1498
        %v1501 = vextract.low.u32 %v1500
        %v1502 = vextract.high.u32 %v1500
        %v1503 = vmul.u32.u64.compose %v1499, %v1494
        %v1504 = vextract.low.u32 %v1503
        %v1505 = vextract.high.u32 %v1503
        %v1506 = vmul.u32 %v1499, %v1490
        %v1507 = vadd.s32 %v1502, %v1504
        %vm1508 = vc.u32 %v1502, %v1504
        %v1509 = vadd.s32 %v1505, 1
        %v1510 = vsel %vm1508, %v1509, %v1505
        %v1511 = vadd.s32 %v1506, %v1510
        %v1512 = vadd.s32 %v1511, 536870912
        %v1513 = vshrl.u32 %v1512, 30
        %v1514 = vshll.u32 %v1513, 30
        %v1515 = vsub.s32 %v1511, %v1514
        %vm1516 = vcmp.lt.s32.totalorder %v1515, 0
        %v1517 = vsub.s32 0, %v1515
        %v1518 = vsel %vm1516, %v1517, %v1515
        %v1519 = vclz %v1518
        %v1520 = vsub.s32 %v1519, 2
        %vm1521 = vcmp.gt.s32.totalorder 0, %v1520
        %v1522 = vsel %vm1521, 0, %v1520
        %v1523 = vsub.s32 32, %v1522
        %v1524 = vshll.u32 %v1515, %v1522
        %v1525 = vshrl.u32 %v1507, %v1523
        %v1526 = vor.u32 %v1524, %v1525
        %v1527 = vsub.s32 4294967266, %v1522
        %v1528 = vadd.s32 %v1527, 127
        %v1529 = vshll.u32 %v1528, 23
        %v1530 = vor.u32 4788187, %v1529
        %v1531 = vand.u32 2147483647, %v1530
        %v1533 = vcvt.s32.f32 %v1526
        %v1534 = vmul.f32 %v1533, %v1531
        %v1535 = vxor.u32 %v1534, 2147483648
        %v1536 = vsel %vm1453, %v1535, %v1534
        %v1537 = vsub.s32 4, %v1513
        %v1538 = vsel %vm1453, %v1537, %v1513
        %v1539 = vsel %vm1452, %v1347, %v1536
        %v1540 = vsel %vm1452, 0, %v1538
        %v1541 = vcosq.f32.pop %v1539
        %v1542 = vsinq.f32.pop %v1539
        %vm1543 = vweird.f32 %v1347
        %v1544 = vand.u32 %v1540, 3
        %vm1545 = vcmp.lt.s32.totalorder %v1544, 2
        %vm1546 = vcmp.eq.s32.totalorder %v1544, 0
        %v1547 = vxor.u32 %v1542, 2147483648
        %v1548 = vsel %vm1546, %v1541, %v1547
        %vm1549 = vcmp.eq.s32.totalorder %v1544, 2
        %v1550 = vxor.u32 %v1541, 2147483648
        %v1551 = vsel %vm1549, %v1550, %v1542
        %v1552 = vsel %vm1545, %v1548, %v1551
        %v1553 = vsel %vm1543, nan, %v1552
        %1556 = vrot.lane.b32.xlu0 %v1450, 127
        %v1557 = vpop.permute.xlu0 %1556
        %1558 = vrot.lane.b32.xlu0 %v1553, 127
        %v1559 = vpop.permute.xlu0 %1558
        %v1562 = vadd.f32 %v1342, %v1557
        %v1563 = vadd.f32 %v1343, %v1559
        %v1564 = vld [vmem:[%s1129 + $0x1] sm:$0xff]
        %v1565 = vld [vmem:[%s1129 + $0x9] sm:$0x7f]
        %s1566 = sld [smem:[#allocation6 + $0x6]]
        %v1567 = vstv %s1566
        %v1568 = vadd.f32 %v1564, %v1567
        %v1569 = vadd.f32 %v1565, %v1567
        %v1570 = vand.u32 2147483647, %v1568
        %vm1571 = vcmp.le.f32.partialorder %v1570, 0.7853982
        %vm1572 = vcmp.lt.s32.totalorder %v1568, 0
        %v1573 = vand.u32 %v1568, 2139095040
        %v1574 = vshrl.u32 %v1573, 23
        %v1575 = vsub.s32 %v1574, 127
        %v1576 = vand.u32 2147483647, %v1568
        %v1577 = vand.u32 %v1576, 8388607
        %v1578 = vor.u32 %v1577, 8388608
        %v1579 = vsub.s32 0, %v1578
        %v1580 = vadd.s32 %v1575, 1
        %vm1581 = vcmp.gt.s32.totalorder %v1580, 0
        %v1582 = vsel %vm1581, %v1580, 0
        %v1583 = vshrl.u32 %v1582, 5
        %v1584 = vand.u32 %v1582, 31
        %v1585 = vsub.s32 32, %v1584
        %v1586 = vshrl.u32 683565275, %v1585
        %v1587 = vshll.u32 683565275, %v1584
        %v1588 = vshrl.u32 2475754826, %v1585
        %v1589 = vor.u32 %v1587, %v1588
        %v1590 = vshll.u32 2475754826, %v1584
        %v1591 = vshrl.u32 2131351028, %v1585
        %v1592 = vor.u32 %v1590, %v1591
        %v1593 = vshll.u32 2131351028, %v1584
        %v1594 = vshrl.u32 2102212464, %v1585
        %v1595 = vor.u32 %v1593, %v1594
        %v1596 = vshll.u32 2102212464, %v1584
        %v1597 = vshrl.u32 920167782, %v1585
        %v1598 = vor.u32 %v1596, %v1597
        %v1599 = vshll.u32 920167782, %v1584
        %v1600 = vshrl.u32 1326507024, %v1585
        %v1601 = vor.u32 %v1599, %v1600
        %vm1602 = vcmp.lt.s32.totalorder %v1583, 1
        %vm1603 = vcmp.lt.s32.totalorder %v1583, 2
        %vm1604 = vcmp.lt.s32.totalorder %v1583, 3
        %vm1605 = vcmp.lt.s32.totalorder %v1583, 4
        %v1606 = vsel %vm1602, %v1586, %v1589
        %v1607 = vsel %vm1605, %v1595, 2102212464
        %v1608 = vsel %vm1604, %v1592, %v1607
        %v1609 = vsel %vm1603, %v1606, %v1608
        %v1610 = vsel %vm1602, %v1589, %v1592
        %v1611 = vsel %vm1605, %v1598, 920167782
        %v1612 = vsel %vm1604, %v1595, %v1611
        %v1613 = vsel %vm1603, %v1610, %v1612
        %v1614 = vsel %vm1602, %v1592, %v1595
        %v1615 = vsel %vm1605, %v1601, 1326507024
        %v1616 = vsel %vm1604, %v1598, %v1615
        %v1617 = vsel %vm1603, %v1614, %v1616
        %v1618 = vshll.u32 %v1578, 8
        %v1619 = vmul.u32.u64.compose %v1618, %v1617
        %v1620 = vextract.low.u32 %v1619
        %v1621 = vextract.high.u32 %v1619
        %v1622 = vmul.u32.u64.compose %v1618, %v1613
        %v1623 = vextract.low.u32 %v1622
        %v1624 = vextract.high.u32 %v1622
        %v1625 = vmul.u32 %v1618, %v1609
        %v1626 = vadd.s32 %v1621, %v1623
        %vm1627 = vc.u32 %v1621, %v1623
        %v1628 = vadd.s32 %v1624, 1
        %v1629 = vsel %vm1627, %v1628, %v1624
        %v1630 = vadd.s32 %v1625, %v1629
        %v1631 = vadd.s32 %v1630, 536870912
        %v1632 = vshrl.u32 %v1631, 30
        %v1633 = vshll.u32 %v1632, 30
        %v1634 = vsub.s32 %v1630, %v1633
        %vm1635 = vcmp.lt.s32.totalorder %v1634, 0
        %v1636 = vsub.s32 0, %v1634
        %v1637 = vsel %vm1635, %v1636, %v1634
        %v1638 = vclz %v1637
        %v1639 = vsub.s32 %v1638, 2
        %vm1640 = vcmp.gt.s32.totalorder 0, %v1639
        %v1641 = vsel %vm1640, 0, %v1639
        %v1642 = vsub.s32 32, %v1641
        %v1643 = vshll.u32 %v1634, %v1641
        %v1644 = vshrl.u32 %v1626, %v1642
        %v1645 = vor.u32 %v1643, %v1644
        %v1646 = vsub.s32 4294967266, %v1641
        %v1647 = vadd.s32 %v1646, 127
        %v1648 = vshll.u32 %v1647, 23
        %v1649 = vor.u32 4788187, %v1648
        %v1650 = vand.u32 2147483647, %v1649
        %v1652 = vcvt.s32.f32 %v1645
        %v1653 = vmul.f32 %v1652, %v1650
        %v1654 = vxor.u32 %v1653, 2147483648
        %v1655 = vsel %vm1572, %v1654, %v1653
        %v1656 = vsub.s32 4, %v1632
        %v1657 = vsel %vm1572, %v1656, %v1632
        %v1658 = vsel %vm1571, %v1568, %v1655
        %v1659 = vsel %vm1571, 0, %v1657
        %v1660 = vcosq.f32.pop %v1658
        %v1661 = vsinq.f32.pop %v1658
        %vm1662 = vweird.f32 %v1568
        %v1663 = vand.u32 %v1659, 3
        %vm1664 = vcmp.lt.s32.totalorder %v1663, 2
        %vm1665 = vcmp.eq.s32.totalorder %v1663, 0
        %v1666 = vxor.u32 %v1661, 2147483648
        %v1667 = vsel %vm1665, %v1660, %v1666
        %vm1668 = vcmp.eq.s32.totalorder %v1663, 2
        %v1669 = vxor.u32 %v1660, 2147483648
        %v1670 = vsel %vm1668, %v1669, %v1661
        %v1671 = vsel %vm1664, %v1667, %v1670
        %v1672 = vsel %vm1662, nan, %v1671
        %v1673 = vand.u32 2147483647, %v1569
        %vm1674 = vcmp.le.f32.partialorder %v1673, 0.7853982
        %vm1675 = vcmp.lt.s32.totalorder %v1569, 0
        %v1676 = vand.u32 %v1569, 2139095040
        %v1677 = vshrl.u32 %v1676, 23
        %v1678 = vsub.s32 %v1677, 127
        %v1679 = vand.u32 2147483647, %v1569
        %v1680 = vand.u32 %v1679, 8388607
        %v1681 = vor.u32 %v1680, 8388608
        %v1682 = vsub.s32 0, %v1681
        %v1683 = vadd.s32 %v1678, 1
        %vm1684 = vcmp.gt.s32.totalorder %v1683, 0
        %v1685 = vsel %vm1684, %v1683, 0
        %v1686 = vshrl.u32 %v1685, 5
        %v1687 = vand.u32 %v1685, 31
        %v1688 = vsub.s32 32, %v1687
        %v1689 = vshrl.u32 683565275, %v1688
        %v1690 = vshll.u32 683565275, %v1687
        %v1691 = vshrl.u32 2475754826, %v1688
        %v1692 = vor.u32 %v1690, %v1691
        %v1693 = vshll.u32 2475754826, %v1687
        %v1694 = vshrl.u32 2131351028, %v1688
        %v1695 = vor.u32 %v1693, %v1694
        %v1696 = vshll.u32 2131351028, %v1687
        %v1697 = vshrl.u32 2102212464, %v1688
        %v1698 = vor.u32 %v1696, %v1697
        %v1699 = vshll.u32 2102212464, %v1687
        %v1700 = vshrl.u32 920167782, %v1688
        %v1701 = vor.u32 %v1699, %v1700
        %v1702 = vshll.u32 920167782, %v1687
        %v1703 = vshrl.u32 1326507024, %v1688
        %v1704 = vor.u32 %v1702, %v1703
        %vm1705 = vcmp.lt.s32.totalorder %v1686, 1
        %vm1706 = vcmp.lt.s32.totalorder %v1686, 2
        %vm1707 = vcmp.lt.s32.totalorder %v1686, 3
        %vm1708 = vcmp.lt.s32.totalorder %v1686, 4
        %v1709 = vsel %vm1705, %v1689, %v1692
        %v1710 = vsel %vm1708, %v1698, 2102212464
        %v1711 = vsel %vm1707, %v1695, %v1710
        %v1712 = vsel %vm1706, %v1709, %v1711
        %v1713 = vsel %vm1705, %v1692, %v1695
        %v1714 = vsel %vm1708, %v1701, 920167782
        %v1715 = vsel %vm1707, %v1698, %v1714
        %v1716 = vsel %vm1706, %v1713, %v1715
        %v1717 = vsel %vm1705, %v1695, %v1698
        %v1718 = vsel %vm1708, %v1704, 1326507024
        %v1719 = vsel %vm1707, %v1701, %v1718
        %v1720 = vsel %vm1706, %v1717, %v1719
        %v1721 = vshll.u32 %v1681, 8
        %v1722 = vmul.u32.u64.compose %v1721, %v1720
        %v1723 = vextract.low.u32 %v1722
        %v1724 = vextract.high.u32 %v1722
        %v1725 = vmul.u32.u64.compose %v1721, %v1716
        %v1726 = vextract.low.u32 %v1725
        %v1727 = vextract.high.u32 %v1725
        %v1728 = vmul.u32 %v1721, %v1712
        %v1729 = vadd.s32 %v1724, %v1726
        %vm1730 = vc.u32 %v1724, %v1726
        %v1731 = vadd.s32 %v1727, 1
        %v1732 = vsel %vm1730, %v1731, %v1727
        %v1733 = vadd.s32 %v1728, %v1732
        %v1734 = vadd.s32 %v1733, 536870912
        %v1735 = vshrl.u32 %v1734, 30
        %v1736 = vshll.u32 %v1735, 30
        %v1737 = vsub.s32 %v1733, %v1736
        %vm1738 = vcmp.lt.s32.totalorder %v1737, 0
        %v1739 = vsub.s32 0, %v1737
        %v1740 = vsel %vm1738, %v1739, %v1737
        %v1741 = vclz %v1740
        %v1742 = vsub.s32 %v1741, 2
        %vm1743 = vcmp.gt.s32.totalorder 0, %v1742
        %v1744 = vsel %vm1743, 0, %v1742
        %v1745 = vsub.s32 32, %v1744
        %v1746 = vshll.u32 %v1737, %v1744
        %v1747 = vshrl.u32 %v1729, %v1745
        %v1748 = vor.u32 %v1746, %v1747
        %v1749 = vsub.s32 4294967266, %v1744
        %v1750 = vadd.s32 %v1749, 127
        %v1751 = vshll.u32 %v1750, 23
        %v1752 = vor.u32 4788187, %v1751
        %v1753 = vand.u32 2147483647, %v1752
        %v1755 = vcvt.s32.f32 %v1748
        %v1756 = vmul.f32 %v1755, %v1753
        %v1757 = vxor.u32 %v1756, 2147483648
        %v1758 = vsel %vm1675, %v1757, %v1756
        %v1759 = vsub.s32 4, %v1735
        %v1760 = vsel %vm1675, %v1759, %v1735
        %v1761 = vsel %vm1674, %v1569, %v1758
        %v1762 = vsel %vm1674, 0, %v1760
        %v1763 = vcosq.f32.pop %v1761
        %v1764 = vsinq.f32.pop %v1761
        %vm1765 = vweird.f32 %v1569
        %v1766 = vand.u32 %v1762, 3
        %vm1767 = vcmp.lt.s32.totalorder %v1766, 2
        %vm1768 = vcmp.eq.s32.totalorder %v1766, 0
        %v1769 = vxor.u32 %v1764, 2147483648
        %v1770 = vsel %vm1768, %v1763, %v1769
        %vm1771 = vcmp.eq.s32.totalorder %v1766, 2
        %v1772 = vxor.u32 %v1763, 2147483648
        %v1773 = vsel %vm1771, %v1772, %v1764
        %v1774 = vsel %vm1767, %v1770, %v1773
        %v1775 = vsel %vm1765, nan, %v1774
        %v1776 = vadd.f32 %v1562, %v1672
        %v1777 = vadd.f32 %v1563, %v1775
        %s1778 = sld [smem:[#allocation6 + $0x7]]
        %v1779 = vstv %s1778
        %v1780 = vadd.f32 %v1564, %v1779
        %v1781 = vadd.f32 %v1565, %v1779
        %v1782 = vand.u32 2147483647, %v1780
        %vm1783 = vcmp.le.f32.partialorder %v1782, 0.7853982
        %vm1784 = vcmp.lt.s32.totalorder %v1780, 0
        %v1785 = vand.u32 %v1780, 2139095040
        %v1786 = vshrl.u32 %v1785, 23
        %v1787 = vsub.s32 %v1786, 127
        %v1788 = vand.u32 2147483647, %v1780
        %v1789 = vand.u32 %v1788, 8388607
        %v1790 = vor.u32 %v1789, 8388608
        %v1791 = vsub.s32 0, %v1790
        %v1792 = vadd.s32 %v1787, 1
        %vm1793 = vcmp.gt.s32.totalorder %v1792, 0
        %v1794 = vsel %vm1793, %v1792, 0
        %v1795 = vshrl.u32 %v1794, 5
        %v1796 = vand.u32 %v1794, 31
        %v1797 = vsub.s32 32, %v1796
        %v1798 = vshrl.u32 683565275, %v1797
        %v1799 = vshll.u32 683565275, %v1796
        %v1800 = vshrl.u32 2475754826, %v1797
        %v1801 = vor.u32 %v1799, %v1800
        %v1802 = vshll.u32 2475754826, %v1796
        %v1803 = vshrl.u32 2131351028, %v1797
        %v1804 = vor.u32 %v1802, %v1803
        %v1805 = vshll.u32 2131351028, %v1796
        %v1806 = vshrl.u32 2102212464, %v1797
        %v1807 = vor.u32 %v1805, %v1806
        %v1808 = vshll.u32 2102212464, %v1796
        %v1809 = vshrl.u32 920167782, %v1797
        %v1810 = vor.u32 %v1808, %v1809
        %v1811 = vshll.u32 920167782, %v1796
        %v1812 = vshrl.u32 1326507024, %v1797
        %v1813 = vor.u32 %v1811, %v1812
        %vm1814 = vcmp.lt.s32.totalorder %v1795, 1
        %vm1815 = vcmp.lt.s32.totalorder %v1795, 2
        %vm1816 = vcmp.lt.s32.totalorder %v1795, 3
        %vm1817 = vcmp.lt.s32.totalorder %v1795, 4
        %v1818 = vsel %vm1814, %v1798, %v1801
        %v1819 = vsel %vm1817, %v1807, 2102212464
        %v1820 = vsel %vm1816, %v1804, %v1819
        %v1821 = vsel %vm1815, %v1818, %v1820
        %v1822 = vsel %vm1814, %v1801, %v1804
        %v1823 = vsel %vm1817, %v1810, 920167782
        %v1824 = vsel %vm1816, %v1807, %v1823
        %v1825 = vsel %vm1815, %v1822, %v1824
        %v1826 = vsel %vm1814, %v1804, %v1807
        %v1827 = vsel %vm1817, %v1813, 1326507024
        %v1828 = vsel %vm1816, %v1810, %v1827
        %v1829 = vsel %vm1815, %v1826, %v1828
        %v1830 = vshll.u32 %v1790, 8
        %v1831 = vmul.u32.u64.compose %v1830, %v1829
        %v1832 = vextract.low.u32 %v1831
        %v1833 = vextract.high.u32 %v1831
        %v1834 = vmul.u32.u64.compose %v1830, %v1825
        %v1835 = vextract.low.u32 %v1834
        %v1836 = vextract.high.u32 %v1834
        %v1837 = vmul.u32 %v1830, %v1821
        %v1838 = vadd.s32 %v1833, %v1835
        %vm1839 = vc.u32 %v1833, %v1835
        %v1840 = vadd.s32 %v1836, 1
        %v1841 = vsel %vm1839, %v1840, %v1836
        %v1842 = vadd.s32 %v1837, %v1841
        %v1843 = vadd.s32 %v1842, 536870912
        %v1844 = vshrl.u32 %v1843, 30
        %v1845 = vshll.u32 %v1844, 30
        %v1846 = vsub.s32 %v1842, %v1845
        %vm1847 = vcmp.lt.s32.totalorder %v1846, 0
        %v1848 = vsub.s32 0, %v1846
        %v1849 = vsel %vm1847, %v1848, %v1846
        %v1850 = vclz %v1849
        %v1851 = vsub.s32 %v1850, 2
        %vm1852 = vcmp.gt.s32.totalorder 0, %v1851
        %v1853 = vsel %vm1852, 0, %v1851
        %v1854 = vsub.s32 32, %v1853
        %v1855 = vshll.u32 %v1846, %v1853
        %v1856 = vshrl.u32 %v1838, %v1854
        %v1857 = vor.u32 %v1855, %v1856
        %v1858 = vsub.s32 4294967266, %v1853
        %v1859 = vadd.s32 %v1858, 127
        %v1860 = vshll.u32 %v1859, 23
        %v1861 = vor.u32 4788187, %v1860
        %v1862 = vand.u32 2147483647, %v1861
        %v1864 = vcvt.s32.f32 %v1857
        %v1865 = vmul.f32 %v1864, %v1862
        %v1866 = vxor.u32 %v1865, 2147483648
        %v1867 = vsel %vm1784, %v1866, %v1865
        %v1868 = vsub.s32 4, %v1844
        %v1869 = vsel %vm1784, %v1868, %v1844
        %v1870 = vsel %vm1783, %v1780, %v1867
        %v1871 = vsel %vm1783, 0, %v1869
        %v1872 = vcosq.f32.pop %v1870
        %v1873 = vsinq.f32.pop %v1870
        %vm1874 = vweird.f32 %v1780
        %v1875 = vand.u32 %v1871, 3
        %vm1876 = vcmp.lt.s32.totalorder %v1875, 2
        %vm1877 = vcmp.eq.s32.totalorder %v1875, 0
        %v1878 = vxor.u32 %v1873, 2147483648
        %v1879 = vsel %vm1877, %v1872, %v1878
        %vm1880 = vcmp.eq.s32.totalorder %v1875, 2
        %v1881 = vxor.u32 %v1872, 2147483648
        %v1882 = vsel %vm1880, %v1881, %v1873
        %v1883 = vsel %vm1876, %v1879, %v1882
        %v1884 = vsel %vm1874, nan, %v1883
        %v1885 = vand.u32 2147483647, %v1781
        %vm1886 = vcmp.le.f32.partialorder %v1885, 0.7853982
        %vm1887 = vcmp.lt.s32.totalorder %v1781, 0
        %v1888 = vand.u32 %v1781, 2139095040
        %v1889 = vshrl.u32 %v1888, 23
        %v1890 = vsub.s32 %v1889, 127
        %v1891 = vand.u32 2147483647, %v1781
        %v1892 = vand.u32 %v1891, 8388607
        %v1893 = vor.u32 %v1892, 8388608
        %v1894 = vsub.s32 0, %v1893
        %v1895 = vadd.s32 %v1890, 1
        %vm1896 = vcmp.gt.s32.totalorder %v1895, 0
        %v1897 = vsel %vm1896, %v1895, 0
        %v1898 = vshrl.u32 %v1897, 5
        %v1899 = vand.u32 %v1897, 31
        %v1900 = vsub.s32 32, %v1899
        %v1901 = vshrl.u32 683565275, %v1900
        %v1902 = vshll.u32 683565275, %v1899
        %v1903 = vshrl.u32 2475754826, %v1900
        %v1904 = vor.u32 %v1902, %v1903
        %v1905 = vshll.u32 2475754826, %v1899
        %v1906 = vshrl.u32 2131351028, %v1900
        %v1907 = vor.u32 %v1905, %v1906
        %v1908 = vshll.u32 2131351028, %v1899
        %v1909 = vshrl.u32 2102212464, %v1900
        %v1910 = vor.u32 %v1908, %v1909
        %v1911 = vshll.u32 2102212464, %v1899
        %v1912 = vshrl.u32 920167782, %v1900
        %v1913 = vor.u32 %v1911, %v1912
        %v1914 = vshll.u32 920167782, %v1899
        %v1915 = vshrl.u32 1326507024, %v1900
        %v1916 = vor.u32 %v1914, %v1915
        %vm1917 = vcmp.lt.s32.totalorder %v1898, 1
        %vm1918 = vcmp.lt.s32.totalorder %v1898, 2
        %vm1919 = vcmp.lt.s32.totalorder %v1898, 3
        %vm1920 = vcmp.lt.s32.totalorder %v1898, 4
        %v1921 = vsel %vm1917, %v1901, %v1904
        %v1922 = vsel %vm1920, %v1910, 2102212464
        %v1923 = vsel %vm1919, %v1907, %v1922
        %v1924 = vsel %vm1918, %v1921, %v1923
        %v1925 = vsel %vm1917, %v1904, %v1907
        %v1926 = vsel %vm1920, %v1913, 920167782
        %v1927 = vsel %vm1919, %v1910, %v1926
        %v1928 = vsel %vm1918, %v1925, %v1927
        %v1929 = vsel %vm1917, %v1907, %v1910
        %v1930 = vsel %vm1920, %v1916, 1326507024
        %v1931 = vsel %vm1919, %v1913, %v1930
        %v1932 = vsel %vm1918, %v1929, %v1931
        %v1933 = vshll.u32 %v1893, 8
        %v1934 = vmul.u32.u64.compose %v1933, %v1932
        %v1935 = vextract.low.u32 %v1934
        %v1936 = vextract.high.u32 %v1934
        %v1937 = vmul.u32.u64.compose %v1933, %v1928
        %v1938 = vextract.low.u32 %v1937
        %v1939 = vextract.high.u32 %v1937
        %v1940 = vmul.u32 %v1933, %v1924
        %v1941 = vadd.s32 %v1936, %v1938
        %vm1942 = vc.u32 %v1936, %v1938
        %v1943 = vadd.s32 %v1939, 1
        %v1944 = vsel %vm1942, %v1943, %v1939
        %v1945 = vadd.s32 %v1940, %v1944
        %v1946 = vadd.s32 %v1945, 536870912
        %v1947 = vshrl.u32 %v1946, 30
        %v1948 = vshll.u32 %v1947, 30
        %v1949 = vsub.s32 %v1945, %v1948
        %vm1950 = vcmp.lt.s32.totalorder %v1949, 0
        %v1951 = vsub.s32 0, %v1949
        %v1952 = vsel %vm1950, %v1951, %v1949
        %v1953 = vclz %v1952
        %v1954 = vsub.s32 %v1953, 2
        %vm1955 = vcmp.gt.s32.totalorder 0, %v1954
        %v1956 = vsel %vm1955, 0, %v1954
        %v1957 = vsub.s32 32, %v1956
        %v1958 = vshll.u32 %v1949, %v1956
        %v1959 = vshrl.u32 %v1941, %v1957
        %v1960 = vor.u32 %v1958, %v1959
        %v1961 = vsub.s32 4294967266, %v1956
        %v1962 = vadd.s32 %v1961, 127
        %v1963 = vshll.u32 %v1962, 23
        %v1964 = vor.u32 4788187, %v1963
        %v1965 = vand.u32 2147483647, %v1964
        %v1967 = vcvt.s32.f32 %v1960
        %v1968 = vmul.f32 %v1967, %v1965
        %v1969 = vxor.u32 %v1968, 2147483648
        %v1970 = vsel %vm1887, %v1969, %v1968
        %v1971 = vsub.s32 4, %v1947
        %v1972 = vsel %vm1887, %v1971, %v1947
        %v1973 = vsel %vm1886, %v1781, %v1970
        %v1974 = vsel %vm1886, 0, %v1972
        %v1975 = vcosq.f32.pop %v1973
        %v1976 = vsinq.f32.pop %v1973
        %vm1977 = vweird.f32 %v1781
        %v1978 = vand.u32 %v1974, 3
        %vm1979 = vcmp.lt.s32.totalorder %v1978, 2
        %vm1980 = vcmp.eq.s32.totalorder %v1978, 0
        %v1981 = vxor.u32 %v1976, 2147483648
        %v1982 = vsel %vm1980, %v1975, %v1981
        %vm1983 = vcmp.eq.s32.totalorder %v1978, 2
        %v1984 = vxor.u32 %v1975, 2147483648
        %v1985 = vsel %vm1983, %v1984, %v1976
        %v1986 = vsel %vm1979, %v1982, %v1985
        %v1987 = vsel %vm1977, nan, %v1986
        %1990 = vrot.lane.b32.xlu0 %v1884, 127
        %v1991 = vpop.permute.xlu0 %1990
        %1992 = vrot.lane.b32.xlu0 %v1987, 127
        %v1993 = vpop.permute.xlu0 %1992
        %v1996 = vadd.f32 %v1776, %v1991
        %v1997 = vadd.f32 %v1777, %v1993
        %s1998 = scalar_lea.vmem [#allocation2], 16
        %1999 = vst.msk [vmem:[%s1998] sm:$0xff] %vm1125, %v1996
        %2000 = vst.msk [vmem:[%s1998 + $0x8] sm:$0x7f] %vm1127, %v1997
        %s2001 = scalar_lea.vmem %s214, 32 [#allocation3]
        %v2002 = vld [vmem:[%s2001] sm:$0xff]
        %v2003 = vld [vmem:[%s2001 + $0x8] sm:$0x7f]
        %s2004 = sld [smem:[#allocation6 + $0x8]]
        %v2005 = vstv %s2004
        %v2006 = vadd.f32 %v2002, %v2005
        %v2007 = vadd.f32 %v2003, %v2005
        %v2008 = vand.u32 2147483647, %v2006
        %vm2009 = vcmp.le.f32.partialorder %v2008, 0.7853982
        %vm2010 = vcmp.lt.s32.totalorder %v2006, 0
        %v2011 = vand.u32 %v2006, 2139095040
        %v2012 = vshrl.u32 %v2011, 23
        %v2013 = vsub.s32 %v2012, 127
        %v2014 = vand.u32 2147483647, %v2006
        %v2015 = vand.u32 %v2014, 8388607
        %v2016 = vor.u32 %v2015, 8388608
        %v2017 = vsub.s32 0, %v2016
        %v2018 = vadd.s32 %v2013, 1
        %vm2019 = vcmp.gt.s32.totalorder %v2018, 0
        %v2020 = vsel %vm2019, %v2018, 0
        %v2021 = vshrl.u32 %v2020, 5
        %v2022 = vand.u32 %v2020, 31
        %v2023 = vsub.s32 32, %v2022
        %v2024 = vshrl.u32 683565275, %v2023
        %v2025 = vshll.u32 683565275, %v2022
        %v2026 = vshrl.u32 2475754826, %v2023
        %v2027 = vor.u32 %v2025, %v2026
        %v2028 = vshll.u32 2475754826, %v2022
        %v2029 = vshrl.u32 2131351028, %v2023
        %v2030 = vor.u32 %v2028, %v2029
        %v2031 = vshll.u32 2131351028, %v2022
        %v2032 = vshrl.u32 2102212464, %v2023
        %v2033 = vor.u32 %v2031, %v2032
        %v2034 = vshll.u32 2102212464, %v2022
        %v2035 = vshrl.u32 920167782, %v2023
        %v2036 = vor.u32 %v2034, %v2035
        %v2037 = vshll.u32 920167782, %v2022
        %v2038 = vshrl.u32 1326507024, %v2023
        %v2039 = vor.u32 %v2037, %v2038
        %vm2040 = vcmp.lt.s32.totalorder %v2021, 1
        %vm2041 = vcmp.lt.s32.totalorder %v2021, 2
        %vm2042 = vcmp.lt.s32.totalorder %v2021, 3
        %vm2043 = vcmp.lt.s32.totalorder %v2021, 4
        %v2044 = vsel %vm2040, %v2024, %v2027
        %v2045 = vsel %vm2043, %v2033, 2102212464
        %v2046 = vsel %vm2042, %v2030, %v2045
        %v2047 = vsel %vm2041, %v2044, %v2046
        %v2048 = vsel %vm2040, %v2027, %v2030
        %v2049 = vsel %vm2043, %v2036, 920167782
        %v2050 = vsel %vm2042, %v2033, %v2049
        %v2051 = vsel %vm2041, %v2048, %v2050
        %v2052 = vsel %vm2040, %v2030, %v2033
        %v2053 = vsel %vm2043, %v2039, 1326507024
        %v2054 = vsel %vm2042, %v2036, %v2053
        %v2055 = vsel %vm2041, %v2052, %v2054
        %v2056 = vshll.u32 %v2016, 8
        %v2057 = vmul.u32.u64.compose %v2056, %v2055
        %v2058 = vextract.low.u32 %v2057
        %v2059 = vextract.high.u32 %v2057
        %v2060 = vmul.u32.u64.compose %v2056, %v2051
        %v2061 = vextract.low.u32 %v2060
        %v2062 = vextract.high.u32 %v2060
        %v2063 = vmul.u32 %v2056, %v2047
        %v2064 = vadd.s32 %v2059, %v2061
        %vm2065 = vc.u32 %v2059, %v2061
        %v2066 = vadd.s32 %v2062, 1
        %v2067 = vsel %vm2065, %v2066, %v2062
        %v2068 = vadd.s32 %v2063, %v2067
        %v2069 = vadd.s32 %v2068, 536870912
        %v2070 = vshrl.u32 %v2069, 30
        %v2071 = vshll.u32 %v2070, 30
        %v2072 = vsub.s32 %v2068, %v2071
        %vm2073 = vcmp.lt.s32.totalorder %v2072, 0
        %v2074 = vsub.s32 0, %v2072
        %v2075 = vsel %vm2073, %v2074, %v2072
        %v2076 = vclz %v2075
        %v2077 = vsub.s32 %v2076, 2
        %vm2078 = vcmp.gt.s32.totalorder 0, %v2077
        %v2079 = vsel %vm2078, 0, %v2077
        %v2080 = vsub.s32 32, %v2079
        %v2081 = vshll.u32 %v2072, %v2079
        %v2082 = vshrl.u32 %v2064, %v2080
        %v2083 = vor.u32 %v2081, %v2082
        %v2084 = vsub.s32 4294967266, %v2079
        %v2085 = vadd.s32 %v2084, 127
        %v2086 = vshll.u32 %v2085, 23
        %v2087 = vor.u32 4788187, %v2086
        %v2088 = vand.u32 2147483647, %v2087
        %v2090 = vcvt.s32.f32 %v2083
        %v2091 = vmul.f32 %v2090, %v2088
        %v2092 = vxor.u32 %v2091, 2147483648
        %v2093 = vsel %vm2010, %v2092, %v2091
        %v2094 = vsub.s32 4, %v2070
        %v2095 = vsel %vm2010, %v2094, %v2070
        %v2096 = vsel %vm2009, %v2006, %v2093
        %v2097 = vsel %vm2009, 0, %v2095
        %v2098 = vcosq.f32.pop %v2096
        %v2099 = vsinq.f32.pop %v2096
        %vm2100 = vweird.f32 %v2006
        %v2101 = vand.u32 %v2097, 3
        %vm2102 = vcmp.lt.s32.totalorder %v2101, 2
        %vm2103 = vcmp.eq.s32.totalorder %v2101, 0
        %v2104 = vxor.u32 %v2099, 2147483648
        %v2105 = vsel %vm2103, %v2098, %v2104
        %vm2106 = vcmp.eq.s32.totalorder %v2101, 2
        %v2107 = vxor.u32 %v2098, 2147483648
        %v2108 = vsel %vm2106, %v2107, %v2099
        %v2109 = vsel %vm2102, %v2105, %v2108
        %v2110 = vsel %vm2100, nan, %v2109
        %v2111 = vand.u32 2147483647, %v2007
        %vm2112 = vcmp.le.f32.partialorder %v2111, 0.7853982
        %vm2113 = vcmp.lt.s32.totalorder %v2007, 0
        %v2114 = vand.u32 %v2007, 2139095040
        %v2115 = vshrl.u32 %v2114, 23
        %v2116 = vsub.s32 %v2115, 127
        %v2117 = vand.u32 2147483647, %v2007
        %v2118 = vand.u32 %v2117, 8388607
        %v2119 = vor.u32 %v2118, 8388608
        %v2120 = vsub.s32 0, %v2119
        %v2121 = vadd.s32 %v2116, 1
        %vm2122 = vcmp.gt.s32.totalorder %v2121, 0
        %v2123 = vsel %vm2122, %v2121, 0
        %v2124 = vshrl.u32 %v2123, 5
        %v2125 = vand.u32 %v2123, 31
        %v2126 = vsub.s32 32, %v2125
        %v2127 = vshrl.u32 683565275, %v2126
        %v2128 = vshll.u32 683565275, %v2125
        %v2129 = vshrl.u32 2475754826, %v2126
        %v2130 = vor.u32 %v2128, %v2129
        %v2131 = vshll.u32 2475754826, %v2125
        %v2132 = vshrl.u32 2131351028, %v2126
        %v2133 = vor.u32 %v2131, %v2132
        %v2134 = vshll.u32 2131351028, %v2125
        %v2135 = vshrl.u32 2102212464, %v2126
        %v2136 = vor.u32 %v2134, %v2135
        %v2137 = vshll.u32 2102212464, %v2125
        %v2138 = vshrl.u32 920167782, %v2126
        %v2139 = vor.u32 %v2137, %v2138
        %v2140 = vshll.u32 920167782, %v2125
        %v2141 = vshrl.u32 1326507024, %v2126
        %v2142 = vor.u32 %v2140, %v2141
        %vm2143 = vcmp.lt.s32.totalorder %v2124, 1
        %vm2144 = vcmp.lt.s32.totalorder %v2124, 2
        %vm2145 = vcmp.lt.s32.totalorder %v2124, 3
        %vm2146 = vcmp.lt.s32.totalorder %v2124, 4
        %v2147 = vsel %vm2143, %v2127, %v2130
        %v2148 = vsel %vm2146, %v2136, 2102212464
        %v2149 = vsel %vm2145, %v2133, %v2148
        %v2150 = vsel %vm2144, %v2147, %v2149
        %v2151 = vsel %vm2143, %v2130, %v2133
        %v2152 = vsel %vm2146, %v2139, 920167782
        %v2153 = vsel %vm2145, %v2136, %v2152
        %v2154 = vsel %vm2144, %v2151, %v2153
        %v2155 = vsel %vm2143, %v2133, %v2136
        %v2156 = vsel %vm2146, %v2142, 1326507024
        %v2157 = vsel %vm2145, %v2139, %v2156
        %v2158 = vsel %vm2144, %v2155, %v2157
        %v2159 = vshll.u32 %v2119, 8
        %v2160 = vmul.u32.u64.compose %v2159, %v2158
        %v2161 = vextract.low.u32 %v2160
        %v2162 = vextract.high.u32 %v2160
        %v2163 = vmul.u32.u64.compose %v2159, %v2154
        %v2164 = vextract.low.u32 %v2163
        %v2165 = vextract.high.u32 %v2163
        %v2166 = vmul.u32 %v2159, %v2150
        %v2167 = vadd.s32 %v2162, %v2164
        %vm2168 = vc.u32 %v2162, %v2164
        %v2169 = vadd.s32 %v2165, 1
        %v2170 = vsel %vm2168, %v2169, %v2165
        %v2171 = vadd.s32 %v2166, %v2170
        %v2172 = vadd.s32 %v2171, 536870912
        %v2173 = vshrl.u32 %v2172, 30
        %v2174 = vshll.u32 %v2173, 30
        %v2175 = vsub.s32 %v2171, %v2174
        %vm2176 = vcmp.lt.s32.totalorder %v2175, 0
        %v2177 = vsub.s32 0, %v2175
        %v2178 = vsel %vm2176, %v2177, %v2175
        %v2179 = vclz %v2178
        %v2180 = vsub.s32 %v2179, 2
        %vm2181 = vcmp.gt.s32.totalorder 0, %v2180
        %v2182 = vsel %vm2181, 0, %v2180
        %v2183 = vsub.s32 32, %v2182
        %v2184 = vshll.u32 %v2175, %v2182
        %v2185 = vshrl.u32 %v2167, %v2183
        %v2186 = vor.u32 %v2184, %v2185
        %v2187 = vsub.s32 4294967266, %v2182
        %v2188 = vadd.s32 %v2187, 127
        %v2189 = vshll.u32 %v2188, 23
        %v2190 = vor.u32 4788187, %v2189
        %v2191 = vand.u32 2147483647, %v2190
        %v2193 = vcvt.s32.f32 %v2186
        %v2194 = vmul.f32 %v2193, %v2191
        %v2195 = vxor.u32 %v2194, 2147483648
        %v2196 = vsel %vm2113, %v2195, %v2194
        %v2197 = vsub.s32 4, %v2173
        %v2198 = vsel %vm2113, %v2197, %v2173
        %v2199 = vsel %vm2112, %v2007, %v2196
        %v2200 = vsel %vm2112, 0, %v2198
        %v2201 = vcosq.f32.pop %v2199
        %v2202 = vsinq.f32.pop %v2199
        %vm2203 = vweird.f32 %v2007
        %v2204 = vand.u32 %v2200, 3
        %vm2205 = vcmp.lt.s32.totalorder %v2204, 2
        %vm2206 = vcmp.eq.s32.totalorder %v2204, 0
        %v2207 = vxor.u32 %v2202, 2147483648
        %v2208 = vsel %vm2206, %v2201, %v2207
        %vm2209 = vcmp.eq.s32.totalorder %v2204, 2
        %v2210 = vxor.u32 %v2201, 2147483648
        %v2211 = vsel %vm2209, %v2210, %v2202
        %v2212 = vsel %vm2205, %v2208, %v2211
        %v2213 = vsel %vm2203, nan, %v2212
        %v2214 = vadd.f32 %v2110, 0.0
        %v2215 = vadd.f32 %v2213, 0.0
        %s2216 = sld [smem:[#allocation6 + $0x9]]
        %v2217 = vstv %s2216
        %v2218 = vadd.f32 %v2002, %v2217
        %v2219 = vadd.f32 %v2003, %v2217
        %v2220 = vand.u32 2147483647, %v2218
        %vm2221 = vcmp.le.f32.partialorder %v2220, 0.7853982
        %vm2222 = vcmp.lt.s32.totalorder %v2218, 0
        %v2223 = vand.u32 %v2218, 2139095040
        %v2224 = vshrl.u32 %v2223, 23
        %v2225 = vsub.s32 %v2224, 127
        %v2226 = vand.u32 2147483647, %v2218
        %v2227 = vand.u32 %v2226, 8388607
        %v2228 = vor.u32 %v2227, 8388608
        %v2229 = vsub.s32 0, %v2228
        %v2230 = vadd.s32 %v2225, 1
        %vm2231 = vcmp.gt.s32.totalorder %v2230, 0
        %v2232 = vsel %vm2231, %v2230, 0
        %v2233 = vshrl.u32 %v2232, 5
        %v2234 = vand.u32 %v2232, 31
        %v2235 = vsub.s32 32, %v2234
        %v2236 = vshrl.u32 683565275, %v2235
        %v2237 = vshll.u32 683565275, %v2234
        %v2238 = vshrl.u32 2475754826, %v2235
        %v2239 = vor.u32 %v2237, %v2238
        %v2240 = vshll.u32 2475754826, %v2234
        %v2241 = vshrl.u32 2131351028, %v2235
        %v2242 = vor.u32 %v2240, %v2241
        %v2243 = vshll.u32 2131351028, %v2234
        %v2244 = vshrl.u32 2102212464, %v2235
        %v2245 = vor.u32 %v2243, %v2244
        %v2246 = vshll.u32 2102212464, %v2234
        %v2247 = vshrl.u32 920167782, %v2235
        %v2248 = vor.u32 %v2246, %v2247
        %v2249 = vshll.u32 920167782, %v2234
        %v2250 = vshrl.u32 1326507024, %v2235
        %v2251 = vor.u32 %v2249, %v2250
        %vm2252 = vcmp.lt.s32.totalorder %v2233, 1
        %vm2253 = vcmp.lt.s32.totalorder %v2233, 2
        %vm2254 = vcmp.lt.s32.totalorder %v2233, 3
        %vm2255 = vcmp.lt.s32.totalorder %v2233, 4
        %v2256 = vsel %vm2252, %v2236, %v2239
        %v2257 = vsel %vm2255, %v2245, 2102212464
        %v2258 = vsel %vm2254, %v2242, %v2257
        %v2259 = vsel %vm2253, %v2256, %v2258
        %v2260 = vsel %vm2252, %v2239, %v2242
        %v2261 = vsel %vm2255, %v2248, 920167782
        %v2262 = vsel %vm2254, %v2245, %v2261
        %v2263 = vsel %vm2253, %v2260, %v2262
        %v2264 = vsel %vm2252, %v2242, %v2245
        %v2265 = vsel %vm2255, %v2251, 1326507024
        %v2266 = vsel %vm2254, %v2248, %v2265
        %v2267 = vsel %vm2253, %v2264, %v2266
        %v2268 = vshll.u32 %v2228, 8
        %v2269 = vmul.u32.u64.compose %v2268, %v2267
        %v2270 = vextract.low.u32 %v2269
        %v2271 = vextract.high.u32 %v2269
        %v2272 = vmul.u32.u64.compose %v2268, %v2263
        %v2273 = vextract.low.u32 %v2272
        %v2274 = vextract.high.u32 %v2272
        %v2275 = vmul.u32 %v2268, %v2259
        %v2276 = vadd.s32 %v2271, %v2273
        %vm2277 = vc.u32 %v2271, %v2273
        %v2278 = vadd.s32 %v2274, 1
        %v2279 = vsel %vm2277, %v2278, %v2274
        %v2280 = vadd.s32 %v2275, %v2279
        %v2281 = vadd.s32 %v2280, 536870912
        %v2282 = vshrl.u32 %v2281, 30
        %v2283 = vshll.u32 %v2282, 30
        %v2284 = vsub.s32 %v2280, %v2283
        %vm2285 = vcmp.lt.s32.totalorder %v2284, 0
        %v2286 = vsub.s32 0, %v2284
        %v2287 = vsel %vm2285, %v2286, %v2284
        %v2288 = vclz %v2287
        %v2289 = vsub.s32 %v2288, 2
        %vm2290 = vcmp.gt.s32.totalorder 0, %v2289
        %v2291 = vsel %vm2290, 0, %v2289
        %v2292 = vsub.s32 32, %v2291
        %v2293 = vshll.u32 %v2284, %v2291
        %v2294 = vshrl.u32 %v2276, %v2292
        %v2295 = vor.u32 %v2293, %v2294
        %v2296 = vsub.s32 4294967266, %v2291
        %v2297 = vadd.s32 %v2296, 127
        %v2298 = vshll.u32 %v2297, 23
        %v2299 = vor.u32 4788187, %v2298
        %v2300 = vand.u32 2147483647, %v2299
        %v2302 = vcvt.s32.f32 %v2295
        %v2303 = vmul.f32 %v2302, %v2300
        %v2304 = vxor.u32 %v2303, 2147483648
        %v2305 = vsel %vm2222, %v2304, %v2303
        %v2306 = vsub.s32 4, %v2282
        %v2307 = vsel %vm2222, %v2306, %v2282
        %v2308 = vsel %vm2221, %v2218, %v2305
        %v2309 = vsel %vm2221, 0, %v2307
        %v2310 = vcosq.f32.pop %v2308
        %v2311 = vsinq.f32.pop %v2308
        %vm2312 = vweird.f32 %v2218
        %v2313 = vand.u32 %v2309, 3
        %vm2314 = vcmp.lt.s32.totalorder %v2313, 2
        %vm2315 = vcmp.eq.s32.totalorder %v2313, 0
        %v2316 = vxor.u32 %v2311, 2147483648
        %v2317 = vsel %vm2315, %v2310, %v2316
        %vm2318 = vcmp.eq.s32.totalorder %v2313, 2
        %v2319 = vxor.u32 %v2310, 2147483648
        %v2320 = vsel %vm2318, %v2319, %v2311
        %v2321 = vsel %vm2314, %v2317, %v2320
        %v2322 = vsel %vm2312, nan, %v2321
        %v2323 = vand.u32 2147483647, %v2219
        %vm2324 = vcmp.le.f32.partialorder %v2323, 0.7853982
        %vm2325 = vcmp.lt.s32.totalorder %v2219, 0
        %v2326 = vand.u32 %v2219, 2139095040
        %v2327 = vshrl.u32 %v2326, 23
        %v2328 = vsub.s32 %v2327, 127
        %v2329 = vand.u32 2147483647, %v2219
        %v2330 = vand.u32 %v2329, 8388607
        %v2331 = vor.u32 %v2330, 8388608
        %v2332 = vsub.s32 0, %v2331
        %v2333 = vadd.s32 %v2328, 1
        %vm2334 = vcmp.gt.s32.totalorder %v2333, 0
        %v2335 = vsel %vm2334, %v2333, 0
        %v2336 = vshrl.u32 %v2335, 5
        %v2337 = vand.u32 %v2335, 31
        %v2338 = vsub.s32 32, %v2337
        %v2339 = vshrl.u32 683565275, %v2338
        %v2340 = vshll.u32 683565275, %v2337
        %v2341 = vshrl.u32 2475754826, %v2338
        %v2342 = vor.u32 %v2340, %v2341
        %v2343 = vshll.u32 2475754826, %v2337
        %v2344 = vshrl.u32 2131351028, %v2338
        %v2345 = vor.u32 %v2343, %v2344
        %v2346 = vshll.u32 2131351028, %v2337
        %v2347 = vshrl.u32 2102212464, %v2338
        %v2348 = vor.u32 %v2346, %v2347
        %v2349 = vshll.u32 2102212464, %v2337
        %v2350 = vshrl.u32 920167782, %v2338
        %v2351 = vor.u32 %v2349, %v2350
        %v2352 = vshll.u32 920167782, %v2337
        %v2353 = vshrl.u32 1326507024, %v2338
        %v2354 = vor.u32 %v2352, %v2353
        %vm2355 = vcmp.lt.s32.totalorder %v2336, 1
        %vm2356 = vcmp.lt.s32.totalorder %v2336, 2
        %vm2357 = vcmp.lt.s32.totalorder %v2336, 3
        %vm2358 = vcmp.lt.s32.totalorder %v2336, 4
        %v2359 = vsel %vm2355, %v2339, %v2342
        %v2360 = vsel %vm2358, %v2348, 2102212464
        %v2361 = vsel %vm2357, %v2345, %v2360
        %v2362 = vsel %vm2356, %v2359, %v2361
        %v2363 = vsel %vm2355, %v2342, %v2345
        %v2364 = vsel %vm2358, %v2351, 920167782
        %v2365 = vsel %vm2357, %v2348, %v2364
        %v2366 = vsel %vm2356, %v2363, %v2365
        %v2367 = vsel %vm2355, %v2345, %v2348
        %v2368 = vsel %vm2358, %v2354, 1326507024
        %v2369 = vsel %vm2357, %v2351, %v2368
        %v2370 = vsel %vm2356, %v2367, %v2369
        %v2371 = vshll.u32 %v2331, 8
        %v2372 = vmul.u32.u64.compose %v2371, %v2370
        %v2373 = vextract.low.u32 %v2372
        %v2374 = vextract.high.u32 %v2372
        %v2375 = vmul.u32.u64.compose %v2371, %v2366
        %v2376 = vextract.low.u32 %v2375
        %v2377 = vextract.high.u32 %v2375
        %v2378 = vmul.u32 %v2371, %v2362
        %v2379 = vadd.s32 %v2374, %v2376
        %vm2380 = vc.u32 %v2374, %v2376
        %v2381 = vadd.s32 %v2377, 1
        %v2382 = vsel %vm2380, %v2381, %v2377
        %v2383 = vadd.s32 %v2378, %v2382
        %v2384 = vadd.s32 %v2383, 536870912
        %v2385 = vshrl.u32 %v2384, 30
        %v2386 = vshll.u32 %v2385, 30
        %v2387 = vsub.s32 %v2383, %v2386
        %vm2388 = vcmp.lt.s32.totalorder %v2387, 0
        %v2389 = vsub.s32 0, %v2387
        %v2390 = vsel %vm2388, %v2389, %v2387
        %v2391 = vclz %v2390
        %v2392 = vsub.s32 %v2391, 2
        %vm2393 = vcmp.gt.s32.totalorder 0, %v2392
        %v2394 = vsel %vm2393, 0, %v2392
        %v2395 = vsub.s32 32, %v2394
        %v2396 = vshll.u32 %v2387, %v2394
        %v2397 = vshrl.u32 %v2379, %v2395
        %v2398 = vor.u32 %v2396, %v2397
        %v2399 = vsub.s32 4294967266, %v2394
        %v2400 = vadd.s32 %v2399, 127
        %v2401 = vshll.u32 %v2400, 23
        %v2402 = vor.u32 4788187, %v2401
        %v2403 = vand.u32 2147483647, %v2402
        %v2405 = vcvt.s32.f32 %v2398
        %v2406 = vmul.f32 %v2405, %v2403
        %v2407 = vxor.u32 %v2406, 2147483648
        %v2408 = vsel %vm2325, %v2407, %v2406
        %v2409 = vsub.s32 4, %v2385
        %v2410 = vsel %vm2325, %v2409, %v2385
        %v2411 = vsel %vm2324, %v2219, %v2408
        %v2412 = vsel %vm2324, 0, %v2410
        %v2413 = vcosq.f32.pop %v2411
        %v2414 = vsinq.f32.pop %v2411
        %vm2415 = vweird.f32 %v2219
        %v2416 = vand.u32 %v2412, 3
        %vm2417 = vcmp.lt.s32.totalorder %v2416, 2
        %vm2418 = vcmp.eq.s32.totalorder %v2416, 0
        %v2419 = vxor.u32 %v2414, 2147483648
        %v2420 = vsel %vm2418, %v2413, %v2419
        %vm2421 = vcmp.eq.s32.totalorder %v2416, 2
        %v2422 = vxor.u32 %v2413, 2147483648
        %v2423 = vsel %vm2421, %v2422, %v2414
        %v2424 = vsel %vm2417, %v2420, %v2423
        %v2425 = vsel %vm2415, nan, %v2424
        %2428 = vrot.lane.b32.xlu0 %v2322, 127
        %v2429 = vpop.permute.xlu0 %2428
        %2430 = vrot.lane.b32.xlu0 %v2425, 127
        %v2431 = vpop.permute.xlu0 %2430
        %v2434 = vadd.f32 %v2214, %v2429
        %v2435 = vadd.f32 %v2215, %v2431
        %v2436 = vld [vmem:[%s2001 + $0x1] sm:$0xff]
        %v2437 = vld [vmem:[%s2001 + $0x9] sm:$0x7f]
        %s2438 = sld [smem:[#allocation6 + $0xa]]
        %v2439 = vstv %s2438
        %v2440 = vadd.f32 %v2436, %v2439
        %v2441 = vadd.f32 %v2437, %v2439
        %v2442 = vand.u32 2147483647, %v2440
        %vm2443 = vcmp.le.f32.partialorder %v2442, 0.7853982
        %vm2444 = vcmp.lt.s32.totalorder %v2440, 0
        %v2445 = vand.u32 %v2440, 2139095040
        %v2446 = vshrl.u32 %v2445, 23
        %v2447 = vsub.s32 %v2446, 127
        %v2448 = vand.u32 2147483647, %v2440
        %v2449 = vand.u32 %v2448, 8388607
        %v2450 = vor.u32 %v2449, 8388608
        %v2451 = vsub.s32 0, %v2450
        %v2452 = vadd.s32 %v2447, 1
        %vm2453 = vcmp.gt.s32.totalorder %v2452, 0
        %v2454 = vsel %vm2453, %v2452, 0
        %v2455 = vshrl.u32 %v2454, 5
        %v2456 = vand.u32 %v2454, 31
        %v2457 = vsub.s32 32, %v2456
        %v2458 = vshrl.u32 683565275, %v2457
        %v2459 = vshll.u32 683565275, %v2456
        %v2460 = vshrl.u32 2475754826, %v2457
        %v2461 = vor.u32 %v2459, %v2460
        %v2462 = vshll.u32 2475754826, %v2456
        %v2463 = vshrl.u32 2131351028, %v2457
        %v2464 = vor.u32 %v2462, %v2463
        %v2465 = vshll.u32 2131351028, %v2456
        %v2466 = vshrl.u32 2102212464, %v2457
        %v2467 = vor.u32 %v2465, %v2466
        %v2468 = vshll.u32 2102212464, %v2456
        %v2469 = vshrl.u32 920167782, %v2457
        %v2470 = vor.u32 %v2468, %v2469
        %v2471 = vshll.u32 920167782, %v2456
        %v2472 = vshrl.u32 1326507024, %v2457
        %v2473 = vor.u32 %v2471, %v2472
        %vm2474 = vcmp.lt.s32.totalorder %v2455, 1
        %vm2475 = vcmp.lt.s32.totalorder %v2455, 2
        %vm2476 = vcmp.lt.s32.totalorder %v2455, 3
        %vm2477 = vcmp.lt.s32.totalorder %v2455, 4
        %v2478 = vsel %vm2474, %v2458, %v2461
        %v2479 = vsel %vm2477, %v2467, 2102212464
        %v2480 = vsel %vm2476, %v2464, %v2479
        %v2481 = vsel %vm2475, %v2478, %v2480
        %v2482 = vsel %vm2474, %v2461, %v2464
        %v2483 = vsel %vm2477, %v2470, 920167782
        %v2484 = vsel %vm2476, %v2467, %v2483
        %v2485 = vsel %vm2475, %v2482, %v2484
        %v2486 = vsel %vm2474, %v2464, %v2467
        %v2487 = vsel %vm2477, %v2473, 1326507024
        %v2488 = vsel %vm2476, %v2470, %v2487
        %v2489 = vsel %vm2475, %v2486, %v2488
        %v2490 = vshll.u32 %v2450, 8
        %v2491 = vmul.u32.u64.compose %v2490, %v2489
        %v2492 = vextract.low.u32 %v2491
        %v2493 = vextract.high.u32 %v2491
        %v2494 = vmul.u32.u64.compose %v2490, %v2485
        %v2495 = vextract.low.u32 %v2494
        %v2496 = vextract.high.u32 %v2494
        %v2497 = vmul.u32 %v2490, %v2481
        %v2498 = vadd.s32 %v2493, %v2495
        %vm2499 = vc.u32 %v2493, %v2495
        %v2500 = vadd.s32 %v2496, 1
        %v2501 = vsel %vm2499, %v2500, %v2496
        %v2502 = vadd.s32 %v2497, %v2501
        %v2503 = vadd.s32 %v2502, 536870912
        %v2504 = vshrl.u32 %v2503, 30
        %v2505 = vshll.u32 %v2504, 30
        %v2506 = vsub.s32 %v2502, %v2505
        %vm2507 = vcmp.lt.s32.totalorder %v2506, 0
        %v2508 = vsub.s32 0, %v2506
        %v2509 = vsel %vm2507, %v2508, %v2506
        %v2510 = vclz %v2509
        %v2511 = vsub.s32 %v2510, 2
        %vm2512 = vcmp.gt.s32.totalorder 0, %v2511
        %v2513 = vsel %vm2512, 0, %v2511
        %v2514 = vsub.s32 32, %v2513
        %v2515 = vshll.u32 %v2506, %v2513
        %v2516 = vshrl.u32 %v2498, %v2514
        %v2517 = vor.u32 %v2515, %v2516
        %v2518 = vsub.s32 4294967266, %v2513
        %v2519 = vadd.s32 %v2518, 127
        %v2520 = vshll.u32 %v2519, 23
        %v2521 = vor.u32 4788187, %v2520
        %v2522 = vand.u32 2147483647, %v2521
        %v2524 = vcvt.s32.f32 %v2517
        %v2525 = vmul.f32 %v2524, %v2522
        %v2526 = vxor.u32 %v2525, 2147483648
        %v2527 = vsel %vm2444, %v2526, %v2525
        %v2528 = vsub.s32 4, %v2504
        %v2529 = vsel %vm2444, %v2528, %v2504
        %v2530 = vsel %vm2443, %v2440, %v2527
        %v2531 = vsel %vm2443, 0, %v2529
        %v2532 = vcosq.f32.pop %v2530
        %v2533 = vsinq.f32.pop %v2530
        %vm2534 = vweird.f32 %v2440
        %v2535 = vand.u32 %v2531, 3
        %vm2536 = vcmp.lt.s32.totalorder %v2535, 2
        %vm2537 = vcmp.eq.s32.totalorder %v2535, 0
        %v2538 = vxor.u32 %v2533, 2147483648
        %v2539 = vsel %vm2537, %v2532, %v2538
        %vm2540 = vcmp.eq.s32.totalorder %v2535, 2
        %v2541 = vxor.u32 %v2532, 2147483648
        %v2542 = vsel %vm2540, %v2541, %v2533
        %v2543 = vsel %vm2536, %v2539, %v2542
        %v2544 = vsel %vm2534, nan, %v2543
        %v2545 = vand.u32 2147483647, %v2441
        %vm2546 = vcmp.le.f32.partialorder %v2545, 0.7853982
        %vm2547 = vcmp.lt.s32.totalorder %v2441, 0
        %v2548 = vand.u32 %v2441, 2139095040
        %v2549 = vshrl.u32 %v2548, 23
        %v2550 = vsub.s32 %v2549, 127
        %v2551 = vand.u32 2147483647, %v2441
        %v2552 = vand.u32 %v2551, 8388607
        %v2553 = vor.u32 %v2552, 8388608
        %v2554 = vsub.s32 0, %v2553
        %v2555 = vadd.s32 %v2550, 1
        %vm2556 = vcmp.gt.s32.totalorder %v2555, 0
        %v2557 = vsel %vm2556, %v2555, 0
        %v2558 = vshrl.u32 %v2557, 5
        %v2559 = vand.u32 %v2557, 31
        %v2560 = vsub.s32 32, %v2559
        %v2561 = vshrl.u32 683565275, %v2560
        %v2562 = vshll.u32 683565275, %v2559
        %v2563 = vshrl.u32 2475754826, %v2560
        %v2564 = vor.u32 %v2562, %v2563
        %v2565 = vshll.u32 2475754826, %v2559
        %v2566 = vshrl.u32 2131351028, %v2560
        %v2567 = vor.u32 %v2565, %v2566
        %v2568 = vshll.u32 2131351028, %v2559
        %v2569 = vshrl.u32 2102212464, %v2560
        %v2570 = vor.u32 %v2568, %v2569
        %v2571 = vshll.u32 2102212464, %v2559
        %v2572 = vshrl.u32 920167782, %v2560
        %v2573 = vor.u32 %v2571, %v2572
        %v2574 = vshll.u32 920167782, %v2559
        %v2575 = vshrl.u32 1326507024, %v2560
        %v2576 = vor.u32 %v2574, %v2575
        %vm2577 = vcmp.lt.s32.totalorder %v2558, 1
        %vm2578 = vcmp.lt.s32.totalorder %v2558, 2
        %vm2579 = vcmp.lt.s32.totalorder %v2558, 3
        %vm2580 = vcmp.lt.s32.totalorder %v2558, 4
        %v2581 = vsel %vm2577, %v2561, %v2564
        %v2582 = vsel %vm2580, %v2570, 2102212464
        %v2583 = vsel %vm2579, %v2567, %v2582
        %v2584 = vsel %vm2578, %v2581, %v2583
        %v2585 = vsel %vm2577, %v2564, %v2567
        %v2586 = vsel %vm2580, %v2573, 920167782
        %v2587 = vsel %vm2579, %v2570, %v2586
        %v2588 = vsel %vm2578, %v2585, %v2587
        %v2589 = vsel %vm2577, %v2567, %v2570
        %v2590 = vsel %vm2580, %v2576, 1326507024
        %v2591 = vsel %vm2579, %v2573, %v2590
        %v2592 = vsel %vm2578, %v2589, %v2591
        %v2593 = vshll.u32 %v2553, 8
        %v2594 = vmul.u32.u64.compose %v2593, %v2592
        %v2595 = vextract.low.u32 %v2594
        %v2596 = vextract.high.u32 %v2594
        %v2597 = vmul.u32.u64.compose %v2593, %v2588
        %v2598 = vextract.low.u32 %v2597
        %v2599 = vextract.high.u32 %v2597
        %v2600 = vmul.u32 %v2593, %v2584
        %v2601 = vadd.s32 %v2596, %v2598
        %vm2602 = vc.u32 %v2596, %v2598
        %v2603 = vadd.s32 %v2599, 1
        %v2604 = vsel %vm2602, %v2603, %v2599
        %v2605 = vadd.s32 %v2600, %v2604
        %v2606 = vadd.s32 %v2605, 536870912
        %v2607 = vshrl.u32 %v2606, 30
        %v2608 = vshll.u32 %v2607, 30
        %v2609 = vsub.s32 %v2605, %v2608
        %vm2610 = vcmp.lt.s32.totalorder %v2609, 0
        %v2611 = vsub.s32 0, %v2609
        %v2612 = vsel %vm2610, %v2611, %v2609
        %v2613 = vclz %v2612
        %v2614 = vsub.s32 %v2613, 2
        %vm2615 = vcmp.gt.s32.totalorder 0, %v2614
        %v2616 = vsel %vm2615, 0, %v2614
        %v2617 = vsub.s32 32, %v2616
        %v2618 = vshll.u32 %v2609, %v2616
        %v2619 = vshrl.u32 %v2601, %v2617
        %v2620 = vor.u32 %v2618, %v2619
        %v2621 = vsub.s32 4294967266, %v2616
        %v2622 = vadd.s32 %v2621, 127
        %v2623 = vshll.u32 %v2622, 23
        %v2624 = vor.u32 4788187, %v2623
        %v2625 = vand.u32 2147483647, %v2624
        %v2627 = vcvt.s32.f32 %v2620
        %v2628 = vmul.f32 %v2627, %v2625
        %v2629 = vxor.u32 %v2628, 2147483648
        %v2630 = vsel %vm2547, %v2629, %v2628
        %v2631 = vsub.s32 4, %v2607
        %v2632 = vsel %vm2547, %v2631, %v2607
        %v2633 = vsel %vm2546, %v2441, %v2630
        %v2634 = vsel %vm2546, 0, %v2632
        %v2635 = vcosq.f32.pop %v2633
        %v2636 = vsinq.f32.pop %v2633
        %vm2637 = vweird.f32 %v2441
        %v2638 = vand.u32 %v2634, 3
        %vm2639 = vcmp.lt.s32.totalorder %v2638, 2
        %vm2640 = vcmp.eq.s32.totalorder %v2638, 0
        %v2641 = vxor.u32 %v2636, 2147483648
        %v2642 = vsel %vm2640, %v2635, %v2641
        %vm2643 = vcmp.eq.s32.totalorder %v2638, 2
        %v2644 = vxor.u32 %v2635, 2147483648
        %v2645 = vsel %vm2643, %v2644, %v2636
        %v2646 = vsel %vm2639, %v2642, %v2645
        %v2647 = vsel %vm2637, nan, %v2646
        %v2648 = vadd.f32 %v2434, %v2544
        %v2649 = vadd.f32 %v2435, %v2647
        %s2650 = sld [smem:[#allocation6 + $0xb]]
        %v2651 = vstv %s2650
        %v2652 = vadd.f32 %v2436, %v2651
        %v2653 = vadd.f32 %v2437, %v2651
        %v2654 = vand.u32 2147483647, %v2652
        %vm2655 = vcmp.le.f32.partialorder %v2654, 0.7853982
        %vm2656 = vcmp.lt.s32.totalorder %v2652, 0
        %v2657 = vand.u32 %v2652, 2139095040
        %v2658 = vshrl.u32 %v2657, 23
        %v2659 = vsub.s32 %v2658, 127
        %v2660 = vand.u32 2147483647, %v2652
        %v2661 = vand.u32 %v2660, 8388607
        %v2662 = vor.u32 %v2661, 8388608
        %v2663 = vsub.s32 0, %v2662
        %v2664 = vadd.s32 %v2659, 1
        %vm2665 = vcmp.gt.s32.totalorder %v2664, 0
        %v2666 = vsel %vm2665, %v2664, 0
        %v2667 = vshrl.u32 %v2666, 5
        %v2668 = vand.u32 %v2666, 31
        %v2669 = vsub.s32 32, %v2668
        %v2670 = vshrl.u32 683565275, %v2669
        %v2671 = vshll.u32 683565275, %v2668
        %v2672 = vshrl.u32 2475754826, %v2669
        %v2673 = vor.u32 %v2671, %v2672
        %v2674 = vshll.u32 2475754826, %v2668
        %v2675 = vshrl.u32 2131351028, %v2669
        %v2676 = vor.u32 %v2674, %v2675
        %v2677 = vshll.u32 2131351028, %v2668
        %v2678 = vshrl.u32 2102212464, %v2669
        %v2679 = vor.u32 %v2677, %v2678
        %v2680 = vshll.u32 2102212464, %v2668
        %v2681 = vshrl.u32 920167782, %v2669
        %v2682 = vor.u32 %v2680, %v2681
        %v2683 = vshll.u32 920167782, %v2668
        %v2684 = vshrl.u32 1326507024, %v2669
        %v2685 = vor.u32 %v2683, %v2684
        %vm2686 = vcmp.lt.s32.totalorder %v2667, 1
        %vm2687 = vcmp.lt.s32.totalorder %v2667, 2
        %vm2688 = vcmp.lt.s32.totalorder %v2667, 3
        %vm2689 = vcmp.lt.s32.totalorder %v2667, 4
        %v2690 = vsel %vm2686, %v2670, %v2673
        %v2691 = vsel %vm2689, %v2679, 2102212464
        %v2692 = vsel %vm2688, %v2676, %v2691
        %v2693 = vsel %vm2687, %v2690, %v2692
        %v2694 = vsel %vm2686, %v2673, %v2676
        %v2695 = vsel %vm2689, %v2682, 920167782
        %v2696 = vsel %vm2688, %v2679, %v2695
        %v2697 = vsel %vm2687, %v2694, %v2696
        %v2698 = vsel %vm2686, %v2676, %v2679
        %v2699 = vsel %vm2689, %v2685, 1326507024
        %v2700 = vsel %vm2688, %v2682, %v2699
        %v2701 = vsel %vm2687, %v2698, %v2700
        %v2702 = vshll.u32 %v2662, 8
        %v2703 = vmul.u32.u64.compose %v2702, %v2701
        %v2704 = vextract.low.u32 %v2703
        %v2705 = vextract.high.u32 %v2703
        %v2706 = vmul.u32.u64.compose %v2702, %v2697
        %v2707 = vextract.low.u32 %v2706
        %v2708 = vextract.high.u32 %v2706
        %v2709 = vmul.u32 %v2702, %v2693
        %v2710 = vadd.s32 %v2705, %v2707
        %vm2711 = vc.u32 %v2705, %v2707
        %v2712 = vadd.s32 %v2708, 1
        %v2713 = vsel %vm2711, %v2712, %v2708
        %v2714 = vadd.s32 %v2709, %v2713
        %v2715 = vadd.s32 %v2714, 536870912
        %v2716 = vshrl.u32 %v2715, 30
        %v2717 = vshll.u32 %v2716, 30
        %v2718 = vsub.s32 %v2714, %v2717
        %vm2719 = vcmp.lt.s32.totalorder %v2718, 0
        %v2720 = vsub.s32 0, %v2718
        %v2721 = vsel %vm2719, %v2720, %v2718
        %v2722 = vclz %v2721
        %v2723 = vsub.s32 %v2722, 2
        %vm2724 = vcmp.gt.s32.totalorder 0, %v2723
        %v2725 = vsel %vm2724, 0, %v2723
        %v2726 = vsub.s32 32, %v2725
        %v2727 = vshll.u32 %v2718, %v2725
        %v2728 = vshrl.u32 %v2710, %v2726
        %v2729 = vor.u32 %v2727, %v2728
        %v2730 = vsub.s32 4294967266, %v2725
        %v2731 = vadd.s32 %v2730, 127
        %v2732 = vshll.u32 %v2731, 23
        %v2733 = vor.u32 4788187, %v2732
        %v2734 = vand.u32 2147483647, %v2733
        %v2736 = vcvt.s32.f32 %v2729
        %v2737 = vmul.f32 %v2736, %v2734
        %v2738 = vxor.u32 %v2737, 2147483648
        %v2739 = vsel %vm2656, %v2738, %v2737
        %v2740 = vsub.s32 4, %v2716
        %v2741 = vsel %vm2656, %v2740, %v2716
        %v2742 = vsel %vm2655, %v2652, %v2739
        %v2743 = vsel %vm2655, 0, %v2741
        %v2744 = vcosq.f32.pop %v2742
        %v2745 = vsinq.f32.pop %v2742
        %vm2746 = vweird.f32 %v2652
        %v2747 = vand.u32 %v2743, 3
        %vm2748 = vcmp.lt.s32.totalorder %v2747, 2
        %vm2749 = vcmp.eq.s32.totalorder %v2747, 0
        %v2750 = vxor.u32 %v2745, 2147483648
        %v2751 = vsel %vm2749, %v2744, %v2750
        %vm2752 = vcmp.eq.s32.totalorder %v2747, 2
        %v2753 = vxor.u32 %v2744, 2147483648
        %v2754 = vsel %vm2752, %v2753, %v2745
        %v2755 = vsel %vm2748, %v2751, %v2754
        %v2756 = vsel %vm2746, nan, %v2755
        %v2757 = vand.u32 2147483647, %v2653
        %vm2758 = vcmp.le.f32.partialorder %v2757, 0.7853982
        %vm2759 = vcmp.lt.s32.totalorder %v2653, 0
        %v2760 = vand.u32 %v2653, 2139095040
        %v2761 = vshrl.u32 %v2760, 23
        %v2762 = vsub.s32 %v2761, 127
        %v2763 = vand.u32 2147483647, %v2653
        %v2764 = vand.u32 %v2763, 8388607
        %v2765 = vor.u32 %v2764, 8388608
        %v2766 = vsub.s32 0, %v2765
        %v2767 = vadd.s32 %v2762, 1
        %vm2768 = vcmp.gt.s32.totalorder %v2767, 0
        %v2769 = vsel %vm2768, %v2767, 0
        %v2770 = vshrl.u32 %v2769, 5
        %v2771 = vand.u32 %v2769, 31
        %v2772 = vsub.s32 32, %v2771
        %v2773 = vshrl.u32 683565275, %v2772
        %v2774 = vshll.u32 683565275, %v2771
        %v2775 = vshrl.u32 2475754826, %v2772
        %v2776 = vor.u32 %v2774, %v2775
        %v2777 = vshll.u32 2475754826, %v2771
        %v2778 = vshrl.u32 2131351028, %v2772
        %v2779 = vor.u32 %v2777, %v2778
        %v2780 = vshll.u32 2131351028, %v2771
        %v2781 = vshrl.u32 2102212464, %v2772
        %v2782 = vor.u32 %v2780, %v2781
        %v2783 = vshll.u32 2102212464, %v2771
        %v2784 = vshrl.u32 920167782, %v2772
        %v2785 = vor.u32 %v2783, %v2784
        %v2786 = vshll.u32 920167782, %v2771
        %v2787 = vshrl.u32 1326507024, %v2772
        %v2788 = vor.u32 %v2786, %v2787
        %vm2789 = vcmp.lt.s32.totalorder %v2770, 1
        %vm2790 = vcmp.lt.s32.totalorder %v2770, 2
        %vm2791 = vcmp.lt.s32.totalorder %v2770, 3
        %vm2792 = vcmp.lt.s32.totalorder %v2770, 4
        %v2793 = vsel %vm2789, %v2773, %v2776
        %v2794 = vsel %vm2792, %v2782, 2102212464
        %v2795 = vsel %vm2791, %v2779, %v2794
        %v2796 = vsel %vm2790, %v2793, %v2795
        %v2797 = vsel %vm2789, %v2776, %v2779
        %v2798 = vsel %vm2792, %v2785, 920167782
        %v2799 = vsel %vm2791, %v2782, %v2798
        %v2800 = vsel %vm2790, %v2797, %v2799
        %v2801 = vsel %vm2789, %v2779, %v2782
        %v2802 = vsel %vm2792, %v2788, 1326507024
        %v2803 = vsel %vm2791, %v2785, %v2802
        %v2804 = vsel %vm2790, %v2801, %v2803
        %v2805 = vshll.u32 %v2765, 8
        %v2806 = vmul.u32.u64.compose %v2805, %v2804
        %v2807 = vextract.low.u32 %v2806
        %v2808 = vextract.high.u32 %v2806
        %v2809 = vmul.u32.u64.compose %v2805, %v2800
        %v2810 = vextract.low.u32 %v2809
        %v2811 = vextract.high.u32 %v2809
        %v2812 = vmul.u32 %v2805, %v2796
        %v2813 = vadd.s32 %v2808, %v2810
        %vm2814 = vc.u32 %v2808, %v2810
        %v2815 = vadd.s32 %v2811, 1
        %v2816 = vsel %vm2814, %v2815, %v2811
        %v2817 = vadd.s32 %v2812, %v2816
        %v2818 = vadd.s32 %v2817, 536870912
        %v2819 = vshrl.u32 %v2818, 30
        %v2820 = vshll.u32 %v2819, 30
        %v2821 = vsub.s32 %v2817, %v2820
        %vm2822 = vcmp.lt.s32.totalorder %v2821, 0
        %v2823 = vsub.s32 0, %v2821
        %v2824 = vsel %vm2822, %v2823, %v2821
        %v2825 = vclz %v2824
        %v2826 = vsub.s32 %v2825, 2
        %vm2827 = vcmp.gt.s32.totalorder 0, %v2826
        %v2828 = vsel %vm2827, 0, %v2826
        %v2829 = vsub.s32 32, %v2828
        %v2830 = vshll.u32 %v2821, %v2828
        %v2831 = vshrl.u32 %v2813, %v2829
        %v2832 = vor.u32 %v2830, %v2831
        %v2833 = vsub.s32 4294967266, %v2828
        %v2834 = vadd.s32 %v2833, 127
        %v2835 = vshll.u32 %v2834, 23
        %v2836 = vor.u32 4788187, %v2835
        %v2837 = vand.u32 2147483647, %v2836
        %v2839 = vcvt.s32.f32 %v2832
        %v2840 = vmul.f32 %v2839, %v2837
        %v2841 = vxor.u32 %v2840, 2147483648
        %v2842 = vsel %vm2759, %v2841, %v2840
        %v2843 = vsub.s32 4, %v2819
        %v2844 = vsel %vm2759, %v2843, %v2819
        %v2845 = vsel %vm2758, %v2653, %v2842
        %v2846 = vsel %vm2758, 0, %v2844
        %v2847 = vcosq.f32.pop %v2845
        %v2848 = vsinq.f32.pop %v2845
        %vm2849 = vweird.f32 %v2653
        %v2850 = vand.u32 %v2846, 3
        %vm2851 = vcmp.lt.s32.totalorder %v2850, 2
        %vm2852 = vcmp.eq.s32.totalorder %v2850, 0
        %v2853 = vxor.u32 %v2848, 2147483648
        %v2854 = vsel %vm2852, %v2847, %v2853
        %vm2855 = vcmp.eq.s32.totalorder %v2850, 2
        %v2856 = vxor.u32 %v2847, 2147483648
        %v2857 = vsel %vm2855, %v2856, %v2848
        %v2858 = vsel %vm2851, %v2854, %v2857
        %v2859 = vsel %vm2849, nan, %v2858
        %2862 = vrot.lane.b32.xlu0 %v2756, 127
        %v2863 = vpop.permute.xlu0 %2862
        %2864 = vrot.lane.b32.xlu0 %v2859, 127
        %v2865 = vpop.permute.xlu0 %2864
        %v2868 = vadd.f32 %v2648, %v2863
        %v2869 = vadd.f32 %v2649, %v2865
        %s2870 = scalar_lea.vmem [#allocation2], 32
        %2871 = vst.msk [vmem:[%s2870] sm:$0xff] %vm1125, %v2868
        %2872 = vst.msk [vmem:[%s2870 + $0x8] sm:$0x7f] %vm1127, %v2869
        %s2873 = scalar_lea.vmem %s214, 48 [#allocation3]
        %v2874 = vld [vmem:[%s2873] sm:$0xff]
        %v2875 = vld [vmem:[%s2873 + $0x8] sm:$0x7f]
        %s2876 = sld [smem:[#allocation6 + $0xc]]
        %v2877 = vstv %s2876
        %v2878 = vadd.f32 %v2874, %v2877
        %v2879 = vadd.f32 %v2875, %v2877
        %v2880 = vand.u32 2147483647, %v2878
        %vm2881 = vcmp.le.f32.partialorder %v2880, 0.7853982
        %vm2882 = vcmp.lt.s32.totalorder %v2878, 0
        %v2883 = vand.u32 %v2878, 2139095040
        %v2884 = vshrl.u32 %v2883, 23
        %v2885 = vsub.s32 %v2884, 127
        %v2886 = vand.u32 2147483647, %v2878
        %v2887 = vand.u32 %v2886, 8388607
        %v2888 = vor.u32 %v2887, 8388608
        %v2889 = vsub.s32 0, %v2888
        %v2890 = vadd.s32 %v2885, 1
        %vm2891 = vcmp.gt.s32.totalorder %v2890, 0
        %v2892 = vsel %vm2891, %v2890, 0
        %v2893 = vshrl.u32 %v2892, 5
        %v2894 = vand.u32 %v2892, 31
        %v2895 = vsub.s32 32, %v2894
        %v2896 = vshrl.u32 683565275, %v2895
        %v2897 = vshll.u32 683565275, %v2894
        %v2898 = vshrl.u32 2475754826, %v2895
        %v2899 = vor.u32 %v2897, %v2898
        %v2900 = vshll.u32 2475754826, %v2894
        %v2901 = vshrl.u32 2131351028, %v2895
        %v2902 = vor.u32 %v2900, %v2901
        %v2903 = vshll.u32 2131351028, %v2894
        %v2904 = vshrl.u32 2102212464, %v2895
        %v2905 = vor.u32 %v2903, %v2904
        %v2906 = vshll.u32 2102212464, %v2894
        %v2907 = vshrl.u32 920167782, %v2895
        %v2908 = vor.u32 %v2906, %v2907
        %v2909 = vshll.u32 920167782, %v2894
        %v2910 = vshrl.u32 1326507024, %v2895
        %v2911 = vor.u32 %v2909, %v2910
        %vm2912 = vcmp.lt.s32.totalorder %v2893, 1
        %vm2913 = vcmp.lt.s32.totalorder %v2893, 2
        %vm2914 = vcmp.lt.s32.totalorder %v2893, 3
        %vm2915 = vcmp.lt.s32.totalorder %v2893, 4
        %v2916 = vsel %vm2912, %v2896, %v2899
        %v2917 = vsel %vm2915, %v2905, 2102212464
        %v2918 = vsel %vm2914, %v2902, %v2917
        %v2919 = vsel %vm2913, %v2916, %v2918
        %v2920 = vsel %vm2912, %v2899, %v2902
        %v2921 = vsel %vm2915, %v2908, 920167782
        %v2922 = vsel %vm2914, %v2905, %v2921
        %v2923 = vsel %vm2913, %v2920, %v2922
        %v2924 = vsel %vm2912, %v2902, %v2905
        %v2925 = vsel %vm2915, %v2911, 1326507024
        %v2926 = vsel %vm2914, %v2908, %v2925
        %v2927 = vsel %vm2913, %v2924, %v2926
        %v2928 = vshll.u32 %v2888, 8
        %v2929 = vmul.u32.u64.compose %v2928, %v2927
        %v2930 = vextract.low.u32 %v2929
        %v2931 = vextract.high.u32 %v2929
        %v2932 = vmul.u32.u64.compose %v2928, %v2923
        %v2933 = vextract.low.u32 %v2932
        %v2934 = vextract.high.u32 %v2932
        %v2935 = vmul.u32 %v2928, %v2919
        %v2936 = vadd.s32 %v2931, %v2933
        %vm2937 = vc.u32 %v2931, %v2933
        %v2938 = vadd.s32 %v2934, 1
        %v2939 = vsel %vm2937, %v2938, %v2934
        %v2940 = vadd.s32 %v2935, %v2939
        %v2941 = vadd.s32 %v2940, 536870912
        %v2942 = vshrl.u32 %v2941, 30
        %v2943 = vshll.u32 %v2942, 30
        %v2944 = vsub.s32 %v2940, %v2943
        %vm2945 = vcmp.lt.s32.totalorder %v2944, 0
        %v2946 = vsub.s32 0, %v2944
        %v2947 = vsel %vm2945, %v2946, %v2944
        %v2948 = vclz %v2947
        %v2949 = vsub.s32 %v2948, 2
        %vm2950 = vcmp.gt.s32.totalorder 0, %v2949
        %v2951 = vsel %vm2950, 0, %v2949
        %v2952 = vsub.s32 32, %v2951
        %v2953 = vshll.u32 %v2944, %v2951
        %v2954 = vshrl.u32 %v2936, %v2952
        %v2955 = vor.u32 %v2953, %v2954
        %v2956 = vsub.s32 4294967266, %v2951
        %v2957 = vadd.s32 %v2956, 127
        %v2958 = vshll.u32 %v2957, 23
        %v2959 = vor.u32 4788187, %v2958
        %v2960 = vand.u32 2147483647, %v2959
        %v2962 = vcvt.s32.f32 %v2955
        %v2963 = vmul.f32 %v2962, %v2960
        %v2964 = vxor.u32 %v2963, 2147483648
        %v2965 = vsel %vm2882, %v2964, %v2963
        %v2966 = vsub.s32 4, %v2942
        %v2967 = vsel %vm2882, %v2966, %v2942
        %v2968 = vsel %vm2881, %v2878, %v2965
        %v2969 = vsel %vm2881, 0, %v2967
        %v2970 = vcosq.f32.pop %v2968
        %v2971 = vsinq.f32.pop %v2968
        %vm2972 = vweird.f32 %v2878
        %v2973 = vand.u32 %v2969, 3
        %vm2974 = vcmp.lt.s32.totalorder %v2973, 2
        %vm2975 = vcmp.eq.s32.totalorder %v2973, 0
        %v2976 = vxor.u32 %v2971, 2147483648
        %v2977 = vsel %vm2975, %v2970, %v2976
        %vm2978 = vcmp.eq.s32.totalorder %v2973, 2
        %v2979 = vxor.u32 %v2970, 2147483648
        %v2980 = vsel %vm2978, %v2979, %v2971
        %v2981 = vsel %vm2974, %v2977, %v2980
        %v2982 = vsel %vm2972, nan, %v2981
        %v2983 = vand.u32 2147483647, %v2879
        %vm2984 = vcmp.le.f32.partialorder %v2983, 0.7853982
        %vm2985 = vcmp.lt.s32.totalorder %v2879, 0
        %v2986 = vand.u32 %v2879, 2139095040
        %v2987 = vshrl.u32 %v2986, 23
        %v2988 = vsub.s32 %v2987, 127
        %v2989 = vand.u32 2147483647, %v2879
        %v2990 = vand.u32 %v2989, 8388607
        %v2991 = vor.u32 %v2990, 8388608
        %v2992 = vsub.s32 0, %v2991
        %v2993 = vadd.s32 %v2988, 1
        %vm2994 = vcmp.gt.s32.totalorder %v2993, 0
        %v2995 = vsel %vm2994, %v2993, 0
        %v2996 = vshrl.u32 %v2995, 5
        %v2997 = vand.u32 %v2995, 31
        %v2998 = vsub.s32 32, %v2997
        %v2999 = vshrl.u32 683565275, %v2998
        %v3000 = vshll.u32 683565275, %v2997
        %v3001 = vshrl.u32 2475754826, %v2998
        %v3002 = vor.u32 %v3000, %v3001
        %v3003 = vshll.u32 2475754826, %v2997
        %v3004 = vshrl.u32 2131351028, %v2998
        %v3005 = vor.u32 %v3003, %v3004
        %v3006 = vshll.u32 2131351028, %v2997
        %v3007 = vshrl.u32 2102212464, %v2998
        %v3008 = vor.u32 %v3006, %v3007
        %v3009 = vshll.u32 2102212464, %v2997
        %v3010 = vshrl.u32 920167782, %v2998
        %v3011 = vor.u32 %v3009, %v3010
        %v3012 = vshll.u32 920167782, %v2997
        %v3013 = vshrl.u32 1326507024, %v2998
        %v3014 = vor.u32 %v3012, %v3013
        %vm3015 = vcmp.lt.s32.totalorder %v2996, 1
        %vm3016 = vcmp.lt.s32.totalorder %v2996, 2
        %vm3017 = vcmp.lt.s32.totalorder %v2996, 3
        %vm3018 = vcmp.lt.s32.totalorder %v2996, 4
        %v3019 = vsel %vm3015, %v2999, %v3002
        %v3020 = vsel %vm3018, %v3008, 2102212464
        %v3021 = vsel %vm3017, %v3005, %v3020
        %v3022 = vsel %vm3016, %v3019, %v3021
        %v3023 = vsel %vm3015, %v3002, %v3005
        %v3024 = vsel %vm3018, %v3011, 920167782
        %v3025 = vsel %vm3017, %v3008, %v3024
        %v3026 = vsel %vm3016, %v3023, %v3025
        %v3027 = vsel %vm3015, %v3005, %v3008
        %v3028 = vsel %vm3018, %v3014, 1326507024
        %v3029 = vsel %vm3017, %v3011, %v3028
        %v3030 = vsel %vm3016, %v3027, %v3029
        %v3031 = vshll.u32 %v2991, 8
        %v3032 = vmul.u32.u64.compose %v3031, %v3030
        %v3033 = vextract.low.u32 %v3032
        %v3034 = vextract.high.u32 %v3032
        %v3035 = vmul.u32.u64.compose %v3031, %v3026
        %v3036 = vextract.low.u32 %v3035
        %v3037 = vextract.high.u32 %v3035
        %v3038 = vmul.u32 %v3031, %v3022
        %v3039 = vadd.s32 %v3034, %v3036
        %vm3040 = vc.u32 %v3034, %v3036
        %v3041 = vadd.s32 %v3037, 1
        %v3042 = vsel %vm3040, %v3041, %v3037
        %v3043 = vadd.s32 %v3038, %v3042
        %v3044 = vadd.s32 %v3043, 536870912
        %v3045 = vshrl.u32 %v3044, 30
        %v3046 = vshll.u32 %v3045, 30
        %v3047 = vsub.s32 %v3043, %v3046
        %vm3048 = vcmp.lt.s32.totalorder %v3047, 0
        %v3049 = vsub.s32 0, %v3047
        %v3050 = vsel %vm3048, %v3049, %v3047
        %v3051 = vclz %v3050
        %v3052 = vsub.s32 %v3051, 2
        %vm3053 = vcmp.gt.s32.totalorder 0, %v3052
        %v3054 = vsel %vm3053, 0, %v3052
        %v3055 = vsub.s32 32, %v3054
        %v3056 = vshll.u32 %v3047, %v3054
        %v3057 = vshrl.u32 %v3039, %v3055
        %v3058 = vor.u32 %v3056, %v3057
        %v3059 = vsub.s32 4294967266, %v3054
        %v3060 = vadd.s32 %v3059, 127
        %v3061 = vshll.u32 %v3060, 23
        %v3062 = vor.u32 4788187, %v3061
        %v3063 = vand.u32 2147483647, %v3062
        %v3065 = vcvt.s32.f32 %v3058
        %v3066 = vmul.f32 %v3065, %v3063
        %v3067 = vxor.u32 %v3066, 2147483648
        %v3068 = vsel %vm2985, %v3067, %v3066
        %v3069 = vsub.s32 4, %v3045
        %v3070 = vsel %vm2985, %v3069, %v3045
        %v3071 = vsel %vm2984, %v2879, %v3068
        %v3072 = vsel %vm2984, 0, %v3070
        %v3073 = vcosq.f32.pop %v3071
        %v3074 = vsinq.f32.pop %v3071
        %vm3075 = vweird.f32 %v2879
        %v3076 = vand.u32 %v3072, 3
        %vm3077 = vcmp.lt.s32.totalorder %v3076, 2
        %vm3078 = vcmp.eq.s32.totalorder %v3076, 0
        %v3079 = vxor.u32 %v3074, 2147483648
        %v3080 = vsel %vm3078, %v3073, %v3079
        %vm3081 = vcmp.eq.s32.totalorder %v3076, 2
        %v3082 = vxor.u32 %v3073, 2147483648
        %v3083 = vsel %vm3081, %v3082, %v3074
        %v3084 = vsel %vm3077, %v3080, %v3083
        %v3085 = vsel %vm3075, nan, %v3084
        %v3086 = vadd.f32 %v2982, 0.0
        %v3087 = vadd.f32 %v3085, 0.0
        %s3088 = sld [smem:[#allocation6 + $0xd]]
        %v3089 = vstv %s3088
        %v3090 = vadd.f32 %v2874, %v3089
        %v3091 = vadd.f32 %v2875, %v3089
        %v3092 = vand.u32 2147483647, %v3090
        %vm3093 = vcmp.le.f32.partialorder %v3092, 0.7853982
        %vm3094 = vcmp.lt.s32.totalorder %v3090, 0
        %v3095 = vand.u32 %v3090, 2139095040
        %v3096 = vshrl.u32 %v3095, 23
        %v3097 = vsub.s32 %v3096, 127
        %v3098 = vand.u32 2147483647, %v3090
        %v3099 = vand.u32 %v3098, 8388607
        %v3100 = vor.u32 %v3099, 8388608
        %v3101 = vsub.s32 0, %v3100
        %v3102 = vadd.s32 %v3097, 1
        %vm3103 = vcmp.gt.s32.totalorder %v3102, 0
        %v3104 = vsel %vm3103, %v3102, 0
        %v3105 = vshrl.u32 %v3104, 5
        %v3106 = vand.u32 %v3104, 31
        %v3107 = vsub.s32 32, %v3106
        %v3108 = vshrl.u32 683565275, %v3107
        %v3109 = vshll.u32 683565275, %v3106
        %v3110 = vshrl.u32 2475754826, %v3107
        %v3111 = vor.u32 %v3109, %v3110
        %v3112 = vshll.u32 2475754826, %v3106
        %v3113 = vshrl.u32 2131351028, %v3107
        %v3114 = vor.u32 %v3112, %v3113
        %v3115 = vshll.u32 2131351028, %v3106
        %v3116 = vshrl.u32 2102212464, %v3107
        %v3117 = vor.u32 %v3115, %v3116
        %v3118 = vshll.u32 2102212464, %v3106
        %v3119 = vshrl.u32 920167782, %v3107
        %v3120 = vor.u32 %v3118, %v3119
        %v3121 = vshll.u32 920167782, %v3106
        %v3122 = vshrl.u32 1326507024, %v3107
        %v3123 = vor.u32 %v3121, %v3122
        %vm3124 = vcmp.lt.s32.totalorder %v3105, 1
        %vm3125 = vcmp.lt.s32.totalorder %v3105, 2
        %vm3126 = vcmp.lt.s32.totalorder %v3105, 3
        %vm3127 = vcmp.lt.s32.totalorder %v3105, 4
        %v3128 = vsel %vm3124, %v3108, %v3111
        %v3129 = vsel %vm3127, %v3117, 2102212464
        %v3130 = vsel %vm3126, %v3114, %v3129
        %v3131 = vsel %vm3125, %v3128, %v3130
        %v3132 = vsel %vm3124, %v3111, %v3114
        %v3133 = vsel %vm3127, %v3120, 920167782
        %v3134 = vsel %vm3126, %v3117, %v3133
        %v3135 = vsel %vm3125, %v3132, %v3134
        %v3136 = vsel %vm3124, %v3114, %v3117
        %v3137 = vsel %vm3127, %v3123, 1326507024
        %v3138 = vsel %vm3126, %v3120, %v3137
        %v3139 = vsel %vm3125, %v3136, %v3138
        %v3140 = vshll.u32 %v3100, 8
        %v3141 = vmul.u32.u64.compose %v3140, %v3139
        %v3142 = vextract.low.u32 %v3141
        %v3143 = vextract.high.u32 %v3141
        %v3144 = vmul.u32.u64.compose %v3140, %v3135
        %v3145 = vextract.low.u32 %v3144
        %v3146 = vextract.high.u32 %v3144
        %v3147 = vmul.u32 %v3140, %v3131
        %v3148 = vadd.s32 %v3143, %v3145
        %vm3149 = vc.u32 %v3143, %v3145
        %v3150 = vadd.s32 %v3146, 1
        %v3151 = vsel %vm3149, %v3150, %v3146
        %v3152 = vadd.s32 %v3147, %v3151
        %v3153 = vadd.s32 %v3152, 536870912
        %v3154 = vshrl.u32 %v3153, 30
        %v3155 = vshll.u32 %v3154, 30
        %v3156 = vsub.s32 %v3152, %v3155
        %vm3157 = vcmp.lt.s32.totalorder %v3156, 0
        %v3158 = vsub.s32 0, %v3156
        %v3159 = vsel %vm3157, %v3158, %v3156
        %v3160 = vclz %v3159
        %v3161 = vsub.s32 %v3160, 2
        %vm3162 = vcmp.gt.s32.totalorder 0, %v3161
        %v3163 = vsel %vm3162, 0, %v3161
        %v3164 = vsub.s32 32, %v3163
        %v3165 = vshll.u32 %v3156, %v3163
        %v3166 = vshrl.u32 %v3148, %v3164
        %v3167 = vor.u32 %v3165, %v3166
        %v3168 = vsub.s32 4294967266, %v3163
        %v3169 = vadd.s32 %v3168, 127
        %v3170 = vshll.u32 %v3169, 23
        %v3171 = vor.u32 4788187, %v3170
        %v3172 = vand.u32 2147483647, %v3171
        %v3174 = vcvt.s32.f32 %v3167
        %v3175 = vmul.f32 %v3174, %v3172
        %v3176 = vxor.u32 %v3175, 2147483648
        %v3177 = vsel %vm3094, %v3176, %v3175
        %v3178 = vsub.s32 4, %v3154
        %v3179 = vsel %vm3094, %v3178, %v3154
        %v3180 = vsel %vm3093, %v3090, %v3177
        %v3181 = vsel %vm3093, 0, %v3179
        %v3182 = vcosq.f32.pop %v3180
        %v3183 = vsinq.f32.pop %v3180
        %vm3184 = vweird.f32 %v3090
        %v3185 = vand.u32 %v3181, 3
        %vm3186 = vcmp.lt.s32.totalorder %v3185, 2
        %vm3187 = vcmp.eq.s32.totalorder %v3185, 0
        %v3188 = vxor.u32 %v3183, 2147483648
        %v3189 = vsel %vm3187, %v3182, %v3188
        %vm3190 = vcmp.eq.s32.totalorder %v3185, 2
        %v3191 = vxor.u32 %v3182, 2147483648
        %v3192 = vsel %vm3190, %v3191, %v3183
        %v3193 = vsel %vm3186, %v3189, %v3192
        %v3194 = vsel %vm3184, nan, %v3193
        %v3195 = vand.u32 2147483647, %v3091
        %vm3196 = vcmp.le.f32.partialorder %v3195, 0.7853982
        %vm3197 = vcmp.lt.s32.totalorder %v3091, 0
        %v3198 = vand.u32 %v3091, 2139095040
        %v3199 = vshrl.u32 %v3198, 23
        %v3200 = vsub.s32 %v3199, 127
        %v3201 = vand.u32 2147483647, %v3091
        %v3202 = vand.u32 %v3201, 8388607
        %v3203 = vor.u32 %v3202, 8388608
        %v3204 = vsub.s32 0, %v3203
        %v3205 = vadd.s32 %v3200, 1
        %vm3206 = vcmp.gt.s32.totalorder %v3205, 0
        %v3207 = vsel %vm3206, %v3205, 0
        %v3208 = vshrl.u32 %v3207, 5
        %v3209 = vand.u32 %v3207, 31
        %v3210 = vsub.s32 32, %v3209
        %v3211 = vshrl.u32 683565275, %v3210
        %v3212 = vshll.u32 683565275, %v3209
        %v3213 = vshrl.u32 2475754826, %v3210
        %v3214 = vor.u32 %v3212, %v3213
        %v3215 = vshll.u32 2475754826, %v3209
        %v3216 = vshrl.u32 2131351028, %v3210
        %v3217 = vor.u32 %v3215, %v3216
        %v3218 = vshll.u32 2131351028, %v3209
        %v3219 = vshrl.u32 2102212464, %v3210
        %v3220 = vor.u32 %v3218, %v3219
        %v3221 = vshll.u32 2102212464, %v3209
        %v3222 = vshrl.u32 920167782, %v3210
        %v3223 = vor.u32 %v3221, %v3222
        %v3224 = vshll.u32 920167782, %v3209
        %v3225 = vshrl.u32 1326507024, %v3210
        %v3226 = vor.u32 %v3224, %v3225
        %vm3227 = vcmp.lt.s32.totalorder %v3208, 1
        %vm3228 = vcmp.lt.s32.totalorder %v3208, 2
        %vm3229 = vcmp.lt.s32.totalorder %v3208, 3
        %vm3230 = vcmp.lt.s32.totalorder %v3208, 4
        %v3231 = vsel %vm3227, %v3211, %v3214
        %v3232 = vsel %vm3230, %v3220, 2102212464
        %v3233 = vsel %vm3229, %v3217, %v3232
        %v3234 = vsel %vm3228, %v3231, %v3233
        %v3235 = vsel %vm3227, %v3214, %v3217
        %v3236 = vsel %vm3230, %v3223, 920167782
        %v3237 = vsel %vm3229, %v3220, %v3236
        %v3238 = vsel %vm3228, %v3235, %v3237
        %v3239 = vsel %vm3227, %v3217, %v3220
        %v3240 = vsel %vm3230, %v3226, 1326507024
        %v3241 = vsel %vm3229, %v3223, %v3240
        %v3242 = vsel %vm3228, %v3239, %v3241
        %v3243 = vshll.u32 %v3203, 8
        %v3244 = vmul.u32.u64.compose %v3243, %v3242
        %v3245 = vextract.low.u32 %v3244
        %v3246 = vextract.high.u32 %v3244
        %v3247 = vmul.u32.u64.compose %v3243, %v3238
        %v3248 = vextract.low.u32 %v3247
        %v3249 = vextract.high.u32 %v3247
        %v3250 = vmul.u32 %v3243, %v3234
        %v3251 = vadd.s32 %v3246, %v3248
        %vm3252 = vc.u32 %v3246, %v3248
        %v3253 = vadd.s32 %v3249, 1
        %v3254 = vsel %vm3252, %v3253, %v3249
        %v3255 = vadd.s32 %v3250, %v3254
        %v3256 = vadd.s32 %v3255, 536870912
        %v3257 = vshrl.u32 %v3256, 30
        %v3258 = vshll.u32 %v3257, 30
        %v3259 = vsub.s32 %v3255, %v3258
        %vm3260 = vcmp.lt.s32.totalorder %v3259, 0
        %v3261 = vsub.s32 0, %v3259
        %v3262 = vsel %vm3260, %v3261, %v3259
        %v3263 = vclz %v3262
        %v3264 = vsub.s32 %v3263, 2
        %vm3265 = vcmp.gt.s32.totalorder 0, %v3264
        %v3266 = vsel %vm3265, 0, %v3264
        %v3267 = vsub.s32 32, %v3266
        %v3268 = vshll.u32 %v3259, %v3266
        %v3269 = vshrl.u32 %v3251, %v3267
        %v3270 = vor.u32 %v3268, %v3269
        %v3271 = vsub.s32 4294967266, %v3266
        %v3272 = vadd.s32 %v3271, 127
        %v3273 = vshll.u32 %v3272, 23
        %v3274 = vor.u32 4788187, %v3273
        %v3275 = vand.u32 2147483647, %v3274
        %v3277 = vcvt.s32.f32 %v3270
        %v3278 = vmul.f32 %v3277, %v3275
        %v3279 = vxor.u32 %v3278, 2147483648
        %v3280 = vsel %vm3197, %v3279, %v3278
        %v3281 = vsub.s32 4, %v3257
        %v3282 = vsel %vm3197, %v3281, %v3257
        %v3283 = vsel %vm3196, %v3091, %v3280
        %v3284 = vsel %vm3196, 0, %v3282
        %v3285 = vcosq.f32.pop %v3283
        %v3286 = vsinq.f32.pop %v3283
        %vm3287 = vweird.f32 %v3091
        %v3288 = vand.u32 %v3284, 3
        %vm3289 = vcmp.lt.s32.totalorder %v3288, 2
        %vm3290 = vcmp.eq.s32.totalorder %v3288, 0
        %v3291 = vxor.u32 %v3286, 2147483648
        %v3292 = vsel %vm3290, %v3285, %v3291
        %vm3293 = vcmp.eq.s32.totalorder %v3288, 2
        %v3294 = vxor.u32 %v3285, 2147483648
        %v3295 = vsel %vm3293, %v3294, %v3286
        %v3296 = vsel %vm3289, %v3292, %v3295
        %v3297 = vsel %vm3287, nan, %v3296
        %3300 = vrot.lane.b32.xlu0 %v3194, 127
        %v3301 = vpop.permute.xlu0 %3300
        %3302 = vrot.lane.b32.xlu0 %v3297, 127
        %v3303 = vpop.permute.xlu0 %3302
        %v3306 = vadd.f32 %v3086, %v3301
        %v3307 = vadd.f32 %v3087, %v3303
        %v3308 = vld [vmem:[%s2873 + $0x1] sm:$0xff]
        %v3309 = vld [vmem:[%s2873 + $0x9] sm:$0x7f]
        %s3310 = sld [smem:[#allocation6 + $0xe]]
        %v3311 = vstv %s3310
        %v3312 = vadd.f32 %v3308, %v3311
        %v3313 = vadd.f32 %v3309, %v3311
        %v3314 = vand.u32 2147483647, %v3312
        %vm3315 = vcmp.le.f32.partialorder %v3314, 0.7853982
        %vm3316 = vcmp.lt.s32.totalorder %v3312, 0
        %v3317 = vand.u32 %v3312, 2139095040
        %v3318 = vshrl.u32 %v3317, 23
        %v3319 = vsub.s32 %v3318, 127
        %v3320 = vand.u32 2147483647, %v3312
        %v3321 = vand.u32 %v3320, 8388607
        %v3322 = vor.u32 %v3321, 8388608
        %v3323 = vsub.s32 0, %v3322
        %v3324 = vadd.s32 %v3319, 1
        %vm3325 = vcmp.gt.s32.totalorder %v3324, 0
        %v3326 = vsel %vm3325, %v3324, 0
        %v3327 = vshrl.u32 %v3326, 5
        %v3328 = vand.u32 %v3326, 31
        %v3329 = vsub.s32 32, %v3328
        %v3330 = vshrl.u32 683565275, %v3329
        %v3331 = vshll.u32 683565275, %v3328
        %v3332 = vshrl.u32 2475754826, %v3329
        %v3333 = vor.u32 %v3331, %v3332
        %v3334 = vshll.u32 2475754826, %v3328
        %v3335 = vshrl.u32 2131351028, %v3329
        %v3336 = vor.u32 %v3334, %v3335
        %v3337 = vshll.u32 2131351028, %v3328
        %v3338 = vshrl.u32 2102212464, %v3329
        %v3339 = vor.u32 %v3337, %v3338
        %v3340 = vshll.u32 2102212464, %v3328
        %v3341 = vshrl.u32 920167782, %v3329
        %v3342 = vor.u32 %v3340, %v3341
        %v3343 = vshll.u32 920167782, %v3328
        %v3344 = vshrl.u32 1326507024, %v3329
        %v3345 = vor.u32 %v3343, %v3344
        %vm3346 = vcmp.lt.s32.totalorder %v3327, 1
        %vm3347 = vcmp.lt.s32.totalorder %v3327, 2
        %vm3348 = vcmp.lt.s32.totalorder %v3327, 3
        %vm3349 = vcmp.lt.s32.totalorder %v3327, 4
        %v3350 = vsel %vm3346, %v3330, %v3333
        %v3351 = vsel %vm3349, %v3339, 2102212464
        %v3352 = vsel %vm3348, %v3336, %v3351
        %v3353 = vsel %vm3347, %v3350, %v3352
        %v3354 = vsel %vm3346, %v3333, %v3336
        %v3355 = vsel %vm3349, %v3342, 920167782
        %v3356 = vsel %vm3348, %v3339, %v3355
        %v3357 = vsel %vm3347, %v3354, %v3356
        %v3358 = vsel %vm3346, %v3336, %v3339
        %v3359 = vsel %vm3349, %v3345, 1326507024
        %v3360 = vsel %vm3348, %v3342, %v3359
        %v3361 = vsel %vm3347, %v3358, %v3360
        %v3362 = vshll.u32 %v3322, 8
        %v3363 = vmul.u32.u64.compose %v3362, %v3361
        %v3364 = vextract.low.u32 %v3363
        %v3365 = vextract.high.u32 %v3363
        %v3366 = vmul.u32.u64.compose %v3362, %v3357
        %v3367 = vextract.low.u32 %v3366
        %v3368 = vextract.high.u32 %v3366
        %v3369 = vmul.u32 %v3362, %v3353
        %v3370 = vadd.s32 %v3365, %v3367
        %vm3371 = vc.u32 %v3365, %v3367
        %v3372 = vadd.s32 %v3368, 1
        %v3373 = vsel %vm3371, %v3372, %v3368
        %v3374 = vadd.s32 %v3369, %v3373
        %v3375 = vadd.s32 %v3374, 536870912
        %v3376 = vshrl.u32 %v3375, 30
        %v3377 = vshll.u32 %v3376, 30
        %v3378 = vsub.s32 %v3374, %v3377
        %vm3379 = vcmp.lt.s32.totalorder %v3378, 0
        %v3380 = vsub.s32 0, %v3378
        %v3381 = vsel %vm3379, %v3380, %v3378
        %v3382 = vclz %v3381
        %v3383 = vsub.s32 %v3382, 2
        %vm3384 = vcmp.gt.s32.totalorder 0, %v3383
        %v3385 = vsel %vm3384, 0, %v3383
        %v3386 = vsub.s32 32, %v3385
        %v3387 = vshll.u32 %v3378, %v3385
        %v3388 = vshrl.u32 %v3370, %v3386
        %v3389 = vor.u32 %v3387, %v3388
        %v3390 = vsub.s32 4294967266, %v3385
        %v3391 = vadd.s32 %v3390, 127
        %v3392 = vshll.u32 %v3391, 23
        %v3393 = vor.u32 4788187, %v3392
        %v3394 = vand.u32 2147483647, %v3393
        %v3396 = vcvt.s32.f32 %v3389
        %v3397 = vmul.f32 %v3396, %v3394
        %v3398 = vxor.u32 %v3397, 2147483648
        %v3399 = vsel %vm3316, %v3398, %v3397
        %v3400 = vsub.s32 4, %v3376
        %v3401 = vsel %vm3316, %v3400, %v3376
        %v3402 = vsel %vm3315, %v3312, %v3399
        %v3403 = vsel %vm3315, 0, %v3401
        %v3404 = vcosq.f32.pop %v3402
        %v3405 = vsinq.f32.pop %v3402
        %vm3406 = vweird.f32 %v3312
        %v3407 = vand.u32 %v3403, 3
        %vm3408 = vcmp.lt.s32.totalorder %v3407, 2
        %vm3409 = vcmp.eq.s32.totalorder %v3407, 0
        %v3410 = vxor.u32 %v3405, 2147483648
        %v3411 = vsel %vm3409, %v3404, %v3410
        %vm3412 = vcmp.eq.s32.totalorder %v3407, 2
        %v3413 = vxor.u32 %v3404, 2147483648
        %v3414 = vsel %vm3412, %v3413, %v3405
        %v3415 = vsel %vm3408, %v3411, %v3414
        %v3416 = vsel %vm3406, nan, %v3415
        %v3417 = vand.u32 2147483647, %v3313
        %vm3418 = vcmp.le.f32.partialorder %v3417, 0.7853982
        %vm3419 = vcmp.lt.s32.totalorder %v3313, 0
        %v3420 = vand.u32 %v3313, 2139095040
        %v3421 = vshrl.u32 %v3420, 23
        %v3422 = vsub.s32 %v3421, 127
        %v3423 = vand.u32 2147483647, %v3313
        %v3424 = vand.u32 %v3423, 8388607
        %v3425 = vor.u32 %v3424, 8388608
        %v3426 = vsub.s32 0, %v3425
        %v3427 = vadd.s32 %v3422, 1
        %vm3428 = vcmp.gt.s32.totalorder %v3427, 0
        %v3429 = vsel %vm3428, %v3427, 0
        %v3430 = vshrl.u32 %v3429, 5
        %v3431 = vand.u32 %v3429, 31
        %v3432 = vsub.s32 32, %v3431
        %v3433 = vshrl.u32 683565275, %v3432
        %v3434 = vshll.u32 683565275, %v3431
        %v3435 = vshrl.u32 2475754826, %v3432
        %v3436 = vor.u32 %v3434, %v3435
        %v3437 = vshll.u32 2475754826, %v3431
        %v3438 = vshrl.u32 2131351028, %v3432
        %v3439 = vor.u32 %v3437, %v3438
        %v3440 = vshll.u32 2131351028, %v3431
        %v3441 = vshrl.u32 2102212464, %v3432
        %v3442 = vor.u32 %v3440, %v3441
        %v3443 = vshll.u32 2102212464, %v3431
        %v3444 = vshrl.u32 920167782, %v3432
        %v3445 = vor.u32 %v3443, %v3444
        %v3446 = vshll.u32 920167782, %v3431
        %v3447 = vshrl.u32 1326507024, %v3432
        %v3448 = vor.u32 %v3446, %v3447
        %vm3449 = vcmp.lt.s32.totalorder %v3430, 1
        %vm3450 = vcmp.lt.s32.totalorder %v3430, 2
        %vm3451 = vcmp.lt.s32.totalorder %v3430, 3
        %vm3452 = vcmp.lt.s32.totalorder %v3430, 4
        %v3453 = vsel %vm3449, %v3433, %v3436
        %v3454 = vsel %vm3452, %v3442, 2102212464
        %v3455 = vsel %vm3451, %v3439, %v3454
        %v3456 = vsel %vm3450, %v3453, %v3455
        %v3457 = vsel %vm3449, %v3436, %v3439
        %v3458 = vsel %vm3452, %v3445, 920167782
        %v3459 = vsel %vm3451, %v3442, %v3458
        %v3460 = vsel %vm3450, %v3457, %v3459
        %v3461 = vsel %vm3449, %v3439, %v3442
        %v3462 = vsel %vm3452, %v3448, 1326507024
        %v3463 = vsel %vm3451, %v3445, %v3462
        %v3464 = vsel %vm3450, %v3461, %v3463
        %v3465 = vshll.u32 %v3425, 8
        %v3466 = vmul.u32.u64.compose %v3465, %v3464
        %v3467 = vextract.low.u32 %v3466
        %v3468 = vextract.high.u32 %v3466
        %v3469 = vmul.u32.u64.compose %v3465, %v3460
        %v3470 = vextract.low.u32 %v3469
        %v3471 = vextract.high.u32 %v3469
        %v3472 = vmul.u32 %v3465, %v3456
        %v3473 = vadd.s32 %v3468, %v3470
        %vm3474 = vc.u32 %v3468, %v3470
        %v3475 = vadd.s32 %v3471, 1
        %v3476 = vsel %vm3474, %v3475, %v3471
        %v3477 = vadd.s32 %v3472, %v3476
        %v3478 = vadd.s32 %v3477, 536870912
        %v3479 = vshrl.u32 %v3478, 30
        %v3480 = vshll.u32 %v3479, 30
        %v3481 = vsub.s32 %v3477, %v3480
        %vm3482 = vcmp.lt.s32.totalorder %v3481, 0
        %v3483 = vsub.s32 0, %v3481
        %v3484 = vsel %vm3482, %v3483, %v3481
        %v3485 = vclz %v3484
        %v3486 = vsub.s32 %v3485, 2
        %vm3487 = vcmp.gt.s32.totalorder 0, %v3486
        %v3488 = vsel %vm3487, 0, %v3486
        %v3489 = vsub.s32 32, %v3488
        %v3490 = vshll.u32 %v3481, %v3488
        %v3491 = vshrl.u32 %v3473, %v3489
        %v3492 = vor.u32 %v3490, %v3491
        %v3493 = vsub.s32 4294967266, %v3488
        %v3494 = vadd.s32 %v3493, 127
        %v3495 = vshll.u32 %v3494, 23
        %v3496 = vor.u32 4788187, %v3495
        %v3497 = vand.u32 2147483647, %v3496
        %v3499 = vcvt.s32.f32 %v3492
        %v3500 = vmul.f32 %v3499, %v3497
        %v3501 = vxor.u32 %v3500, 2147483648
        %v3502 = vsel %vm3419, %v3501, %v3500
        %v3503 = vsub.s32 4, %v3479
        %v3504 = vsel %vm3419, %v3503, %v3479
        %v3505 = vsel %vm3418, %v3313, %v3502
        %v3506 = vsel %vm3418, 0, %v3504
        %v3507 = vcosq.f32.pop %v3505
        %v3508 = vsinq.f32.pop %v3505
        %vm3509 = vweird.f32 %v3313
        %v3510 = vand.u32 %v3506, 3
        %vm3511 = vcmp.lt.s32.totalorder %v3510, 2
        %vm3512 = vcmp.eq.s32.totalorder %v3510, 0
        %v3513 = vxor.u32 %v3508, 2147483648
        %v3514 = vsel %vm3512, %v3507, %v3513
        %vm3515 = vcmp.eq.s32.totalorder %v3510, 2
        %v3516 = vxor.u32 %v3507, 2147483648
        %v3517 = vsel %vm3515, %v3516, %v3508
        %v3518 = vsel %vm3511, %v3514, %v3517
        %v3519 = vsel %vm3509, nan, %v3518
        %v3520 = vadd.f32 %v3306, %v3416
        %v3521 = vadd.f32 %v3307, %v3519
        %s3522 = sld [smem:[#allocation6 + $0xf]]
        %v3523 = vstv %s3522
        %v3524 = vadd.f32 %v3308, %v3523
        %v3525 = vadd.f32 %v3309, %v3523
        %v3526 = vand.u32 2147483647, %v3524
        %vm3527 = vcmp.le.f32.partialorder %v3526, 0.7853982
        %vm3528 = vcmp.lt.s32.totalorder %v3524, 0
        %v3529 = vand.u32 %v3524, 2139095040
        %v3530 = vshrl.u32 %v3529, 23
        %v3531 = vsub.s32 %v3530, 127
        %v3532 = vand.u32 2147483647, %v3524
        %v3533 = vand.u32 %v3532, 8388607
        %v3534 = vor.u32 %v3533, 8388608
        %v3535 = vsub.s32 0, %v3534
        %v3536 = vadd.s32 %v3531, 1
        %vm3537 = vcmp.gt.s32.totalorder %v3536, 0
        %v3538 = vsel %vm3537, %v3536, 0
        %v3539 = vshrl.u32 %v3538, 5
        %v3540 = vand.u32 %v3538, 31
        %v3541 = vsub.s32 32, %v3540
        %v3542 = vshrl.u32 683565275, %v3541
        %v3543 = vshll.u32 683565275, %v3540
        %v3544 = vshrl.u32 2475754826, %v3541
        %v3545 = vor.u32 %v3543, %v3544
        %v3546 = vshll.u32 2475754826, %v3540
        %v3547 = vshrl.u32 2131351028, %v3541
        %v3548 = vor.u32 %v3546, %v3547
        %v3549 = vshll.u32 2131351028, %v3540
        %v3550 = vshrl.u32 2102212464, %v3541
        %v3551 = vor.u32 %v3549, %v3550
        %v3552 = vshll.u32 2102212464, %v3540
        %v3553 = vshrl.u32 920167782, %v3541
        %v3554 = vor.u32 %v3552, %v3553
        %v3555 = vshll.u32 920167782, %v3540
        %v3556 = vshrl.u32 1326507024, %v3541
        %v3557 = vor.u32 %v3555, %v3556
        %vm3558 = vcmp.lt.s32.totalorder %v3539, 1
        %vm3559 = vcmp.lt.s32.totalorder %v3539, 2
        %vm3560 = vcmp.lt.s32.totalorder %v3539, 3
        %vm3561 = vcmp.lt.s32.totalorder %v3539, 4
        %v3562 = vsel %vm3558, %v3542, %v3545
        %v3563 = vsel %vm3561, %v3551, 2102212464
        %v3564 = vsel %vm3560, %v3548, %v3563
        %v3565 = vsel %vm3559, %v3562, %v3564
        %v3566 = vsel %vm3558, %v3545, %v3548
        %v3567 = vsel %vm3561, %v3554, 920167782
        %v3568 = vsel %vm3560, %v3551, %v3567
        %v3569 = vsel %vm3559, %v3566, %v3568
        %v3570 = vsel %vm3558, %v3548, %v3551
        %v3571 = vsel %vm3561, %v3557, 1326507024
        %v3572 = vsel %vm3560, %v3554, %v3571
        %v3573 = vsel %vm3559, %v3570, %v3572
        %v3574 = vshll.u32 %v3534, 8
        %v3575 = vmul.u32.u64.compose %v3574, %v3573
        %v3576 = vextract.low.u32 %v3575
        %v3577 = vextract.high.u32 %v3575
        %v3578 = vmul.u32.u64.compose %v3574, %v3569
        %v3579 = vextract.low.u32 %v3578
        %v3580 = vextract.high.u32 %v3578
        %v3581 = vmul.u32 %v3574, %v3565
        %v3582 = vadd.s32 %v3577, %v3579
        %vm3583 = vc.u32 %v3577, %v3579
        %v3584 = vadd.s32 %v3580, 1
        %v3585 = vsel %vm3583, %v3584, %v3580
        %v3586 = vadd.s32 %v3581, %v3585
        %v3587 = vadd.s32 %v3586, 536870912
        %v3588 = vshrl.u32 %v3587, 30
        %v3589 = vshll.u32 %v3588, 30
        %v3590 = vsub.s32 %v3586, %v3589
        %vm3591 = vcmp.lt.s32.totalorder %v3590, 0
        %v3592 = vsub.s32 0, %v3590
        %v3593 = vsel %vm3591, %v3592, %v3590
        %v3594 = vclz %v3593
        %v3595 = vsub.s32 %v3594, 2
        %vm3596 = vcmp.gt.s32.totalorder 0, %v3595
        %v3597 = vsel %vm3596, 0, %v3595
        %v3598 = vsub.s32 32, %v3597
        %v3599 = vshll.u32 %v3590, %v3597
        %v3600 = vshrl.u32 %v3582, %v3598
        %v3601 = vor.u32 %v3599, %v3600
        %v3602 = vsub.s32 4294967266, %v3597
        %v3603 = vadd.s32 %v3602, 127
        %v3604 = vshll.u32 %v3603, 23
        %v3605 = vor.u32 4788187, %v3604
        %v3606 = vand.u32 2147483647, %v3605
        %v3608 = vcvt.s32.f32 %v3601
        %v3609 = vmul.f32 %v3608, %v3606
        %v3610 = vxor.u32 %v3609, 2147483648
        %v3611 = vsel %vm3528, %v3610, %v3609
        %v3612 = vsub.s32 4, %v3588
        %v3613 = vsel %vm3528, %v3612, %v3588
        %v3614 = vsel %vm3527, %v3524, %v3611
        %v3615 = vsel %vm3527, 0, %v3613
        %v3616 = vcosq.f32.pop %v3614
        %v3617 = vsinq.f32.pop %v3614
        %vm3618 = vweird.f32 %v3524
        %v3619 = vand.u32 %v3615, 3
        %vm3620 = vcmp.lt.s32.totalorder %v3619, 2
        %vm3621 = vcmp.eq.s32.totalorder %v3619, 0
        %v3622 = vxor.u32 %v3617, 2147483648
        %v3623 = vsel %vm3621, %v3616, %v3622
        %vm3624 = vcmp.eq.s32.totalorder %v3619, 2
        %v3625 = vxor.u32 %v3616, 2147483648
        %v3626 = vsel %vm3624, %v3625, %v3617
        %v3627 = vsel %vm3620, %v3623, %v3626
        %v3628 = vsel %vm3618, nan, %v3627
        %v3629 = vand.u32 2147483647, %v3525
        %vm3630 = vcmp.le.f32.partialorder %v3629, 0.7853982
        %vm3631 = vcmp.lt.s32.totalorder %v3525, 0
        %v3632 = vand.u32 %v3525, 2139095040
        %v3633 = vshrl.u32 %v3632, 23
        %v3634 = vsub.s32 %v3633, 127
        %v3635 = vand.u32 2147483647, %v3525
        %v3636 = vand.u32 %v3635, 8388607
        %v3637 = vor.u32 %v3636, 8388608
        %v3638 = vsub.s32 0, %v3637
        %v3639 = vadd.s32 %v3634, 1
        %vm3640 = vcmp.gt.s32.totalorder %v3639, 0
        %v3641 = vsel %vm3640, %v3639, 0
        %v3642 = vshrl.u32 %v3641, 5
        %v3643 = vand.u32 %v3641, 31
        %v3644 = vsub.s32 32, %v3643
        %v3645 = vshrl.u32 683565275, %v3644
        %v3646 = vshll.u32 683565275, %v3643
        %v3647 = vshrl.u32 2475754826, %v3644
        %v3648 = vor.u32 %v3646, %v3647
        %v3649 = vshll.u32 2475754826, %v3643
        %v3650 = vshrl.u32 2131351028, %v3644
        %v3651 = vor.u32 %v3649, %v3650
        %v3652 = vshll.u32 2131351028, %v3643
        %v3653 = vshrl.u32 2102212464, %v3644
        %v3654 = vor.u32 %v3652, %v3653
        %v3655 = vshll.u32 2102212464, %v3643
        %v3656 = vshrl.u32 920167782, %v3644
        %v3657 = vor.u32 %v3655, %v3656
        %v3658 = vshll.u32 920167782, %v3643
        %v3659 = vshrl.u32 1326507024, %v3644
        %v3660 = vor.u32 %v3658, %v3659
        %vm3661 = vcmp.lt.s32.totalorder %v3642, 1
        %vm3662 = vcmp.lt.s32.totalorder %v3642, 2
        %vm3663 = vcmp.lt.s32.totalorder %v3642, 3
        %vm3664 = vcmp.lt.s32.totalorder %v3642, 4
        %v3665 = vsel %vm3661, %v3645, %v3648
        %v3666 = vsel %vm3664, %v3654, 2102212464
        %v3667 = vsel %vm3663, %v3651, %v3666
        %v3668 = vsel %vm3662, %v3665, %v3667
        %v3669 = vsel %vm3661, %v3648, %v3651
        %v3670 = vsel %vm3664, %v3657, 920167782
        %v3671 = vsel %vm3663, %v3654, %v3670
        %v3672 = vsel %vm3662, %v3669, %v3671
        %v3673 = vsel %vm3661, %v3651, %v3654
        %v3674 = vsel %vm3664, %v3660, 1326507024
        %v3675 = vsel %vm3663, %v3657, %v3674
        %v3676 = vsel %vm3662, %v3673, %v3675
        %v3677 = vshll.u32 %v3637, 8
        %v3678 = vmul.u32.u64.compose %v3677, %v3676
        %v3679 = vextract.low.u32 %v3678
        %v3680 = vextract.high.u32 %v3678
        %v3681 = vmul.u32.u64.compose %v3677, %v3672
        %v3682 = vextract.low.u32 %v3681
        %v3683 = vextract.high.u32 %v3681
        %v3684 = vmul.u32 %v3677, %v3668
        %v3685 = vadd.s32 %v3680, %v3682
        %vm3686 = vc.u32 %v3680, %v3682
        %v3687 = vadd.s32 %v3683, 1
        %v3688 = vsel %vm3686, %v3687, %v3683
        %v3689 = vadd.s32 %v3684, %v3688
        %v3690 = vadd.s32 %v3689, 536870912
        %v3691 = vshrl.u32 %v3690, 30
        %v3692 = vshll.u32 %v3691, 30
        %v3693 = vsub.s32 %v3689, %v3692
        %vm3694 = vcmp.lt.s32.totalorder %v3693, 0
        %v3695 = vsub.s32 0, %v3693
        %v3696 = vsel %vm3694, %v3695, %v3693
        %v3697 = vclz %v3696
        %v3698 = vsub.s32 %v3697, 2
        %vm3699 = vcmp.gt.s32.totalorder 0, %v3698
        %v3700 = vsel %vm3699, 0, %v3698
        %v3701 = vsub.s32 32, %v3700
        %v3702 = vshll.u32 %v3693, %v3700
        %v3703 = vshrl.u32 %v3685, %v3701
        %v3704 = vor.u32 %v3702, %v3703
        %v3705 = vsub.s32 4294967266, %v3700
        %v3706 = vadd.s32 %v3705, 127
        %v3707 = vshll.u32 %v3706, 23
        %v3708 = vor.u32 4788187, %v3707
        %v3709 = vand.u32 2147483647, %v3708
        %v3711 = vcvt.s32.f32 %v3704
        %v3712 = vmul.f32 %v3711, %v3709
        %v3713 = vxor.u32 %v3712, 2147483648
        %v3714 = vsel %vm3631, %v3713, %v3712
        %v3715 = vsub.s32 4, %v3691
        %v3716 = vsel %vm3631, %v3715, %v3691
        %v3717 = vsel %vm3630, %v3525, %v3714
        %v3718 = vsel %vm3630, 0, %v3716
        %v3719 = vcosq.f32.pop %v3717
        %v3720 = vsinq.f32.pop %v3717
        %vm3721 = vweird.f32 %v3525
        %v3722 = vand.u32 %v3718, 3
        %vm3723 = vcmp.lt.s32.totalorder %v3722, 2
        %vm3724 = vcmp.eq.s32.totalorder %v3722, 0
        %v3725 = vxor.u32 %v3720, 2147483648
        %v3726 = vsel %vm3724, %v3719, %v3725
        %vm3727 = vcmp.eq.s32.totalorder %v3722, 2
        %v3728 = vxor.u32 %v3719, 2147483648
        %v3729 = vsel %vm3727, %v3728, %v3720
        %v3730 = vsel %vm3723, %v3726, %v3729
        %v3731 = vsel %vm3721, nan, %v3730
        %3734 = vrot.lane.b32.xlu0 %v3628, 127
        %v3735 = vpop.permute.xlu0 %3734
        %3736 = vrot.lane.b32.xlu0 %v3731, 127
        %v3737 = vpop.permute.xlu0 %3736
        %v3740 = vadd.f32 %v3520, %v3735
        %v3741 = vadd.f32 %v3521, %v3737
        %s3742 = scalar_lea.vmem [#allocation2], 48
        %3743 = vst.msk [vmem:[%s3742] sm:$0xff] %vm1125, %v3740
        %3744 = vst.msk [vmem:[%s3742 + $0x8] sm:$0x7f] %vm1127, %v3741
        %s3745 = sld [smem:[#allocation9]]
        %v3746 = vstv %s3745
        %v3747 = vadd.f32 %v3746, 0.0
        %s3748 = sld [smem:[#allocation7]]
        %v3749 = vld [vmem:[#allocation2] sm:$0xff]
        %v3750 = vld [vmem:[#allocation2 + $0x8] sm:$0x7f]
        %v3751 = vstv %s3748
        %v3752 = vmul.f32 %v3751, %v3749
        %v3753 = vmul.f32 %v3751, %v3750
        %v3754 = vadd.f32 %v3747, %v3752
        %v3755 = vadd.f32 %v3747, %v3753
        %s3756 = sld [smem:[#allocation7 + $0x1]]
        %v3757 = vld [vmem:[%s1998] sm:$0xff]
        %v3758 = vld [vmem:[%s1998 + $0x8] sm:$0x7f]
        %v3759 = vstv %s3756
        %v3760 = vmul.f32 %v3759, %v3757
        %v3761 = vmul.f32 %v3759, %v3758
        %v3762 = vadd.f32 %v3754, %v3760
        %v3763 = vadd.f32 %v3755, %v3761
        %s3764 = sld [smem:[#allocation7 + $0x2]]
        %v3765 = vld [vmem:[%s2870] sm:$0xff]
        %v3766 = vld [vmem:[%s2870 + $0x8] sm:$0x7f]
        %v3767 = vstv %s3764
        %v3768 = vmul.f32 %v3767, %v3765
        %v3769 = vmul.f32 %v3767, %v3766
        %v3770 = vadd.f32 %v3762, %v3768
        %v3771 = vadd.f32 %v3763, %v3769
        %s3772 = sld [smem:[#allocation7 + $0x3]]
        %v3773 = vld [vmem:[%s3742] sm:$0xff]
        %v3774 = vld [vmem:[%s3742 + $0x8] sm:$0x7f]
        %v3775 = vstv %s3772
        %v3776 = vmul.f32 %v3775, %v3773
        %v3777 = vmul.f32 %v3775, %v3774
        %v3778 = vadd.f32 %v3770, %v3776
        %v3779 = vadd.f32 %v3771, %v3777
        %3780 = vst.msk [vmem:[%s256] sm:$0xff] %vm1125, %v3778
        %3781 = vst.msk [vmem:[%s256 + $0x8] sm:$0x7f] %vm1127, %v3779
        %s3782 = sld [smem:[#allocation9 + $0x1]]
        %v3783 = vstv %s3782
        %v3784 = vadd.f32 %v3783, 0.0
        %s3785 = sld [smem:[#allocation7 + $0x4]]
        %v3786 = vld [vmem:[#allocation2] sm:$0xff]
        %v3787 = vld [vmem:[#allocation2 + $0x8] sm:$0x7f]
        %v3788 = vstv %s3785
        %v3789 = vmul.f32 %v3788, %v3786
        %v3790 = vmul.f32 %v3788, %v3787
        %v3791 = vadd.f32 %v3784, %v3789
        %v3792 = vadd.f32 %v3784, %v3790
        %s3793 = sld [smem:[#allocation7 + $0x5]]
        %v3794 = vld [vmem:[%s1998] sm:$0xff]
        %v3795 = vld [vmem:[%s1998 + $0x8] sm:$0x7f]
        %v3796 = vstv %s3793
        %v3797 = vmul.f32 %v3796, %v3794
        %v3798 = vmul.f32 %v3796, %v3795
        %v3799 = vadd.f32 %v3791, %v3797
        %v3800 = vadd.f32 %v3792, %v3798
        %s3801 = sld [smem:[#allocation7 + $0x6]]
        %v3802 = vld [vmem:[%s2870] sm:$0xff]
        %v3803 = vld [vmem:[%s2870 + $0x8] sm:$0x7f]
        %v3804 = vstv %s3801
        %v3805 = vmul.f32 %v3804, %v3802
        %v3806 = vmul.f32 %v3804, %v3803
        %v3807 = vadd.f32 %v3799, %v3805
        %v3808 = vadd.f32 %v3800, %v3806
        %s3809 = sld [smem:[#allocation7 + $0x7]]
        %v3810 = vld [vmem:[%s3742] sm:$0xff]
        %v3811 = vld [vmem:[%s3742 + $0x8] sm:$0x7f]
        %v3812 = vstv %s3809
        %v3813 = vmul.f32 %v3812, %v3810
        %v3814 = vmul.f32 %v3812, %v3811
        %v3815 = vadd.f32 %v3807, %v3813
        %v3816 = vadd.f32 %v3808, %v3814
        %s3817 = scalar_lea.vmem %s256, 16
        %3818 = vst.msk [vmem:[%s3817] sm:$0xff] %vm1125, %v3815
        %3819 = vst.msk [vmem:[%s3817 + $0x8] sm:$0x7f] %vm1127, %v3816
        %s3820 = sld [smem:[#allocation9 + $0x2]]
        %v3821 = vstv %s3820
        %v3822 = vadd.f32 %v3821, 0.0
        %s3823 = sld [smem:[#allocation7 + $0x8]]
        %v3824 = vld [vmem:[#allocation2] sm:$0xff]
        %v3825 = vld [vmem:[#allocation2 + $0x8] sm:$0x7f]
        %v3826 = vstv %s3823
        %v3827 = vmul.f32 %v3826, %v3824
        %v3828 = vmul.f32 %v3826, %v3825
        %v3829 = vadd.f32 %v3822, %v3827
        %v3830 = vadd.f32 %v3822, %v3828
        %s3831 = sld [smem:[#allocation7 + $0x9]]
        %v3832 = vld [vmem:[%s1998] sm:$0xff]
        %v3833 = vld [vmem:[%s1998 + $0x8] sm:$0x7f]
        %v3834 = vstv %s3831
        %v3835 = vmul.f32 %v3834, %v3832
        %v3836 = vmul.f32 %v3834, %v3833
        %v3837 = vadd.f32 %v3829, %v3835
        %v3838 = vadd.f32 %v3830, %v3836
        %s3839 = sld [smem:[#allocation7 + $0xa]]
        %v3840 = vld [vmem:[%s2870] sm:$0xff]
        %v3841 = vld [vmem:[%s2870 + $0x8] sm:$0x7f]
        %v3842 = vstv %s3839
        %v3843 = vmul.f32 %v3842, %v3840
        %v3844 = vmul.f32 %v3842, %v3841
        %v3845 = vadd.f32 %v3837, %v3843
        %v3846 = vadd.f32 %v3838, %v3844
        %s3847 = sld [smem:[#allocation7 + $0xb]]
        %v3848 = vld [vmem:[%s3742] sm:$0xff]
        %v3849 = vld [vmem:[%s3742 + $0x8] sm:$0x7f]
        %v3850 = vstv %s3847
        %v3851 = vmul.f32 %v3850, %v3848
        %v3852 = vmul.f32 %v3850, %v3849
        %v3853 = vadd.f32 %v3845, %v3851
        %v3854 = vadd.f32 %v3846, %v3852
        %s3855 = scalar_lea.vmem %s256, 32
        %3856 = vst.msk [vmem:[%s3855] sm:$0xff] %vm1125, %v3853
        %3857 = vst.msk [vmem:[%s3855 + $0x8] sm:$0x7f] %vm1127, %v3854
        %s3858 = sld [smem:[#allocation9 + $0x3]]
        %v3859 = vstv %s3858
        %v3860 = vadd.f32 %v3859, 0.0
        %s3861 = sld [smem:[#allocation7 + $0xc]]
        %v3862 = vld [vmem:[#allocation2] sm:$0xff]
        %v3863 = vld [vmem:[#allocation2 + $0x8] sm:$0x7f]
        %v3864 = vstv %s3861
        %v3865 = vmul.f32 %v3864, %v3862
        %v3866 = vmul.f32 %v3864, %v3863
        %v3867 = vadd.f32 %v3860, %v3865
        %v3868 = vadd.f32 %v3860, %v3866
        %s3869 = sld [smem:[#allocation7 + $0xd]]
        %v3870 = vld [vmem:[%s1998] sm:$0xff]
        %v3871 = vld [vmem:[%s1998 + $0x8] sm:$0x7f]
        %v3872 = vstv %s3869
        %v3873 = vmul.f32 %v3872, %v3870
        %v3874 = vmul.f32 %v3872, %v3871
        %v3875 = vadd.f32 %v3867, %v3873
        %v3876 = vadd.f32 %v3868, %v3874
        %s3877 = sld [smem:[#allocation7 + $0xe]]
        %v3878 = vld [vmem:[%s2870] sm:$0xff]
        %v3879 = vld [vmem:[%s2870 + $0x8] sm:$0x7f]
        %v3880 = vstv %s3877
        %v3881 = vmul.f32 %v3880, %v3878
        %v3882 = vmul.f32 %v3880, %v3879
        %v3883 = vadd.f32 %v3875, %v3881
        %v3884 = vadd.f32 %v3876, %v3882
        %s3885 = sld [smem:[#allocation7 + $0xf]]
        %v3886 = vld [vmem:[%s3742] sm:$0xff]
        %v3887 = vld [vmem:[%s3742 + $0x8] sm:$0x7f]
        %v3888 = vstv %s3885
        %v3889 = vmul.f32 %v3888, %v3886
        %v3890 = vmul.f32 %v3888, %v3887
        %v3891 = vadd.f32 %v3883, %v3889
        %v3892 = vadd.f32 %v3884, %v3890
        %s3893 = scalar_lea.vmem %s256, 48
        %3894 = vst.msk [vmem:[%s3893] sm:$0xff] %vm1125, %v3891
        %3895 = vst.msk [vmem:[%s3893 + $0x8] sm:$0x7f] %vm1127, %v3892
        %s3896 = sld [smem:[#allocation9 + $0x4]]
        %v3897 = vstv %s3896
        %v3898 = vadd.f32 %v3897, 0.0
        %s3899 = sld [smem:[#allocation7 + $0x10]]
        %v3900 = vld [vmem:[#allocation2] sm:$0xff]
        %v3901 = vld [vmem:[#allocation2 + $0x8] sm:$0x7f]
        %v3902 = vstv %s3899
        %v3903 = vmul.f32 %v3902, %v3900
        %v3904 = vmul.f32 %v3902, %v3901
        %v3905 = vadd.f32 %v3898, %v3903
        %v3906 = vadd.f32 %v3898, %v3904
        %s3907 = sld [smem:[#allocation7 + $0x11]]
        %v3908 = vld [vmem:[%s1998] sm:$0xff]
        %v3909 = vld [vmem:[%s1998 + $0x8] sm:$0x7f]
        %v3910 = vstv %s3907
        %v3911 = vmul.f32 %v3910, %v3908
        %v3912 = vmul.f32 %v3910, %v3909
        %v3913 = vadd.f32 %v3905, %v3911
        %v3914 = vadd.f32 %v3906, %v3912
        %s3915 = sld [smem:[#allocation7 + $0x12]]
        %v3916 = vld [vmem:[%s2870] sm:$0xff]
        %v3917 = vld [vmem:[%s2870 + $0x8] sm:$0x7f]
        %v3918 = vstv %s3915
        %v3919 = vmul.f32 %v3918, %v3916
        %v3920 = vmul.f32 %v3918, %v3917
        %v3921 = vadd.f32 %v3913, %v3919
        %v3922 = vadd.f32 %v3914, %v3920
        %s3923 = sld [smem:[#allocation7 + $0x13]]
        %v3924 = vld [vmem:[%s3742] sm:$0xff]
        %v3925 = vld [vmem:[%s3742 + $0x8] sm:$0x7f]
        %v3926 = vstv %s3923
        %v3927 = vmul.f32 %v3926, %v3924
        %v3928 = vmul.f32 %v3926, %v3925
        %v3929 = vadd.f32 %v3921, %v3927
        %v3930 = vadd.f32 %v3922, %v3928
        %s3931 = scalar_lea.vmem %s256, 64
        %3932 = vst.msk [vmem:[%s3931] sm:$0xff] %vm1125, %v3929
        %3933 = vst.msk [vmem:[%s3931 + $0x8] sm:$0x7f] %vm1127, %v3930
        %s3934 = sld [smem:[#allocation9 + $0x5]]
        %v3935 = vstv %s3934
        %v3936 = vadd.f32 %v3935, 0.0
        %s3937 = sld [smem:[#allocation7 + $0x14]]
        %v3938 = vld [vmem:[#allocation2] sm:$0xff]
        %v3939 = vld [vmem:[#allocation2 + $0x8] sm:$0x7f]
        %v3940 = vstv %s3937
        %v3941 = vmul.f32 %v3940, %v3938
        %v3942 = vmul.f32 %v3940, %v3939
        %v3943 = vadd.f32 %v3936, %v3941
        %v3944 = vadd.f32 %v3936, %v3942
        %s3945 = sld [smem:[#allocation7 + $0x15]]
        %v3946 = vld [vmem:[%s1998] sm:$0xff]
        %v3947 = vld [vmem:[%s1998 + $0x8] sm:$0x7f]
        %v3948 = vstv %s3945
        %v3949 = vmul.f32 %v3948, %v3946
        %v3950 = vmul.f32 %v3948, %v3947
        %v3951 = vadd.f32 %v3943, %v3949
        %v3952 = vadd.f32 %v3944, %v3950
        %s3953 = sld [smem:[#allocation7 + $0x16]]
        %v3954 = vld [vmem:[%s2870] sm:$0xff]
        %v3955 = vld [vmem:[%s2870 + $0x8] sm:$0x7f]
        %v3956 = vstv %s3953
        %v3957 = vmul.f32 %v3956, %v3954
        %v3958 = vmul.f32 %v3956, %v3955
        %v3959 = vadd.f32 %v3951, %v3957
        %v3960 = vadd.f32 %v3952, %v3958
        %s3961 = sld [smem:[#allocation7 + $0x17]]
        %v3962 = vld [vmem:[%s3742] sm:$0xff]
        %v3963 = vld [vmem:[%s3742 + $0x8] sm:$0x7f]
        %v3964 = vstv %s3961
        %v3965 = vmul.f32 %v3964, %v3962
        %v3966 = vmul.f32 %v3964, %v3963
        %v3967 = vadd.f32 %v3959, %v3965
        %v3968 = vadd.f32 %v3960, %v3966
        %s3969 = scalar_lea.vmem %s256, 80
        %3970 = vst.msk [vmem:[%s3969] sm:$0xff] %vm1125, %v3967
        %3971 = vst.msk [vmem:[%s3969 + $0x8] sm:$0x7f] %vm1127, %v3968
        %s3972 = sld [smem:[#allocation9 + $0x6]]
        %v3973 = vstv %s3972
        %v3974 = vadd.f32 %v3973, 0.0
        %s3975 = sld [smem:[#allocation7 + $0x18]]
        %v3976 = vld [vmem:[#allocation2] sm:$0xff]
        %v3977 = vld [vmem:[#allocation2 + $0x8] sm:$0x7f]
        %v3978 = vstv %s3975
        %v3979 = vmul.f32 %v3978, %v3976
        %v3980 = vmul.f32 %v3978, %v3977
        %v3981 = vadd.f32 %v3974, %v3979
        %v3982 = vadd.f32 %v3974, %v3980
        %s3983 = sld [smem:[#allocation7 + $0x19]]
        %v3984 = vld [vmem:[%s1998] sm:$0xff]
        %v3985 = vld [vmem:[%s1998 + $0x8] sm:$0x7f]
        %v3986 = vstv %s3983
        %v3987 = vmul.f32 %v3986, %v3984
        %v3988 = vmul.f32 %v3986, %v3985
        %v3989 = vadd.f32 %v3981, %v3987
        %v3990 = vadd.f32 %v3982, %v3988
        %s3991 = sld [smem:[#allocation7 + $0x1a]]
        %v3992 = vld [vmem:[%s2870] sm:$0xff]
        %v3993 = vld [vmem:[%s2870 + $0x8] sm:$0x7f]
        %v3994 = vstv %s3991
        %v3995 = vmul.f32 %v3994, %v3992
        %v3996 = vmul.f32 %v3994, %v3993
        %v3997 = vadd.f32 %v3989, %v3995
        %v3998 = vadd.f32 %v3990, %v3996
        %s3999 = sld [smem:[#allocation7 + $0x1b]]
        %v4000 = vld [vmem:[%s3742] sm:$0xff]
        %v4001 = vld [vmem:[%s3742 + $0x8] sm:$0x7f]
        %v4002 = vstv %s3999
        %v4003 = vmul.f32 %v4002, %v4000
        %v4004 = vmul.f32 %v4002, %v4001
        %v4005 = vadd.f32 %v3997, %v4003
        %v4006 = vadd.f32 %v3998, %v4004
        %s4007 = scalar_lea.vmem %s256, 96
        %4008 = vst.msk [vmem:[%s4007] sm:$0xff] %vm1125, %v4005
        %4009 = vst.msk [vmem:[%s4007 + $0x8] sm:$0x7f] %vm1127, %v4006
        %s4010 = sld [smem:[#allocation9 + $0x7]]
        %v4011 = vstv %s4010
        %v4012 = vadd.f32 %v4011, 0.0
        %s4013 = sld [smem:[#allocation7 + $0x1c]]
        %v4014 = vld [vmem:[#allocation2] sm:$0xff]
        %v4015 = vld [vmem:[#allocation2 + $0x8] sm:$0x7f]
        %v4016 = vstv %s4013
        %v4017 = vmul.f32 %v4016, %v4014
        %v4018 = vmul.f32 %v4016, %v4015
        %v4019 = vadd.f32 %v4012, %v4017
        %v4020 = vadd.f32 %v4012, %v4018
        %s4021 = sld [smem:[#allocation7 + $0x1d]]
        %v4022 = vld [vmem:[%s1998] sm:$0xff]
        %v4023 = vld [vmem:[%s1998 + $0x8] sm:$0x7f]
        %v4024 = vstv %s4021
        %v4025 = vmul.f32 %v4024, %v4022
        %v4026 = vmul.f32 %v4024, %v4023
        %v4027 = vadd.f32 %v4019, %v4025
        %v4028 = vadd.f32 %v4020, %v4026
        %s4029 = sld [smem:[#allocation7 + $0x1e]]
        %v4030 = vld [vmem:[%s2870] sm:$0xff]
        %v4031 = vld [vmem:[%s2870 + $0x8] sm:$0x7f]
        %v4032 = vstv %s4029
        %v4033 = vmul.f32 %v4032, %v4030
        %v4034 = vmul.f32 %v4032, %v4031
        %v4035 = vadd.f32 %v4027, %v4033
        %v4036 = vadd.f32 %v4028, %v4034
        %s4037 = sld [smem:[#allocation7 + $0x1f]]
        %v4038 = vld [vmem:[%s3742] sm:$0xff]
        %v4039 = vld [vmem:[%s3742 + $0x8] sm:$0x7f]
        %v4040 = vstv %s4037
        %v4041 = vmul.f32 %v4040, %v4038
        %v4042 = vmul.f32 %v4040, %v4039
        %v4043 = vadd.f32 %v4035, %v4041
        %v4044 = vadd.f32 %v4036, %v4042
        %s4045 = scalar_lea.vmem %s256, 112
        %4046 = vst.msk [vmem:[%s4045] sm:$0xff] %vm1125, %v4043
        %4047 = vst.msk [vmem:[%s4045 + $0x8] sm:$0x7f] %vm1127, %v4044
        %p4048 = scmp.lt.s32.totalorder %s20, 1
        %s4049 = scalar_select %p4048, %s20, 1
        %s4050 = smul.addr %s4049, 16
        %s4051 = smul.addr %s4050, 8
        %s4052 = scalar_lea.vmem %s4, %s4051
        // Predicated region
        $region53: #{hybrid_quanv2d.1} parent=35 // pred_check
          %p4053 = pneg %p127
        $region54: #{hybrid_quanv2d.1} parent=35 // pred_check_branch
          %4055 = sbr.rel (%p4053) target = $region56
        $region55: #{hybrid_quanv2d.1} parent=35 // pred_region
          _
        $region56: #{hybrid_quanv2d.1} parent=35 // pred_fallthru
          _
      $region36: #{hybrid_quanv2d.1} parent=5 // pred_fallthru
        _
      %p4056 = scmp.le.s32.totalorder 2, %s15
      // Predicated region
      $region57: #{hybrid_quanv2d.1} parent=5 // pred_check
        %p4057 = pneg %p4056
      $region58: #{hybrid_quanv2d.1} parent=5 // pred_check_branch
        %4059 = sbr.rel (%p4057) target = $region60
      $region59: #{hybrid_quanv2d.1} parent=5 // pred_region
        %s4060 = ssub.s32 %s15, 2
        // Predicated region
        $region61: #{hybrid_quanv2d.1} parent=59 // pred_check
          %p4061 = pneg %p133
        $region62: #{hybrid_quanv2d.1} parent=59 // pred_check_branch
          %4063 = sbr.rel (%p4061) target = $region64
        $region63: #{hybrid_quanv2d.1} parent=59 // pred_region
          %p4064 = scmp.lt.s32.totalorder %s21, 1
          %s4065 = scalar_select %p4064, %s21, 1
          %s4066 = smul.addr %s4065, 16
          %s4067 = smul.addr %s4066, 8
          %s4068 = scalar_lea.vmem %s4, %s4067
        $region64: #{hybrid_quanv2d.1} parent=59 // pred_fallthru
          _
      $region60: #{hybrid_quanv2d.1} parent=5 // pred_fallthru
        _
    $region6: #{hybrid_quanv2d.1} parent=1 // loop_footer
      %s19 = sadd.s32 1, %s15
    $region7: #{hybrid_quanv2d.1} parent=1 // loop_footer_branch
      %14 = sbr.rel target = $region3
    $region8: #{hybrid_quanv2d.1} parent=1 // loop_exit
      _
    %4069 = vsyncpa [#allocation4], 1
    %s4070 = scalar_lea.sflag [#allocation4], 1
    %4071 = vsyncpa %s4070, 1
    %4072 = vsyncpa [#allocation5], 1
    %s4073 = scalar_lea.sflag [#allocation5], 1
    %4074 = vsyncpa %s4073, 1
    %4075 = vsyncpa [#allocation8], 1

</llo_original>
